<compile_context>
chip_gen: v5e
topology: v5e:2x2
jax: 0.10.0
libtpu: 0.0.40
codegen_flags: <defaults>
</compile_context>

<pallas_src>
import math
from functools import partial

import jax
import jax.numpy as jnp
from jax.experimental import pallas as pl
from jax.experimental.pallas import tpu as pltpu


# ----------------------------------------------------------------------------
# Fused HeatBlock1D kernel (single invocation, whole batch folded)
# ----------------------------------------------------------------------------

def _layernorm(x, g, b, eps):
    mean = jnp.mean(x, axis=-1, keepdims=True)
    var = jnp.mean(jnp.square(x - mean), axis=-1, keepdims=True)
    return (x - mean) * jax.lax.rsqrt(var + eps) * g + b


def _heat_block_kernel(
    xp_ref,        # (B, L+2, C) zero-padded channels-last input, f32
    cos_ref,       # (B*L, B*L) block-diagonal DCT matrix, bf16
    cost_ref,      # (B*L, B*L) block-diagonal IDCT (transposed) matrix, bf16
    decay_ref,     # (B*L, C)   exp(relu(to_k(freq)) * log(decay)), tiled, f32
    cvec_ref,      # (16, C)    packed row constants, f32
    fc1_b_ref,     # (1, H)     fc1 bias, f32
    wx_ref, wz_ref, ow_ref, fc1_w_ref, fc2_w_ref,   # matmul weights, bf16
    o_ref,         # (B, L, C)  output, f32
    *, eps_out, eps_blk):
    f32 = jnp.float32
    bf16 = jnp.bfloat16
    B, Lp2, C = xp_ref.shape
    L = Lp2 - 2
    BL = B * L

    # packed (1, C) constants (static sublane slices)
    cv = cvec_ref[...]
    dw0, dw1, dw2, dwb = cv[0:1], cv[1:2], cv[2:3], cv[3:4]
    bx, bz, ob = cv[4:5], cv[5:6], cv[6:7]
    on_g, on_b = cv[7:8], cv[8:9]
    n1_g, n1_b = cv[9:10], cv[10:11]
    fc2_b = cv[11:12]
    n2_g, n2_b = cv[12:13], cv[13:14]

    xp = xp_ref[...]                                     # (B, L+2, C)

    # --- Heat1D --------------------------------------------------------------
    # depthwise conv1d k=3 p=1 groups=C: three shifted reads of the padded
    # input, flattened to (B*L, C) so every matmul below runs with M = B*L.
    xm1 = xp[:, 0:L, :].reshape(BL, C)
    x0 = xp[:, 1:L + 1, :].reshape(BL, C)                # raw block input rows
    xp1 = xp[:, 2:L + 2, :].reshape(BL, C)
    h = xm1 * dw0 + x0 * dw1 + xp1 * dw2 + dwb           # (B*L, C), f32 (VPU)

    # in-projection Linear(C -> 2C), weight pre-split into x / z halves
    hb = h.astype(bf16)
    x1 = jnp.dot(hb, wx_ref[...], preferred_element_type=f32) + bx
    z = jnp.dot(hb, wz_ref[...], preferred_element_type=f32) + bz

    # DCT along L (block-diagonal over the folded batch), precomputed decay
    # modulation, inverse DCT.
    xd = jnp.dot(cos_ref[...], x1.astype(bf16), preferred_element_type=f32)
    xm = xd * decay_ref[...]
    xi = jnp.dot(cost_ref[...], xm.astype(bf16), preferred_element_type=f32)

    # out_norm, gate with silu(z), out_linear
    y = _layernorm(xi, on_g, on_b, eps_out)
    y = y * (z * jax.nn.sigmoid(z))                      # x * silu(z)
    y = jnp.dot(y.astype(bf16), ow_ref[...], preferred_element_type=f32) + ob

    # --- norm1 + residual (post_norm=True, layer_scale=None, drop_path=Id) ---
    x_res = x0 + _layernorm(y, n1_g, n1_b, eps_blk)

    # --- MLP branch: fc1 -> GELU (exact erf, torch default) -> fc2 -----------
    hmid = jnp.dot(x_res.astype(bf16), fc1_w_ref[...],
                   preferred_element_type=f32) + fc1_b_ref[...]
    hmid = 0.5 * hmid * (1.0 + jax.lax.erf(hmid * (1.0 / math.sqrt(2.0))))
    m = jnp.dot(hmid.astype(bf16), fc2_w_ref[...],
                preferred_element_type=f32) + fc2_b
    out = x_res + _layernorm(m, n2_g, n2_b, eps_blk)

    o_ref[...] = out.reshape(B, L, C).astype(o_ref.dtype)


# ----------------------------------------------------------------------------
# Wrapper (jitted): hoists batch-invariant constants, single pallas_call
# ----------------------------------------------------------------------------

def heat_block_forward(params, x_ncl, freq, cos_m, log_decay):
    """HeatBlock1D.forward: x_ncl (B, C, L) channels-first -> (B, C, L)."""
    B, C, L = x_ncl.shape
    H = params["fc1_w"].shape[1]
    BL = B * L
    bf16 = jnp.bfloat16

    # channels-last + zero pad for the k=3 conv (single fused XLA op).
    # TODO(synk): a channels-last caller could skip both transposes entirely.
    xp = jnp.pad(jnp.transpose(x_ncl, (0, 2, 1)), ((0, 0), (1, 1), (0, 0)))

    # ---- batch-invariant constants, hoisted out of the kernel ---------------
    # pow(decay[l], relu(to_k(freq))[l,c]) == exp(relu(freq @ k_w + k_b)[l,c] * log(decay)[l])
    k = jnp.maximum(freq @ params["k_w"] + params["k_b"], 0.0)
    decay_bd = jnp.tile(jnp.exp(k * log_decay), (B, 1))            # (B*L, C) f32
    # block-diagonal DCT / IDCT over the folded batch -> one M=B*L matmul each
    # (exact; for large B or L switch to a batched / blocked DCT instead).
    eye = jnp.eye(B, dtype=cos_m.dtype)
    cos_bd = jnp.kron(eye, cos_m).astype(bf16)                      # (B*L, B*L)
    cost_bd = jnp.kron(eye, cos_m.T).astype(bf16)
    # pack all lane-width-C row constants into one (16, C) block
    cvec = jnp.concatenate(
        [params["dw_w"], params["dw_b"],                            # rows 0-3
         params["lin_bx"], params["lin_bz"], params["out_b"],       # 4,5,6
         params["on_g"], params["on_b"],                            # 7,8
         params["n1_g"], params["n1_b"],                            # 9,10
         params["fc2_b"],                                           # 11
         params["n2_g"], params["n2_b"],                            # 12,13
         jnp.zeros((2, C), jnp.float32)], axis=0)                   # pad -> 16
    # MXU operands in bf16 (accumulation stays f32 inside the kernel)
    wx, wz, ow = [params[n].astype(bf16) for n in ("lin_wx", "lin_wz", "out_w")]
    fc1_w = params["fc1_w"].astype(bf16)
    fc2_w = params["fc2_w"].astype(bf16)
    fc1_b = params["fc1_b"]

    flops = 2 * BL * C * (3 * C + 2 * H) + 2 * (2 * BL * BL * C)
    transcendentals = BL * (C + H)
    bytes_accessed = (
        (xp.size + decay_bd.size + cvec.size + fc1_b.size + BL * C) * 4
        + (cos_bd.size + cost_bd.size + wx.size + wz.size + ow.size
           + fc1_w.size + fc2_w.size) * 2)

    out = pl.pallas_call(
        partial(_heat_block_kernel, eps_out=1e-5, eps_blk=1e-6),
        out_shape=jax.ShapeDtypeStruct((B, L, C), jnp.float32),
        cost_estimate=pl.CostEstimate(flops=flops,
                                      transcendentals=transcendentals,
                                      bytes_accessed=bytes_accessed),
    )(xp, cos_bd, cost_bd, decay_bd, cvec, fc1_b, wx, wz, ow, fc1_w, fc2_w)

    return jnp.transpose(out, (0, 2, 1))                 # back to (B, C, L)


heat_block_forward_jit = jax.jit(heat_block_forward)


# ----------------------------------------------------------------------------
# Host-side constants
# ----------------------------------------------------------------------------

def get_cos_map(L):
    x = (jnp.arange(L, dtype=jnp.float32) + 0.5) / L
    n = jnp.arange(L, dtype=jnp.float32)[:, None]
    cm = jnp.cos(n * x[None, :] * math.pi) * math.sqrt(2.0 / L)
    cm = cm.at[0, :].multiply(1.0 / math.sqrt(2.0))
    return cm


def get_log_decay_map(L):
    # log(get_decay_map(L)) = -(linspace(0, pi, L+1)[:L])^2
    w = jnp.linspace(0.0, math.pi, L + 1, dtype=jnp.float32)[:L]
    return (-jnp.square(w)).reshape(L, 1)


# ----------------------------------------------------------------------------
# Deterministic synthetic parameters (eval mode; Dropout/DropPath = identity)
# ----------------------------------------------------------------------------

class KeyGen:
    def __init__(self, key):
        self.key = key

    def __call__(self):
        self.key, sub = jax.random.split(self.key)
        return sub


def init_heat_block_params(key, C, mlp_ratio):
    kg = KeyGen(key)
    H = int(C * mlp_ratio)
    rnd = lambda shape: 0.02 * jax.random.normal(kg(), shape, jnp.float32)
    ones = lambda n: jnp.ones((1, n), jnp.float32)
    zeros = lambda n: jnp.zeros((1, n), jnp.float32)
    return {
        # Heat1D
        "dw_w": rnd((3, C)), "dw_b": zeros(C),           # depthwise conv (tap, chan)
        "lin_wx": rnd((C, C)), "lin_bx": zeros(C),       # first half of Linear(C, 2C)
        "lin_wz": rnd((C, C)), "lin_bz": zeros(C),       # second half (gate z)
        "k_w": rnd((C, C)), "k_b": zeros(C),             # to_k (used in wrapper hoist)
        "on_g": ones(C), "on_b": zeros(C),               # out_norm
        "out_w": rnd((C, C)), "out_b": zeros(C),         # out_linear
        # HeatBlock1D
        "n1_g": ones(C), "n1_b": zeros(C),
        "fc1_w": rnd((C, H)), "fc1_b": zeros(H),
        "fc2_w": rnd((H, C)), "fc2_b": zeros(C),
        "n2_g": ones(C), "n2_b": zeros(C),
    }
    # TODO(synk): DropPath / Dropout are stochastic (identity in eval); not implemented.


# ----------------------------------------------------------------------------
# Main
# ----------------------------------------------------------------------------

if __name__ == "__main__":
    B, C, L = 2, 128, 64          # dim = hidden_dim = 128 (lane-dense), seq len 64
    mlp_ratio = 4.0

    key = jax.random.PRNGKey(0)
    pkey, xkey, fkey = jax.random.split(key, 3)
    params = init_heat_block_params(pkey, C, mlp_ratio)
    x = jax.random.normal(xkey, (B, C, L), jnp.float32)             # NCL like PyTorch
    freq_embed = 0.02 * jax.random.normal(fkey, (L, C), jnp.float32)

    cos_m = get_cos_map(L)
    log_decay = get_log_decay_map(L)

    out = heat_block_forward_jit(params, x, freq_embed, cos_m, log_decay)
    out = jax.block_until_ready(out)
    assert out.shape == (B, C, L)
    assert bool(jnp.all(jnp.isfinite(out)))
    print("KERNEL_OK")
</pallas_src>

<mosaic_0001>
module attributes {stable_mosaic.version = 11 : i64} {
  func.func @_heat_block_kernel(%arg0: memref<2x66x128xf32, #tpu.memory_space<vmem>>, %arg1: memref<128x128xbf16, #tpu.memory_space<vmem>>, %arg2: memref<128x128xbf16, #tpu.memory_space<vmem>>, %arg3: memref<128x128xf32, #tpu.memory_space<vmem>>, %arg4: memref<16x128xf32, #tpu.memory_space<vmem>>, %arg5: memref<1x512xf32, #tpu.memory_space<vmem>>, %arg6: memref<128x128xbf16, #tpu.memory_space<vmem>>, %arg7: memref<128x128xbf16, #tpu.memory_space<vmem>>, %arg8: memref<128x128xbf16, #tpu.memory_space<vmem>>, %arg9: memref<128x512xbf16, #tpu.memory_space<vmem>>, %arg10: memref<512x128xbf16, #tpu.memory_space<vmem>>, %arg11: memref<2x64x128xf32, #tpu.memory_space<vmem>>) attributes {dimension_semantics = [], scalar_prefetch = 0 : i64, scratch_operands = 0 : i64, tpu.core_type = #tpu.core_type<tc>} {
    %c0 = arith.constant 0 : index
    %c0_0 = arith.constant 0 : index
    %0 = vector.load %arg4[%c0, %c0_0] : memref<16x128xf32, #tpu.memory_space<vmem>>, vector<16x128xf32>
    %1 = vector.extract_strided_slice %0 {offsets = [0, 0], sizes = [1, 128], strides = [1, 1]} : vector<16x128xf32> to vector<1x128xf32>
    %2 = vector.extract_strided_slice %0 {offsets = [1, 0], sizes = [1, 128], strides = [1, 1]} : vector<16x128xf32> to vector<1x128xf32>
    %3 = vector.extract_strided_slice %0 {offsets = [2, 0], sizes = [1, 128], strides = [1, 1]} : vector<16x128xf32> to vector<1x128xf32>
    %4 = vector.extract_strided_slice %0 {offsets = [3, 0], sizes = [1, 128], strides = [1, 1]} : vector<16x128xf32> to vector<1x128xf32>
    %5 = vector.extract_strided_slice %0 {offsets = [4, 0], sizes = [1, 128], strides = [1, 1]} : vector<16x128xf32> to vector<1x128xf32>
    %6 = vector.extract_strided_slice %0 {offsets = [5, 0], sizes = [1, 128], strides = [1, 1]} : vector<16x128xf32> to vector<1x128xf32>
    %7 = vector.extract_strided_slice %0 {offsets = [6, 0], sizes = [1, 128], strides = [1, 1]} : vector<16x128xf32> to vector<1x128xf32>
    %8 = vector.extract_strided_slice %0 {offsets = [7, 0], sizes = [1, 128], strides = [1, 1]} : vector<16x128xf32> to vector<1x128xf32>
    %9 = vector.extract_strided_slice %0 {offsets = [8, 0], sizes = [1, 128], strides = [1, 1]} : vector<16x128xf32> to vector<1x128xf32>
    %10 = vector.extract_strided_slice %0 {offsets = [9, 0], sizes = [1, 128], strides = [1, 1]} : vector<16x128xf32> to vector<1x128xf32>
    %11 = vector.extract_strided_slice %0 {offsets = [10, 0], sizes = [1, 128], strides = [1, 1]} : vector<16x128xf32> to vector<1x128xf32>
    %12 = vector.extract_strided_slice %0 {offsets = [11, 0], sizes = [1, 128], strides = [1, 1]} : vector<16x128xf32> to vector<1x128xf32>
    %13 = vector.extract_strided_slice %0 {offsets = [12, 0], sizes = [1, 128], strides = [1, 1]} : vector<16x128xf32> to vector<1x128xf32>
    %14 = vector.extract_strided_slice %0 {offsets = [13, 0], sizes = [1, 128], strides = [1, 1]} : vector<16x128xf32> to vector<1x128xf32>
    %c0_1 = arith.constant 0 : index
    %c0_2 = arith.constant 0 : index
    %c0_3 = arith.constant 0 : index
    %15 = vector.load %arg0[%c0_1, %c0_2, %c0_3] : memref<2x66x128xf32, #tpu.memory_space<vmem>>, vector<2x66x128xf32>
    %16 = vector.extract_strided_slice %15 {offsets = [0, 0, 0], sizes = [2, 64, 128], strides = [1, 1, 1]} : vector<2x66x128xf32> to vector<2x64x128xf32>
    %17 = vector.shape_cast %16 : vector<2x64x128xf32> to vector<128x128xf32>
    %18 = vector.extract_strided_slice %15 {offsets = [0, 1, 0], sizes = [2, 64, 128], strides = [1, 1, 1]} : vector<2x66x128xf32> to vector<2x64x128xf32>
    %19 = vector.shape_cast %18 : vector<2x64x128xf32> to vector<128x128xf32>
    %20 = vector.extract_strided_slice %15 {offsets = [0, 2, 0], sizes = [2, 64, 128], strides = [1, 1, 1]} : vector<2x66x128xf32> to vector<2x64x128xf32>
    %21 = vector.shape_cast %20 : vector<2x64x128xf32> to vector<128x128xf32>
    %22 = vector.broadcast %1 : vector<1x128xf32> to vector<128x128xf32>
    %23 = arith.mulf %17, %22 : vector<128x128xf32>
    %24 = vector.broadcast %2 : vector<1x128xf32> to vector<128x128xf32>
    %25 = arith.mulf %19, %24 : vector<128x128xf32>
    %26 = arith.addf %23, %25 : vector<128x128xf32>
    %27 = vector.broadcast %3 : vector<1x128xf32> to vector<128x128xf32>
    %28 = arith.mulf %21, %27 : vector<128x128xf32>
    %29 = arith.addf %26, %28 : vector<128x128xf32>
    %30 = vector.broadcast %4 : vector<1x128xf32> to vector<128x128xf32>
    %31 = arith.addf %29, %30 : vector<128x128xf32>
    %32 = arith.truncf %31 : vector<128x128xf32> to vector<128x128xbf16>
    %c0_4 = arith.constant 0 : index
    %c0_5 = arith.constant 0 : index
    %33 = vector.load %arg6[%c0_4, %c0_5] : memref<128x128xbf16, #tpu.memory_space<vmem>>, vector<128x128xbf16>
    %cst = arith.constant dense<0.000000e+00> : vector<128x128xf32>
    %34 = tpu.matmul %32, %33, %cst {dimension_numbers = #tpu.dot_dimension_numbers<[1], [0], [0], [1], [0, 0, 1, 1], [], []>} : vector<128x128xbf16>, vector<128x128xbf16>, vector<128x128xf32> -> vector<128x128xf32>
    %35 = vector.broadcast %5 : vector<1x128xf32> to vector<128x128xf32>
    %36 = arith.addf %34, %35 : vector<128x128xf32>
    %c0_6 = arith.constant 0 : index
    %c0_7 = arith.constant 0 : index
    %37 = vector.load %arg7[%c0_6, %c0_7] : memref<128x128xbf16, #tpu.memory_space<vmem>>, vector<128x128xbf16>
    %cst_8 = arith.constant dense<0.000000e+00> : vector<128x128xf32>
    %38 = tpu.matmul %32, %37, %cst_8 {dimension_numbers = #tpu.dot_dimension_numbers<[1], [0], [0], [1], [0, 0, 1, 1], [], []>} : vector<128x128xbf16>, vector<128x128xbf16>, vector<128x128xf32> -> vector<128x128xf32>
    %39 = vector.broadcast %6 : vector<1x128xf32> to vector<128x128xf32>
    %40 = arith.addf %38, %39 : vector<128x128xf32>
    %c0_9 = arith.constant 0 : index
    %c0_10 = arith.constant 0 : index
    %41 = vector.load %arg1[%c0_9, %c0_10] : memref<128x128xbf16, #tpu.memory_space<vmem>>, vector<128x128xbf16>
    %42 = arith.truncf %36 : vector<128x128xf32> to vector<128x128xbf16>
    %cst_11 = arith.constant dense<0.000000e+00> : vector<128x128xf32>
    %43 = tpu.matmul %41, %42, %cst_11 {dimension_numbers = #tpu.dot_dimension_numbers<[1], [0], [0], [1], [0, 0, 1, 1], [], []>} : vector<128x128xbf16>, vector<128x128xbf16>, vector<128x128xf32> -> vector<128x128xf32>
    %c0_12 = arith.constant 0 : index
    %c0_13 = arith.constant 0 : index
    %44 = vector.load %arg3[%c0_12, %c0_13] : memref<128x128xf32, #tpu.memory_space<vmem>>, vector<128x128xf32>
    %45 = arith.mulf %43, %44 : vector<128x128xf32>
    %c0_14 = arith.constant 0 : index
    %c0_15 = arith.constant 0 : index
    %46 = vector.load %arg2[%c0_14, %c0_15] : memref<128x128xbf16, #tpu.memory_space<vmem>>, vector<128x128xbf16>
    %47 = arith.truncf %45 : vector<128x128xf32> to vector<128x128xbf16>
    %cst_16 = arith.constant dense<0.000000e+00> : vector<128x128xf32>
    %48 = tpu.matmul %46, %47, %cst_16 {dimension_numbers = #tpu.dot_dimension_numbers<[1], [0], [0], [1], [0, 0, 1, 1], [], []>} : vector<128x128xbf16>, vector<128x128xbf16>, vector<128x128xf32> -> vector<128x128xf32>
    %cst_17 = arith.constant dense<0.000000e+00> : vector<128xf32>
    %49 = vector.multi_reduction <add>, %48, %cst_17 [1] : vector<128x128xf32> to vector<128xf32>
    %50 = vector.shape_cast %49 : vector<128xf32> to vector<128x1xf32>
    %cst_18 = arith.constant 1.280000e+02 : f32
    %51 = vector.broadcast %cst_18 : f32 to vector<128x1xf32>
    %52 = arith.divf %50, %51 : vector<128x1xf32>
    %53 = vector.broadcast %52 : vector<128x1xf32> to vector<128x128xf32>
    %54 = arith.subf %48, %53 : vector<128x128xf32>
    %55 = arith.mulf %54, %54 : vector<128x128xf32>
    %cst_19 = arith.constant dense<0.000000e+00> : vector<128xf32>
    %56 = vector.multi_reduction <add>, %55, %cst_19 [1] : vector<128x128xf32> to vector<128xf32>
    %57 = vector.shape_cast %56 : vector<128xf32> to vector<128x1xf32>
    %cst_20 = arith.constant 1.280000e+02 : f32
    %58 = vector.broadcast %cst_20 : f32 to vector<128x1xf32>
    %59 = arith.divf %57, %58 : vector<128x1xf32>
    %60 = vector.broadcast %52 : vector<128x1xf32> to vector<128x128xf32>
    %61 = arith.subf %48, %60 : vector<128x128xf32>
    %cst_21 = arith.constant 9.99999974E-6 : f32
    %62 = vector.broadcast %cst_21 : f32 to vector<128x1xf32>
    %63 = arith.addf %59, %62 : vector<128x1xf32>
    %64 = math.rsqrt %63 : vector<128x1xf32>
    %65 = vector.broadcast %64 : vector<128x1xf32> to vector<128x128xf32>
    %66 = arith.mulf %61, %65 : vector<128x128xf32>
    %67 = vector.broadcast %8 : vector<1x128xf32> to vector<128x128xf32>
    %68 = arith.mulf %66, %67 : vector<128x128xf32>
    %69 = vector.broadcast %9 : vector<1x128xf32> to vector<128x128xf32>
    %70 = arith.addf %68, %69 : vector<128x128xf32>
    %71 = arith.negf %40 : vector<128x128xf32>
    %72 = math.exp %71 : vector<128x128xf32>
    %cst_22 = arith.constant 1.000000e+00 : f32
    %73 = vector.broadcast %cst_22 : f32 to vector<128x128xf32>
    %74 = arith.addf %73, %72 : vector<128x128xf32>
    %75 = arith.divf %73, %74 : vector<128x128xf32>
    %76 = arith.mulf %40, %75 : vector<128x128xf32>
    %77 = arith.mulf %70, %76 : vector<128x128xf32>
    %78 = arith.truncf %77 : vector<128x128xf32> to vector<128x128xbf16>
    %c0_23 = arith.constant 0 : index
    %c0_24 = arith.constant 0 : index
    %79 = vector.load %arg8[%c0_23, %c0_24] : memref<128x128xbf16, #tpu.memory_space<vmem>>, vector<128x128xbf16>
    %cst_25 = arith.constant dense<0.000000e+00> : vector<128x128xf32>
    %80 = tpu.matmul %78, %79, %cst_25 {dimension_numbers = #tpu.dot_dimension_numbers<[1], [0], [0], [1], [0, 0, 1, 1], [], []>} : vector<128x128xbf16>, vector<128x128xbf16>, vector<128x128xf32> -> vector<128x128xf32>
    %81 = vector.broadcast %7 : vector<1x128xf32> to vector<128x128xf32>
    %82 = arith.addf %80, %81 : vector<128x128xf32>
    %cst_26 = arith.constant dense<0.000000e+00> : vector<128xf32>
    %83 = vector.multi_reduction <add>, %82, %cst_26 [1] : vector<128x128xf32> to vector<128xf32>
    %84 = vector.shape_cast %83 : vector<128xf32> to vector<128x1xf32>
    %cst_27 = arith.constant 1.280000e+02 : f32
    %85 = vector.broadcast %cst_27 : f32 to vector<128x1xf32>
    %86 = arith.divf %84, %85 : vector<128x1xf32>
    %87 = vector.broadcast %86 : vector<128x1xf32> to vector<128x128xf32>
    %88 = arith.subf %82, %87 : vector<128x128xf32>
    %89 = arith.mulf %88, %88 : vector<128x128xf32>
    %cst_28 = arith.constant dense<0.000000e+00> : vector<128xf32>
    %90 = vector.multi_reduction <add>, %89, %cst_28 [1] : vector<128x128xf32> to vector<128xf32>
    %91 = vector.shape_cast %90 : vector<128xf32> to vector<128x1xf32>
    %cst_29 = arith.constant 1.280000e+02 : f32
    %92 = vector.broadcast %cst_29 : f32 to vector<128x1xf32>
    %93 = arith.divf %91, %92 : vector<128x1xf32>
    %94 = vector.broadcast %86 : vector<128x1xf32> to vector<128x128xf32>
    %95 = arith.subf %82, %94 : vector<128x128xf32>
    %cst_30 = arith.constant 9.99999997E-7 : f32
    %96 = vector.broadcast %cst_30 : f32 to vector<128x1xf32>
    %97 = arith.addf %93, %96 : vector<128x1xf32>
    %98 = math.rsqrt %97 : vector<128x1xf32>
    %99 = vector.broadcast %98 : vector<128x1xf32> to vector<128x128xf32>
    %100 = arith.mulf %95, %99 : vector<128x128xf32>
    %101 = vector.broadcast %10 : vector<1x128xf32> to vector<128x128xf32>
    %102 = arith.mulf %100, %101 : vector<128x128xf32>
    %103 = vector.broadcast %11 : vector<1x128xf32> to vector<128x128xf32>
    %104 = arith.addf %102, %103 : vector<128x128xf32>
    %105 = arith.addf %19, %104 : vector<128x128xf32>
    %106 = arith.truncf %105 : vector<128x128xf32> to vector<128x128xbf16>
    %c0_31 = arith.constant 0 : index
    %c0_32 = arith.constant 0 : index
    %107 = vector.load %arg9[%c0_31, %c0_32] : memref<128x512xbf16, #tpu.memory_space<vmem>>, vector<128x512xbf16>
    %cst_33 = arith.constant dense<0.000000e+00> : vector<128x512xf32>
    %108 = tpu.matmul %106, %107, %cst_33 {dimension_numbers = #tpu.dot_dimension_numbers<[1], [0], [0], [1], [0, 0, 1, 1], [], []>} : vector<128x128xbf16>, vector<128x512xbf16>, vector<128x512xf32> -> vector<128x512xf32>
    %c0_34 = arith.constant 0 : index
    %c0_35 = arith.constant 0 : index
    %109 = vector.load %arg5[%c0_34, %c0_35] : memref<1x512xf32, #tpu.memory_space<vmem>>, vector<1x512xf32>
    %110 = vector.broadcast %109 : vector<1x512xf32> to vector<128x512xf32>
    %111 = arith.addf %108, %110 : vector<128x512xf32>
    %cst_36 = arith.constant 5.000000e-01 : f32
    %112 = vector.broadcast %cst_36 : f32 to vector<128x512xf32>
    %113 = arith.mulf %112, %111 : vector<128x512xf32>
    %cst_37 = arith.constant 0.707106769 : f32
    %114 = vector.broadcast %cst_37 : f32 to vector<128x512xf32>
    %115 = arith.mulf %111, %114 : vector<128x512xf32>
    %116 = math.erf %115 : vector<128x512xf32>
    %cst_38 = arith.constant 1.000000e+00 : f32
    %117 = vector.broadcast %cst_38 : f32 to vector<128x512xf32>
    %118 = arith.addf %117, %116 : vector<128x512xf32>
    %119 = arith.mulf %113, %118 : vector<128x512xf32>
    %120 = arith.truncf %119 : vector<128x512xf32> to vector<128x512xbf16>
    %c0_39 = arith.constant 0 : index
    %c0_40 = arith.constant 0 : index
    %121 = vector.load %arg10[%c0_39, %c0_40] : memref<512x128xbf16, #tpu.memory_space<vmem>>, vector<512x128xbf16>
    %cst_41 = arith.constant dense<0.000000e+00> : vector<128x128xf32>
    %122 = tpu.matmul %120, %121, %cst_41 {dimension_numbers = #tpu.dot_dimension_numbers<[1], [0], [0], [1], [0, 0, 1, 1], [], []>} : vector<128x512xbf16>, vector<512x128xbf16>, vector<128x128xf32> -> vector<128x128xf32>
    %123 = vector.broadcast %12 : vector<1x128xf32> to vector<128x128xf32>
    %124 = arith.addf %122, %123 : vector<128x128xf32>
    %cst_42 = arith.constant dense<0.000000e+00> : vector<128xf32>
    %125 = vector.multi_reduction <add>, %124, %cst_42 [1] : vector<128x128xf32> to vector<128xf32>
    %126 = vector.shape_cast %125 : vector<128xf32> to vector<128x1xf32>
    %cst_43 = arith.constant 1.280000e+02 : f32
    %127 = vector.broadcast %cst_43 : f32 to vector<128x1xf32>
    %128 = arith.divf %126, %127 : vector<128x1xf32>
    %129 = vector.broadcast %128 : vector<128x1xf32> to vector<128x128xf32>
    %130 = arith.subf %124, %129 : vector<128x128xf32>
    %131 = arith.mulf %130, %130 : vector<128x128xf32>
    %cst_44 = arith.constant dense<0.000000e+00> : vector<128xf32>
    %132 = vector.multi_reduction <add>, %131, %cst_44 [1] : vector<128x128xf32> to vector<128xf32>
    %133 = vector.shape_cast %132 : vector<128xf32> to vector<128x1xf32>
    %cst_45 = arith.constant 1.280000e+02 : f32
    %134 = vector.broadcast %cst_45 : f32 to vector<128x1xf32>
    %135 = arith.divf %133, %134 : vector<128x1xf32>
    %136 = vector.broadcast %128 : vector<128x1xf32> to vector<128x128xf32>
    %137 = arith.subf %124, %136 : vector<128x128xf32>
    %cst_46 = arith.constant 9.99999997E-7 : f32
    %138 = vector.broadcast %cst_46 : f32 to vector<128x1xf32>
    %139 = arith.addf %135, %138 : vector<128x1xf32>
    %140 = math.rsqrt %139 : vector<128x1xf32>
    %141 = vector.broadcast %140 : vector<128x1xf32> to vector<128x128xf32>
    %142 = arith.mulf %137, %141 : vector<128x128xf32>
    %143 = vector.broadcast %13 : vector<1x128xf32> to vector<128x128xf32>
    %144 = arith.mulf %142, %143 : vector<128x128xf32>
    %145 = vector.broadcast %14 : vector<1x128xf32> to vector<128x128xf32>
    %146 = arith.addf %144, %145 : vector<128x128xf32>
    %147 = arith.addf %105, %146 : vector<128x128xf32>
    %148 = vector.shape_cast %147 : vector<128x128xf32> to vector<2x64x128xf32>
    %c0_47 = arith.constant 0 : index
    %c0_48 = arith.constant 0 : index
    %c0_49 = arith.constant 0 : index
    %149 = vector.load %arg11[%c0_47, %c0_48, %c0_49] : memref<2x64x128xf32, #tpu.memory_space<vmem>>, vector<2x64x128xf32>
    tpu.vector_store %arg11[%c0_47, %c0_48, %c0_49], %148 {strides = array<i32>} : memref<2x64x128xf32, #tpu.memory_space<vmem>>, vector<2x64x128xf32>,
    return
  }
}

</mosaic_0001>

<llo_original>
// kernel: heat_block_forward.1
$region0: #{heat_block_forward.1}
  #allocation0 [shape = 'u32[]', space=smem, size = 0x4, offset = 0x4, fixed_abs, tag = 'smem constant byte address 0x4 - core index']
  #allocation1 [shape = 'u32[72,128]{1,0:T(1,128)}', space=vmem, size = 0x9000, scoped, tag = 'internal scratch']
  %s0 = inlined_call_operand.vmem [shape: f32[2,66,128], index: 0, kind: input, shape index: {}]
  %s1 = inlined_call_operand.vmem [shape: bf16[128,128], index: 1, kind: input, shape index: {}]
  %s2 = inlined_call_operand.vmem [shape: bf16[128,128], index: 2, kind: input, shape index: {}]
  %s3 = inlined_call_operand.vmem [shape: f32[128,128], index: 3, kind: input, shape index: {}]
  %s4 = inlined_call_operand.vmem [shape: f32[16,128], index: 4, kind: input, shape index: {}]
  %s5 = inlined_call_operand.vmem [shape: f32[1,512], index: 5, kind: input, shape index: {}]
  %s6 = inlined_call_operand.vmem [shape: bf16[128,128], index: 6, kind: input, shape index: {}]
  %s7 = inlined_call_operand.vmem [shape: bf16[128,128], index: 7, kind: input, shape index: {}]
  %s8 = inlined_call_operand.vmem [shape: bf16[128,128], index: 8, kind: input, shape index: {}]
  %s9 = inlined_call_operand.vmem [shape: bf16[128,512], index: 9, kind: input, shape index: {}]
  %s10 = inlined_call_operand.vmem [shape: bf16[512,128], index: 10, kind: input, shape index: {}]
  %s11 = inlined_call_operand.hbm [shape: f32[2,64,128], index: 11, kind: output, shape index: {}]
  %s12 = sld [smem:[#allocation0]]
  $region54: #{heat_block_forward.1} parent=0
    _
  %s14 = ssub.s32 1, %s12
  %s15 = scalar_select 0, %s14, %s12
  $region1: #{heat_block_forward.1} parent=0
    #allocation2 [shape = 'u8[65536]{0}', space=vmem, size = 0x10000, scoped, tag = 'output window, operand 0, single buffered']
    #allocation3 [shape = 's32[1]{0}', space=sflag, size = 0x4, scoped, tag = 'scoped memory for heat_block_forward.1']
    %16 = vsyncpa [#allocation3], 0
    // Predicated region
    $region2: #{heat_block_forward.1} parent=1 // pred_check
      _
    $region3: #{heat_block_forward.1} parent=1 // pred_check_branch
      %18 = sbr.rel (0) target = $region5
    $region4: #{heat_block_forward.1} parent=1 // pred_region
      _
    $region5: #{heat_block_forward.1} parent=1 // pred_fallthru
      _
    // Predicated region
    $region6: #{heat_block_forward.1} parent=1 // pred_check
      _
    $region7: #{heat_block_forward.1} parent=1 // pred_check_branch
      %20 = sbr.rel (0) target = $region9
    $region8: #{heat_block_forward.1} parent=1 // pred_region
      _
    $region9: #{heat_block_forward.1} parent=1 // pred_fallthru
      _
    // Predicated region
    $region10: #{heat_block_forward.1} parent=1 // pred_check
      _
    $region11: #{heat_block_forward.1} parent=1 // pred_check_branch
      %22 = sbr.rel (0) target = $region13
    $region12: #{heat_block_forward.1} parent=1 // pred_region
      _
    $region13: #{heat_block_forward.1} parent=1 // pred_fallthru
      _
    // Predicated region
    $region14: #{heat_block_forward.1} parent=1 // pred_check
      _
    $region15: #{heat_block_forward.1} parent=1 // pred_check_branch
      %24 = sbr.rel (0) target = $region17
    $region16: #{heat_block_forward.1} parent=1 // pred_region
      _
    $region17: #{heat_block_forward.1} parent=1 // pred_fallthru
      _
    // Predicated region
    $region18: #{heat_block_forward.1} parent=1 // pred_check
      _
    $region19: #{heat_block_forward.1} parent=1 // pred_check_branch
      %26 = sbr.rel (0) target = $region21
    $region20: #{heat_block_forward.1} parent=1 // pred_region
      _
    $region21: #{heat_block_forward.1} parent=1 // pred_fallthru
      _
    // Predicated region
    $region22: #{heat_block_forward.1} parent=1 // pred_check
      _
    $region23: #{heat_block_forward.1} parent=1 // pred_check_branch
      %28 = sbr.rel (0) target = $region25
    $region24: #{heat_block_forward.1} parent=1 // pred_region
      _
    $region25: #{heat_block_forward.1} parent=1 // pred_fallthru
      _
    // Predicated region
    $region26: #{heat_block_forward.1} parent=1 // pred_check
      _
    $region27: #{heat_block_forward.1} parent=1 // pred_check_branch
      %30 = sbr.rel (0) target = $region29
    $region28: #{heat_block_forward.1} parent=1 // pred_region
      _
    $region29: #{heat_block_forward.1} parent=1 // pred_fallthru
      _
    // Predicated region
    $region30: #{heat_block_forward.1} parent=1 // pred_check
      _
    $region31: #{heat_block_forward.1} parent=1 // pred_check_branch
      %32 = sbr.rel (0) target = $region33
    $region32: #{heat_block_forward.1} parent=1 // pred_region
      _
    $region33: #{heat_block_forward.1} parent=1 // pred_fallthru
      _
    // Predicated region
    $region34: #{heat_block_forward.1} parent=1 // pred_check
      _
    $region35: #{heat_block_forward.1} parent=1 // pred_check_branch
      %34 = sbr.rel (0) target = $region37
    $region36: #{heat_block_forward.1} parent=1 // pred_region
      _
    $region37: #{heat_block_forward.1} parent=1 // pred_fallthru
      _
    // Predicated region
    $region38: #{heat_block_forward.1} parent=1 // pred_check
      _
    $region39: #{heat_block_forward.1} parent=1 // pred_check_branch
      %36 = sbr.rel (0) target = $region41
    $region40: #{heat_block_forward.1} parent=1 // pred_region
      _
    $region41: #{heat_block_forward.1} parent=1 // pred_fallthru
      _
    // Predicated region
    $region42: #{heat_block_forward.1} parent=1 // pred_check
      _
    $region43: #{heat_block_forward.1} parent=1 // pred_check_branch
      %38 = sbr.rel (0) target = $region45
    $region44: #{heat_block_forward.1} parent=1 // pred_region
      _
    $region45: #{heat_block_forward.1} parent=1 // pred_fallthru
      _
    %v39 = vld [vmem:[%s4] sm:$0xff]
    %v40 = vld [vmem:[%s4 + $0x8] sm:$0xff]
    %v41 = vld [vmem:[%s0] sm:$0xff]
    %v42 = vld [vmem:[%s0 + $0x8] sm:$0xff]
    %v43 = vld [vmem:[%s0 + $0x10] sm:$0xff]
    %v44 = vld [vmem:[%s0 + $0x18] sm:$0xff]
    %v45 = vld [vmem:[%s0 + $0x20] sm:$0xff]
    %v46 = vld [vmem:[%s0 + $0x28] sm:$0xff]
    %v47 = vld [vmem:[%s0 + $0x30] sm:$0xff]
    %v48 = vld [vmem:[%s0 + $0x38] sm:$0xff]
    %v49 = vld [vmem:[%s0 + $0x40] sm:$0x3]
    %v50 = vld [vmem:[%s0 + $0x48] sm:$0xff]
    %v51 = vld [vmem:[%s0 + $0x50] sm:$0xff]
    %v52 = vld [vmem:[%s0 + $0x58] sm:$0xff]
    %v53 = vld [vmem:[%s0 + $0x60] sm:$0xff]
    %v54 = vld [vmem:[%s0 + $0x68] sm:$0xff]
    %v55 = vld [vmem:[%s0 + $0x70] sm:$0xff]
    %v56 = vld [vmem:[%s0 + $0x78] sm:$0xff]
    %v57 = vld [vmem:[%s0 + $0x80] sm:$0xff]
    %v58 = vld [vmem:[%s0 + $0x88] sm:$0x3]
    %vm77 = vcmask 1046528
    %v78 = vrot.slane %v41, 1
    %v79 = vrot.slane %v42, 1
    %v80 = vsel %vm77, %v78, %v79
    %v81 = vrot.slane %v43, 1
    %v82 = vsel %vm77, %v79, %v81
    %v83 = vrot.slane %v44, 1
    %v84 = vsel %vm77, %v81, %v83
    %v85 = vrot.slane %v45, 1
    %v86 = vsel %vm77, %v83, %v85
    %v87 = vrot.slane %v46, 1
    %v88 = vsel %vm77, %v85, %v87
    %v89 = vrot.slane %v47, 1
    %v90 = vsel %vm77, %v87, %v89
    %v91 = vrot.slane %v48, 1
    %v92 = vsel %vm77, %v89, %v91
    %v93 = vrot.slane %v49, 1
    %v94 = vsel %vm77, %v91, %v93
    %v95 = vrot.slane %v50, 1
    %v96 = vrot.slane %v51, 1
    %v97 = vsel %vm77, %v95, %v96
    %v98 = vrot.slane %v52, 1
    %v99 = vsel %vm77, %v96, %v98
    %v100 = vrot.slane %v53, 1
    %v101 = vsel %vm77, %v98, %v100
    %v102 = vrot.slane %v54, 1
    %v103 = vsel %vm77, %v100, %v102
    %v104 = vrot.slane %v55, 1
    %v105 = vsel %vm77, %v102, %v104
    %v106 = vrot.slane %v56, 1
    %v107 = vsel %vm77, %v104, %v106
    %v108 = vrot.slane %v57, 1
    %v109 = vsel %vm77, %v106, %v108
    %v110 = vrot.slane %v58, 1
    %v111 = vsel %vm77, %v108, %v110
    %vm128 = vcmask 1045504
    %v129 = vrot.slane %v41, 2
    %v130 = vrot.slane %v42, 2
    %v131 = vsel %vm128, %v129, %v130
    %v132 = vrot.slane %v43, 2
    %v133 = vsel %vm128, %v130, %v132
    %v134 = vrot.slane %v44, 2
    %v135 = vsel %vm128, %v132, %v134
    %v136 = vrot.slane %v45, 2
    %v137 = vsel %vm128, %v134, %v136
    %v138 = vrot.slane %v46, 2
    %v139 = vsel %vm128, %v136, %v138
    %v140 = vrot.slane %v47, 2
    %v141 = vsel %vm128, %v138, %v140
    %v142 = vrot.slane %v48, 2
    %v143 = vsel %vm128, %v140, %v142
    %v144 = vrot.slane %v49, 2
    %v145 = vsel %vm128, %v142, %v144
    %v146 = vrot.slane %v50, 2
    %v147 = vrot.slane %v51, 2
    %v148 = vsel %vm128, %v146, %v147
    %v149 = vrot.slane %v52, 2
    %v150 = vsel %vm128, %v147, %v149
    %v151 = vrot.slane %v53, 2
    %v152 = vsel %vm128, %v149, %v151
    %v153 = vrot.slane %v54, 2
    %v154 = vsel %vm128, %v151, %v153
    %v155 = vrot.slane %v55, 2
    %v156 = vsel %vm128, %v153, %v155
    %v157 = vrot.slane %v56, 2
    %v158 = vsel %vm128, %v155, %v157
    %v159 = vrot.slane %v57, 2
    %v160 = vsel %vm128, %v157, %v159
    %v161 = vrot.slane %v58, 2
    %v162 = vsel %vm128, %v159, %v161
    %v179 = vperm.slane %v39, 0
    %v180 = vmul.f32 %v41, %v179
    %v181 = vmul.f32 %v42, %v179
    %v182 = vmul.f32 %v43, %v179
    %v183 = vmul.f32 %v44, %v179
    %v184 = vmul.f32 %v45, %v179
    %v185 = vmul.f32 %v46, %v179
    %v186 = vmul.f32 %v47, %v179
    %v187 = vmul.f32 %v48, %v179
    %v188 = vmul.f32 %v50, %v179
    %v189 = vmul.f32 %v51, %v179
    %v190 = vmul.f32 %v52, %v179
    %v191 = vmul.f32 %v53, %v179
    %v192 = vmul.f32 %v54, %v179
    %v193 = vmul.f32 %v55, %v179
    %v194 = vmul.f32 %v56, %v179
    %v195 = vmul.f32 %v57, %v179
    %v196 = vperm.slane %v39, 1
    %v197 = vmul.f32 %v80, %v196
    %v198 = vmul.f32 %v82, %v196
    %v199 = vmul.f32 %v84, %v196
    %v200 = vmul.f32 %v86, %v196
    %v201 = vmul.f32 %v88, %v196
    %v202 = vmul.f32 %v90, %v196
    %v203 = vmul.f32 %v92, %v196
    %v204 = vmul.f32 %v94, %v196
    %v205 = vmul.f32 %v97, %v196
    %v206 = vmul.f32 %v99, %v196
    %v207 = vmul.f32 %v101, %v196
    %v208 = vmul.f32 %v103, %v196
    %v209 = vmul.f32 %v105, %v196
    %v210 = vmul.f32 %v107, %v196
    %v211 = vmul.f32 %v109, %v196
    %v212 = vmul.f32 %v111, %v196
    %v213 = vadd.f32 %v180, %v197
    %v214 = vadd.f32 %v181, %v198
    %v215 = vadd.f32 %v182, %v199
    %v216 = vadd.f32 %v183, %v200
    %v217 = vadd.f32 %v184, %v201
    %v218 = vadd.f32 %v185, %v202
    %v219 = vadd.f32 %v186, %v203
    %v220 = vadd.f32 %v187, %v204
    %v221 = vadd.f32 %v188, %v205
    %v222 = vadd.f32 %v189, %v206
    %v223 = vadd.f32 %v190, %v207
    %v224 = vadd.f32 %v191, %v208
    %v225 = vadd.f32 %v192, %v209
    %v226 = vadd.f32 %v193, %v210
    %v227 = vadd.f32 %v194, %v211
    %v228 = vadd.f32 %v195, %v212
    %v229 = vperm.slane %v39, 2
    %v230 = vmul.f32 %v131, %v229
    %v231 = vmul.f32 %v133, %v229
    %v232 = vmul.f32 %v135, %v229
    %v233 = vmul.f32 %v137, %v229
    %v234 = vmul.f32 %v139, %v229
    %v235 = vmul.f32 %v141, %v229
    %v236 = vmul.f32 %v143, %v229
    %v237 = vmul.f32 %v145, %v229
    %v238 = vmul.f32 %v148, %v229
    %v239 = vmul.f32 %v150, %v229
    %v240 = vmul.f32 %v152, %v229
    %v241 = vmul.f32 %v154, %v229
    %v242 = vmul.f32 %v156, %v229
    %v243 = vmul.f32 %v158, %v229
    %v244 = vmul.f32 %v160, %v229
    %v245 = vmul.f32 %v162, %v229
    %v246 = vadd.f32 %v213, %v230
    %v247 = vadd.f32 %v214, %v231
    %v248 = vadd.f32 %v215, %v232
    %v249 = vadd.f32 %v216, %v233
    %v250 = vadd.f32 %v217, %v234
    %v251 = vadd.f32 %v218, %v235
    %v252 = vadd.f32 %v219, %v236
    %v253 = vadd.f32 %v220, %v237
    %v254 = vadd.f32 %v221, %v238
    %v255 = vadd.f32 %v222, %v239
    %v256 = vadd.f32 %v223, %v240
    %v257 = vadd.f32 %v224, %v241
    %v258 = vadd.f32 %v225, %v242
    %v259 = vadd.f32 %v226, %v243
    %v260 = vadd.f32 %v227, %v244
    %v261 = vadd.f32 %v228, %v245
    %v262 = vperm.slane %v39, 3
    %v263 = vadd.f32 %v246, %v262
    %v264 = vadd.f32 %v247, %v262
    %v265 = vadd.f32 %v248, %v262
    %v266 = vadd.f32 %v249, %v262
    %v267 = vadd.f32 %v250, %v262
    %v268 = vadd.f32 %v251, %v262
    %v269 = vadd.f32 %v252, %v262
    %v270 = vadd.f32 %v253, %v262
    %v271 = vadd.f32 %v254, %v262
    %v272 = vadd.f32 %v255, %v262
    %v273 = vadd.f32 %v256, %v262
    %v274 = vadd.f32 %v257, %v262
    %v275 = vadd.f32 %v258, %v262
    %v276 = vadd.f32 %v259, %v262
    %v277 = vadd.f32 %v260, %v262
    %v278 = vadd.f32 %v261, %v262
    %v279 = vpack.c.bf16 %v264, %v263
    %v280 = vpack.c.bf16 %v266, %v265
    %v281 = vpack.c.bf16 %v268, %v267
    %v282 = vpack.c.bf16 %v270, %v269
    %v283 = vpack.c.bf16 %v272, %v271
    %v284 = vpack.c.bf16 %v274, %v273
    %v285 = vpack.c.bf16 %v276, %v275
    %v286 = vpack.c.bf16 %v278, %v277
    %v287 = vld [vmem:[%s6] sm:$0xf]
    %v288 = vld [vmem:[%s6 + $0x4] sm:$0xf]
    %v289 = vld [vmem:[%s6 + $0x8] sm:$0xf]
    %v290 = vld [vmem:[%s6 + $0xc] sm:$0xf]
    %v291 = vld [vmem:[%s6 + $0x10] sm:$0xf]
    %v292 = vld [vmem:[%s6 + $0x14] sm:$0xf]
    %v293 = vld [vmem:[%s6 + $0x18] sm:$0xf]
    %v294 = vld [vmem:[%s6 + $0x1c] sm:$0xf]
    %v295 = vld [vmem:[%s6 + $0x20] sm:$0xf]
    %v296 = vld [vmem:[%s6 + $0x24] sm:$0xf]
    %v297 = vld [vmem:[%s6 + $0x28] sm:$0xf]
    %v298 = vld [vmem:[%s6 + $0x2c] sm:$0xf]
    %v299 = vld [vmem:[%s6 + $0x30] sm:$0xf]
    %v300 = vld [vmem:[%s6 + $0x34] sm:$0xf]
    %v301 = vld [vmem:[%s6 + $0x38] sm:$0xf]
    %v302 = vld [vmem:[%s6 + $0x3c] sm:$0xf]
    %v303 = vperm.slane %v39, 4
    %v320 = vunpack.c.l.b16 %v287
    %v321 = vunpack.c.l.b16 %v288
    %v322 = vunpack.c.l.b16 %v289
    %v323 = vunpack.c.l.b16 %v290
    %v324 = vunpack.c.l.b16 %v291
    %v325 = vunpack.c.l.b16 %v292
    %v326 = vunpack.c.l.b16 %v293
    %v327 = vunpack.c.l.b16 %v294
    %v328 = vunpack.c.l.b16 %v295
    %v329 = vunpack.c.l.b16 %v296
    %v330 = vunpack.c.l.b16 %v297
    %v331 = vunpack.c.l.b16 %v298
    %v332 = vunpack.c.l.b16 %v299
    %v333 = vunpack.c.l.b16 %v300
    %v334 = vunpack.c.l.b16 %v301
    %v335 = vunpack.c.l.b16 %v302
    %v336 = vpack.c.b16 %v321, %v320
    %v337 = vpack.c.b16 %v323, %v322
    %v338 = vpack.c.b16 %v325, %v324
    %v339 = vpack.c.b16 %v327, %v326
    %v340 = vpack.c.b16 %v329, %v328
    %v341 = vpack.c.b16 %v331, %v330
    %v342 = vpack.c.b16 %v333, %v332
    %v343 = vpack.c.b16 %v335, %v334
    %352 = vmatpush.bf16.msra.mxu0 %v343
    %353 = vmatpush.bf16.msra.mxu0 %v342
    %354 = vmatpush.bf16.msra.mxu0 %v341
    %355 = vmatpush.bf16.msra.mxu0 %v340
    %356 = vmatpush.bf16.msra.mxu0 %v339
    %357 = vmatpush.bf16.msra.mxu0 %v338
    %358 = vmatpush.bf16.msra.mxu0 %v337
    %359 = vmatpush.bf16.msra.mxu0 %v336
    %360 = vmatmul.bf16.gmra.mxu0 %v279
    %v361 = vpop.f32.mrf.mxu0
    %v362 = vadd.f32 %v303, %v361
    %v363 = vpop.f32.mrf.mxu0
    %v364 = vadd.f32 %v303, %v363
    %365 = vmatmul.bf16.gmra.mxu0 %v280
    %v366 = vpop.f32.mrf.mxu0
    %v367 = vadd.f32 %v303, %v366
    %v368 = vpop.f32.mrf.mxu0
    %v369 = vadd.f32 %v303, %v368
    %370 = vmatmul.bf16.gmra.mxu0 %v281
    %v371 = vpop.f32.mrf.mxu0
    %v372 = vadd.f32 %v303, %v371
    %v373 = vpop.f32.mrf.mxu0
    %v374 = vadd.f32 %v303, %v373
    %375 = vmatmul.bf16.gmra.mxu0 %v282
    %v376 = vpop.f32.mrf.mxu0
    %v377 = vadd.f32 %v303, %v376
    %v378 = vpop.f32.mrf.mxu0
    %v379 = vadd.f32 %v303, %v378
    %380 = vmatmul.bf16.gmra.mxu0 %v283
    %v381 = vpop.f32.mrf.mxu0
    %v382 = vadd.f32 %v303, %v381
    %v383 = vpop.f32.mrf.mxu0
    %v384 = vadd.f32 %v303, %v383
    %385 = vmatmul.bf16.gmra.mxu0 %v284
    %v386 = vpop.f32.mrf.mxu0
    %v387 = vadd.f32 %v303, %v386
    %v388 = vpop.f32.mrf.mxu0
    %v389 = vadd.f32 %v303, %v388
    %390 = vmatmul.bf16.gmra.mxu0 %v285
    %v391 = vpop.f32.mrf.mxu0
    %v392 = vadd.f32 %v303, %v391
    %v393 = vpop.f32.mrf.mxu0
    %v394 = vadd.f32 %v303, %v393
    %395 = vmatmul.bf16.gmra.mxu0 %v286
    %v396 = vpop.f32.mrf.mxu0
    %v397 = vadd.f32 %v303, %v396
    %v398 = vpop.f32.mrf.mxu0
    %v399 = vadd.f32 %v303, %v398
    %400 = vdwg.mxu0
    %v401 = vld [vmem:[%s7] sm:$0xf]
    %v402 = vld [vmem:[%s7 + $0x4] sm:$0xf]
    %v403 = vld [vmem:[%s7 + $0x8] sm:$0xf]
    %v404 = vld [vmem:[%s7 + $0xc] sm:$0xf]
    %v405 = vld [vmem:[%s7 + $0x10] sm:$0xf]
    %v406 = vld [vmem:[%s7 + $0x14] sm:$0xf]
    %v407 = vld [vmem:[%s7 + $0x18] sm:$0xf]
    %v408 = vld [vmem:[%s7 + $0x1c] sm:$0xf]
    %v409 = vld [vmem:[%s7 + $0x20] sm:$0xf]
    %v410 = vld [vmem:[%s7 + $0x24] sm:$0xf]
    %v411 = vld [vmem:[%s7 + $0x28] sm:$0xf]
    %v412 = vld [vmem:[%s7 + $0x2c] sm:$0xf]
    %v413 = vld [vmem:[%s7 + $0x30] sm:$0xf]
    %v414 = vld [vmem:[%s7 + $0x34] sm:$0xf]
    %v415 = vld [vmem:[%s7 + $0x38] sm:$0xf]
    %v416 = vld [vmem:[%s7 + $0x3c] sm:$0xf]
    %v417 = vperm.slane %v39, 5
    %v434 = vunpack.c.l.b16 %v401
    %v435 = vunpack.c.l.b16 %v402
    %v436 = vunpack.c.l.b16 %v403
    %v437 = vunpack.c.l.b16 %v404
    %v438 = vunpack.c.l.b16 %v405
    %v439 = vunpack.c.l.b16 %v406
    %v440 = vunpack.c.l.b16 %v407
    %v441 = vunpack.c.l.b16 %v408
    %v442 = vunpack.c.l.b16 %v409
    %v443 = vunpack.c.l.b16 %v410
    %v444 = vunpack.c.l.b16 %v411
    %v445 = vunpack.c.l.b16 %v412
    %v446 = vunpack.c.l.b16 %v413
    %v447 = vunpack.c.l.b16 %v414
    %v448 = vunpack.c.l.b16 %v415
    %v449 = vunpack.c.l.b16 %v416
    %v450 = vpack.c.b16 %v435, %v434
    %v451 = vpack.c.b16 %v437, %v436
    %v452 = vpack.c.b16 %v439, %v438
    %v453 = vpack.c.b16 %v441, %v440
    %v454 = vpack.c.b16 %v443, %v442
    %v455 = vpack.c.b16 %v445, %v444
    %v456 = vpack.c.b16 %v447, %v446
    %v457 = vpack.c.b16 %v449, %v448
    %466 = vmatpush.bf16.msra.mxu0 %v457
    %467 = vmatpush.bf16.msra.mxu0 %v456
    %468 = vmatpush.bf16.msra.mxu0 %v455
    %469 = vmatpush.bf16.msra.mxu0 %v454
    %470 = vmatpush.bf16.msra.mxu0 %v453
    %471 = vmatpush.bf16.msra.mxu0 %v452
    %472 = vmatpush.bf16.msra.mxu0 %v451
    %473 = vmatpush.bf16.msra.mxu0 %v450
    %474 = vmatmul.bf16.gmra.mxu0 %v279
    %v475 = vpop.f32.mrf.mxu0
    %v476 = vadd.f32 %v417, %v475
    %v477 = vpop.f32.mrf.mxu0
    %v478 = vadd.f32 %v417, %v477
    %479 = vmatmul.bf16.gmra.mxu0 %v280
    %v480 = vpop.f32.mrf.mxu0
    %v481 = vadd.f32 %v417, %v480
    %v482 = vpop.f32.mrf.mxu0
    %v483 = vadd.f32 %v417, %v482
    %484 = vmatmul.bf16.gmra.mxu0 %v281
    %v485 = vpop.f32.mrf.mxu0
    %v486 = vadd.f32 %v417, %v485
    %v487 = vpop.f32.mrf.mxu0
    %v488 = vadd.f32 %v417, %v487
    %489 = vmatmul.bf16.gmra.mxu0 %v282
    %v490 = vpop.f32.mrf.mxu0
    %v491 = vadd.f32 %v417, %v490
    %v492 = vpop.f32.mrf.mxu0
    %v493 = vadd.f32 %v417, %v492
    %494 = vmatmul.bf16.gmra.mxu0 %v283
    %v495 = vpop.f32.mrf.mxu0
    %v496 = vadd.f32 %v417, %v495
    %v497 = vpop.f32.mrf.mxu0
    %v498 = vadd.f32 %v417, %v497
    %499 = vmatmul.bf16.gmra.mxu0 %v284
    %v500 = vpop.f32.mrf.mxu0
    %v501 = vadd.f32 %v417, %v500
    %v502 = vpop.f32.mrf.mxu0
    %v503 = vadd.f32 %v417, %v502
    %504 = vmatmul.bf16.gmra.mxu0 %v285
    %v505 = vpop.f32.mrf.mxu0
    %v506 = vadd.f32 %v417, %v505
    %v507 = vpop.f32.mrf.mxu0
    %v508 = vadd.f32 %v417, %v507
    %509 = vmatmul.bf16.gmra.mxu0 %v286
    %v510 = vpop.f32.mrf.mxu0
    %v511 = vadd.f32 %v417, %v510
    %v512 = vpop.f32.mrf.mxu0
    %v513 = vadd.f32 %v417, %v512
    %514 = vdwg.mxu0
    %v515 = vld [vmem:[%s1] sm:$0xf]
    %v516 = vld [vmem:[%s1 + $0x4] sm:$0xf]
    %v517 = vld [vmem:[%s1 + $0x8] sm:$0xf]
    %v518 = vld [vmem:[%s1 + $0xc] sm:$0xf]
    %v519 = vld [vmem:[%s1 + $0x10] sm:$0xf]
    %v520 = vld [vmem:[%s1 + $0x14] sm:$0xf]
    %v521 = vld [vmem:[%s1 + $0x18] sm:$0xf]
    %v522 = vld [vmem:[%s1 + $0x1c] sm:$0xf]
    %v523 = vld [vmem:[%s1 + $0x20] sm:$0xf]
    %v524 = vld [vmem:[%s1 + $0x24] sm:$0xf]
    %v525 = vld [vmem:[%s1 + $0x28] sm:$0xf]
    %v526 = vld [vmem:[%s1 + $0x2c] sm:$0xf]
    %v527 = vld [vmem:[%s1 + $0x30] sm:$0xf]
    %v528 = vld [vmem:[%s1 + $0x34] sm:$0xf]
    %v529 = vld [vmem:[%s1 + $0x38] sm:$0xf]
    %v530 = vld [vmem:[%s1 + $0x3c] sm:$0xf]
    %v531 = vpack.c.bf16 %v364, %v362
    %v532 = vpack.c.bf16 %v369, %v367
    %v533 = vpack.c.bf16 %v374, %v372
    %v534 = vpack.c.bf16 %v379, %v377
    %v535 = vpack.c.bf16 %v384, %v382
    %v536 = vpack.c.bf16 %v389, %v387
    %v537 = vpack.c.bf16 %v394, %v392
    %v538 = vpack.c.bf16 %v399, %v397
    %v555 = vunpack.c.l.b16 %v515
    %v556 = vunpack.c.l.b16 %v516
    %v557 = vunpack.c.l.b16 %v517
    %v558 = vunpack.c.l.b16 %v518
    %v559 = vunpack.c.l.b16 %v519
    %v560 = vunpack.c.l.b16 %v520
    %v561 = vunpack.c.l.b16 %v521
    %v562 = vunpack.c.l.b16 %v522
    %v563 = vunpack.c.l.b16 %v523
    %v564 = vunpack.c.l.b16 %v524
    %v565 = vunpack.c.l.b16 %v525
    %v566 = vunpack.c.l.b16 %v526
    %v567 = vunpack.c.l.b16 %v527
    %v568 = vunpack.c.l.b16 %v528
    %v569 = vunpack.c.l.b16 %v529
    %v570 = vunpack.c.l.b16 %v530
    %v571 = vpack.c.b16 %v556, %v555
    %v572 = vpack.c.b16 %v558, %v557
    %v573 = vpack.c.b16 %v560, %v559
    %v574 = vpack.c.b16 %v562, %v561
    %v575 = vpack.c.b16 %v564, %v563
    %v576 = vpack.c.b16 %v566, %v565
    %v577 = vpack.c.b16 %v568, %v567
    %v578 = vpack.c.b16 %v570, %v569
    %587 = vmatpush.bf16.msra.mxu0 %v538
    %588 = vmatpush.bf16.msra.mxu0 %v537
    %589 = vmatpush.bf16.msra.mxu0 %v536
    %590 = vmatpush.bf16.msra.mxu0 %v535
    %591 = vmatpush.bf16.msra.mxu0 %v534
    %592 = vmatpush.bf16.msra.mxu0 %v533
    %593 = vmatpush.bf16.msra.mxu0 %v532
    %594 = vmatpush.bf16.msra.mxu0 %v531
    %595 = vmatmul.bf16.gmra.mxu0 %v571
    %v596 = vpop.f32.mrf.mxu0
    %v597 = vadd.f32 0.0, %v596
    %v598 = vpop.f32.mrf.mxu0
    %v599 = vadd.f32 0.0, %v598
    %600 = vmatmul.bf16.gmra.mxu0 %v572
    %v601 = vpop.f32.mrf.mxu0
    %v602 = vadd.f32 0.0, %v601
    %v603 = vpop.f32.mrf.mxu0
    %v604 = vadd.f32 0.0, %v603
    %605 = vmatmul.bf16.gmra.mxu0 %v573
    %v606 = vpop.f32.mrf.mxu0
    %v607 = vadd.f32 0.0, %v606
    %v608 = vpop.f32.mrf.mxu0
    %v609 = vadd.f32 0.0, %v608
    %610 = vmatmul.bf16.gmra.mxu0 %v574
    %v611 = vpop.f32.mrf.mxu0
    %v612 = vadd.f32 0.0, %v611
    %v613 = vpop.f32.mrf.mxu0
    %v614 = vadd.f32 0.0, %v613
    %615 = vmatmul.bf16.gmra.mxu0 %v575
    %v616 = vpop.f32.mrf.mxu0
    %v617 = vadd.f32 0.0, %v616
    %v618 = vpop.f32.mrf.mxu0
    %v619 = vadd.f32 0.0, %v618
    %620 = vmatmul.bf16.gmra.mxu0 %v576
    %v621 = vpop.f32.mrf.mxu0
    %v622 = vadd.f32 0.0, %v621
    %v623 = vpop.f32.mrf.mxu0
    %v624 = vadd.f32 0.0, %v623
    %625 = vmatmul.bf16.gmra.mxu0 %v577
    %v626 = vpop.f32.mrf.mxu0
    %v627 = vadd.f32 0.0, %v626
    %v628 = vpop.f32.mrf.mxu0
    %v629 = vadd.f32 0.0, %v628
    %630 = vmatmul.bf16.gmra.mxu0 %v578
    %v631 = vpop.f32.mrf.mxu0
    %v632 = vadd.f32 0.0, %v631
    %v633 = vpop.f32.mrf.mxu0
    %v634 = vadd.f32 0.0, %v633
    %635 = vdwg.mxu0
    %v636 = vld [vmem:[%s3] sm:$0xff]
    %v637 = vld [vmem:[%s3 + $0x8] sm:$0xff]
    %v638 = vld [vmem:[%s3 + $0x10] sm:$0xff]
    %v639 = vld [vmem:[%s3 + $0x18] sm:$0xff]
    %v640 = vld [vmem:[%s3 + $0x20] sm:$0xff]
    %v641 = vld [vmem:[%s3 + $0x28] sm:$0xff]
    %v642 = vld [vmem:[%s3 + $0x30] sm:$0xff]
    %v643 = vld [vmem:[%s3 + $0x38] sm:$0xff]
    %v644 = vld [vmem:[%s3 + $0x40] sm:$0xff]
    %v645 = vld [vmem:[%s3 + $0x48] sm:$0xff]
    %v646 = vld [vmem:[%s3 + $0x50] sm:$0xff]
    %v647 = vld [vmem:[%s3 + $0x58] sm:$0xff]
    %v648 = vld [vmem:[%s3 + $0x60] sm:$0xff]
    %v649 = vld [vmem:[%s3 + $0x68] sm:$0xff]
    %v650 = vld [vmem:[%s3 + $0x70] sm:$0xff]
    %v651 = vld [vmem:[%s3 + $0x78] sm:$0xff]
    %v652 = vmul.f32 %v597, %v636
    %v653 = vmul.f32 %v599, %v637
    %v654 = vmul.f32 %v602, %v638
    %v655 = vmul.f32 %v604, %v639
    %v656 = vmul.f32 %v607, %v640
    %v657 = vmul.f32 %v609, %v641
    %v658 = vmul.f32 %v612, %v642
    %v659 = vmul.f32 %v614, %v643
    %v660 = vmul.f32 %v617, %v644
    %v661 = vmul.f32 %v619, %v645
    %v662 = vmul.f32 %v622, %v646
    %v663 = vmul.f32 %v624, %v647
    %v664 = vmul.f32 %v627, %v648
    %v665 = vmul.f32 %v629, %v649
    %v666 = vmul.f32 %v632, %v650
    %v667 = vmul.f32 %v634, %v651
    %v668 = vld [vmem:[%s2] sm:$0xf]
    %v669 = vld [vmem:[%s2 + $0x4] sm:$0xf]
    %v670 = vld [vmem:[%s2 + $0x8] sm:$0xf]
    %v671 = vld [vmem:[%s2 + $0xc] sm:$0xf]
    %v672 = vld [vmem:[%s2 + $0x10] sm:$0xf]
    %v673 = vld [vmem:[%s2 + $0x14] sm:$0xf]
    %v674 = vld [vmem:[%s2 + $0x18] sm:$0xf]
    %v675 = vld [vmem:[%s2 + $0x1c] sm:$0xf]
    %v676 = vld [vmem:[%s2 + $0x20] sm:$0xf]
    %v677 = vld [vmem:[%s2 + $0x24] sm:$0xf]
    %v678 = vld [vmem:[%s2 + $0x28] sm:$0xf]
    %v679 = vld [vmem:[%s2 + $0x2c] sm:$0xf]
    %v680 = vld [vmem:[%s2 + $0x30] sm:$0xf]
    %v681 = vld [vmem:[%s2 + $0x34] sm:$0xf]
    %v682 = vld [vmem:[%s2 + $0x38] sm:$0xf]
    %v683 = vld [vmem:[%s2 + $0x3c] sm:$0xf]
    %v684 = vpack.c.bf16 %v653, %v652
    %v685 = vpack.c.bf16 %v655, %v654
    %v686 = vpack.c.bf16 %v657, %v656
    %v687 = vpack.c.bf16 %v659, %v658
    %v688 = vpack.c.bf16 %v661, %v660
    %v689 = vpack.c.bf16 %v663, %v662
    %v690 = vpack.c.bf16 %v665, %v664
    %v691 = vpack.c.bf16 %v667, %v666
    %v708 = vunpack.c.l.b16 %v668
    %v709 = vunpack.c.l.b16 %v669
    %v710 = vunpack.c.l.b16 %v670
    %v711 = vunpack.c.l.b16 %v671
    %v712 = vunpack.c.l.b16 %v672
    %v713 = vunpack.c.l.b16 %v673
    %v714 = vunpack.c.l.b16 %v674
    %v715 = vunpack.c.l.b16 %v675
    %v716 = vunpack.c.l.b16 %v676
    %v717 = vunpack.c.l.b16 %v677
    %v718 = vunpack.c.l.b16 %v678
    %v719 = vunpack.c.l.b16 %v679
    %v720 = vunpack.c.l.b16 %v680
    %v721 = vunpack.c.l.b16 %v681
    %v722 = vunpack.c.l.b16 %v682
    %v723 = vunpack.c.l.b16 %v683
    %v724 = vpack.c.b16 %v709, %v708
    %v725 = vpack.c.b16 %v711, %v710
    %v726 = vpack.c.b16 %v713, %v712
    %v727 = vpack.c.b16 %v715, %v714
    %v728 = vpack.c.b16 %v717, %v716
    %v729 = vpack.c.b16 %v719, %v718
    %v730 = vpack.c.b16 %v721, %v720
    %v731 = vpack.c.b16 %v723, %v722
    %740 = vmatpush.bf16.msra.mxu0 %v691
    %741 = vmatpush.bf16.msra.mxu0 %v690
    %742 = vmatpush.bf16.msra.mxu0 %v689
    %743 = vmatpush.bf16.msra.mxu0 %v688
    %744 = vmatpush.bf16.msra.mxu0 %v687
    %745 = vmatpush.bf16.msra.mxu0 %v686
    %746 = vmatpush.bf16.msra.mxu0 %v685
    %747 = vmatpush.bf16.msra.mxu0 %v684
    %748 = vmatmul.bf16.gmra.mxu0 %v724
    %v749 = vpop.f32.mrf.mxu0
    %v750 = vadd.f32 0.0, %v749
    %v751 = vpop.f32.mrf.mxu0
    %v752 = vadd.f32 0.0, %v751
    %753 = vmatmul.bf16.gmra.mxu0 %v725
    %v754 = vpop.f32.mrf.mxu0
    %v755 = vadd.f32 0.0, %v754
    %v756 = vpop.f32.mrf.mxu0
    %v757 = vadd.f32 0.0, %v756
    %758 = vmatmul.bf16.gmra.mxu0 %v726
    %v759 = vpop.f32.mrf.mxu0
    %v760 = vadd.f32 0.0, %v759
    %v761 = vpop.f32.mrf.mxu0
    %v762 = vadd.f32 0.0, %v761
    %763 = vmatmul.bf16.gmra.mxu0 %v727
    %v764 = vpop.f32.mrf.mxu0
    %v765 = vadd.f32 0.0, %v764
    %v766 = vpop.f32.mrf.mxu0
    %v767 = vadd.f32 0.0, %v766
    %768 = vmatmul.bf16.gmra.mxu0 %v728
    %v769 = vpop.f32.mrf.mxu0
    %v770 = vadd.f32 0.0, %v769
    %v771 = vpop.f32.mrf.mxu0
    %v772 = vadd.f32 0.0, %v771
    %773 = vmatmul.bf16.gmra.mxu0 %v729
    %v774 = vpop.f32.mrf.mxu0
    %v775 = vadd.f32 0.0, %v774
    %v776 = vpop.f32.mrf.mxu0
    %v777 = vadd.f32 0.0, %v776
    %778 = vmatmul.bf16.gmra.mxu0 %v730
    %v779 = vpop.f32.mrf.mxu0
    %v780 = vadd.f32 0.0, %v779
    %v781 = vpop.f32.mrf.mxu0
    %v782 = vadd.f32 0.0, %v781
    %783 = vmatmul.bf16.gmra.mxu0 %v731
    %v784 = vpop.f32.mrf.mxu0
    %v785 = vadd.f32 0.0, %v784
    %v786 = vpop.f32.mrf.mxu0
    %v787 = vadd.f32 0.0, %v786
    %788 = vdwg.mxu0
    %789 = vadd.xlane.f32.xlu0 %v750
    %v790 = vpop.xlane.xlu0 %789
    %791 = vadd.xlane.f32.xlu0 %v752
    %v792 = vpop.xlane.xlu0 %791
    %793 = vadd.xlane.f32.xlu0 %v755
    %v794 = vpop.xlane.xlu0 %793
    %795 = vadd.xlane.f32.xlu0 %v757
    %v796 = vpop.xlane.xlu0 %795
    %797 = vadd.xlane.f32.xlu0 %v760
    %v798 = vpop.xlane.xlu0 %797
    %799 = vadd.xlane.f32.xlu0 %v762
    %v800 = vpop.xlane.xlu0 %799
    %801 = vadd.xlane.f32.xlu0 %v765
    %v802 = vpop.xlane.xlu0 %801
    %803 = vadd.xlane.f32.xlu0 %v767
    %v804 = vpop.xlane.xlu0 %803
    %805 = vadd.xlane.f32.xlu0 %v770
    %v806 = vpop.xlane.xlu0 %805
    %807 = vadd.xlane.f32.xlu0 %v772
    %v808 = vpop.xlane.xlu0 %807
    %809 = vadd.xlane.f32.xlu0 %v775
    %v810 = vpop.xlane.xlu0 %809
    %811 = vadd.xlane.f32.xlu0 %v777
    %v812 = vpop.xlane.xlu0 %811
    %813 = vadd.xlane.f32.xlu0 %v780
    %v814 = vpop.xlane.xlu0 %813
    %815 = vadd.xlane.f32.xlu0 %v782
    %v816 = vpop.xlane.xlu0 %815
    %817 = vadd.xlane.f32.xlu0 %v785
    %v818 = vpop.xlane.xlu0 %817
    %819 = vadd.xlane.f32.xlu0 %v787
    %v820 = vpop.xlane.xlu0 %819
    %v821 = vrcp.pop 128.0
    %v822 = vmul.f32 128.0, %v821
    %v823 = vsub.f32 1.0, %v822
    %v824 = vmul.f32 %v821, %v823
    %v825 = vadd.f32 %v821, %v824
    %vm826 = vweird.f32 %v821
    %v827 = vsel %vm826, %v821, %v825
    %v828 = vmul.f32 %v790, %v827
    %v829 = vmul.f32 %v792, %v827
    %v830 = vmul.f32 %v794, %v827
    %v831 = vmul.f32 %v796, %v827
    %v832 = vmul.f32 %v798, %v827
    %v833 = vmul.f32 %v800, %v827
    %v834 = vmul.f32 %v802, %v827
    %v835 = vmul.f32 %v804, %v827
    %v836 = vmul.f32 %v806, %v827
    %v837 = vmul.f32 %v808, %v827
    %v838 = vmul.f32 %v810, %v827
    %v839 = vmul.f32 %v812, %v827
    %v840 = vmul.f32 %v814, %v827
    %v841 = vmul.f32 %v816, %v827
    %v842 = vmul.f32 %v818, %v827
    %v843 = vmul.f32 %v820, %v827
    %v844 = vsub.f32 %v750, %v828
    %v845 = vsub.f32 %v752, %v829
    %v846 = vsub.f32 %v755, %v830
    %v847 = vsub.f32 %v757, %v831
    %v848 = vsub.f32 %v760, %v832
    %v849 = vsub.f32 %v762, %v833
    %v850 = vsub.f32 %v765, %v834
    %v851 = vsub.f32 %v767, %v835
    %v852 = vsub.f32 %v770, %v836
    %v853 = vsub.f32 %v772, %v837
    %v854 = vsub.f32 %v775, %v838
    %v855 = vsub.f32 %v777, %v839
    %v856 = vsub.f32 %v780, %v840
    %v857 = vsub.f32 %v782, %v841
    %v858 = vsub.f32 %v785, %v842
    %v859 = vsub.f32 %v787, %v843
    %v860 = vmul.f32 %v844, %v844
    %v861 = vmul.f32 %v845, %v845
    %v862 = vmul.f32 %v846, %v846
    %v863 = vmul.f32 %v847, %v847
    %v864 = vmul.f32 %v848, %v848
    %v865 = vmul.f32 %v849, %v849
    %v866 = vmul.f32 %v850, %v850
    %v867 = vmul.f32 %v851, %v851
    %v868 = vmul.f32 %v852, %v852
    %v869 = vmul.f32 %v853, %v853
    %v870 = vmul.f32 %v854, %v854
    %v871 = vmul.f32 %v855, %v855
    %v872 = vmul.f32 %v856, %v856
    %v873 = vmul.f32 %v857, %v857
    %v874 = vmul.f32 %v858, %v858
    %v875 = vmul.f32 %v859, %v859
    %876 = vadd.xlane.f32.xlu0 %v860
    %v877 = vpop.xlane.xlu0 %876
    %878 = vadd.xlane.f32.xlu0 %v861
    %v879 = vpop.xlane.xlu0 %878
    %880 = vadd.xlane.f32.xlu0 %v862
    %v881 = vpop.xlane.xlu0 %880
    %882 = vadd.xlane.f32.xlu0 %v863
    %v883 = vpop.xlane.xlu0 %882
    %884 = vadd.xlane.f32.xlu0 %v864
    %v885 = vpop.xlane.xlu0 %884
    %886 = vadd.xlane.f32.xlu0 %v865
    %v887 = vpop.xlane.xlu0 %886
    %888 = vadd.xlane.f32.xlu0 %v866
    %v889 = vpop.xlane.xlu0 %888
    %890 = vadd.xlane.f32.xlu0 %v867
    %v891 = vpop.xlane.xlu0 %890
    %892 = vadd.xlane.f32.xlu0 %v868
    %v893 = vpop.xlane.xlu0 %892
    %894 = vadd.xlane.f32.xlu0 %v869
    %v895 = vpop.xlane.xlu0 %894
    %896 = vadd.xlane.f32.xlu0 %v870
    %v897 = vpop.xlane.xlu0 %896
    %898 = vadd.xlane.f32.xlu0 %v871
    %v899 = vpop.xlane.xlu0 %898
    %900 = vadd.xlane.f32.xlu0 %v872
    %v901 = vpop.xlane.xlu0 %900
    %902 = vadd.xlane.f32.xlu0 %v873
    %v903 = vpop.xlane.xlu0 %902
    %904 = vadd.xlane.f32.xlu0 %v874
    %v905 = vpop.xlane.xlu0 %904
    %906 = vadd.xlane.f32.xlu0 %v875
    %v907 = vpop.xlane.xlu0 %906
    %v908 = vmul.f32 %v877, %v827
    %v909 = vmul.f32 %v879, %v827
    %v910 = vmul.f32 %v881, %v827
    %v911 = vmul.f32 %v883, %v827
    %v912 = vmul.f32 %v885, %v827
    %v913 = vmul.f32 %v887, %v827
    %v914 = vmul.f32 %v889, %v827
    %v915 = vmul.f32 %v891, %v827
    %v916 = vmul.f32 %v893, %v827
    %v917 = vmul.f32 %v895, %v827
    %v918 = vmul.f32 %v897, %v827
    %v919 = vmul.f32 %v899, %v827
    %v920 = vmul.f32 %v901, %v827
    %v921 = vmul.f32 %v903, %v827
    %v922 = vmul.f32 %v905, %v827
    %v923 = vmul.f32 %v907, %v827
    %v924 = vadd.f32 %v908, 1e-05
    %v925 = vadd.f32 %v909, 1e-05
    %v926 = vadd.f32 %v910, 1e-05
    %v927 = vadd.f32 %v911, 1e-05
    %v928 = vadd.f32 %v912, 1e-05
    %v929 = vadd.f32 %v913, 1e-05
    %v930 = vadd.f32 %v914, 1e-05
    %v931 = vadd.f32 %v915, 1e-05
    %v932 = vadd.f32 %v916, 1e-05
    %v933 = vadd.f32 %v917, 1e-05
    %v934 = vadd.f32 %v918, 1e-05
    %v935 = vadd.f32 %v919, 1e-05
    %v936 = vadd.f32 %v920, 1e-05
    %v937 = vadd.f32 %v921, 1e-05
    %v938 = vadd.f32 %v922, 1e-05
    %v939 = vadd.f32 %v923, 1e-05
    %v940 = vrsqrt.pop %v924
    %v941 = vmul.f32 %v940, %v924
    %v942 = vmul.f32 %v941, %v940
    %v943 = vmul.f32 0.5, %v942
    %v944 = vsub.f32 1.5, %v943
    %v945 = vmul.f32 %v940, %v944
    %vm946 = vweird.f32 %v924
    %vm947 = vweird.f32 %v940
    %vm948 = vmor %vm946, %vm947
    %v949 = vsel %vm948, %v940, %v945
    %v950 = vrsqrt.pop %v925
    %v951 = vmul.f32 %v950, %v925
    %v952 = vmul.f32 %v951, %v950
    %v953 = vmul.f32 0.5, %v952
    %v954 = vsub.f32 1.5, %v953
    %v955 = vmul.f32 %v950, %v954
    %vm956 = vweird.f32 %v925
    %vm957 = vweird.f32 %v950
    %vm958 = vmor %vm956, %vm957
    %v959 = vsel %vm958, %v950, %v955
    %v960 = vrsqrt.pop %v926
    %v961 = vmul.f32 %v960, %v926
    %v962 = vmul.f32 %v961, %v960
    %v963 = vmul.f32 0.5, %v962
    %v964 = vsub.f32 1.5, %v963
    %v965 = vmul.f32 %v960, %v964
    %vm966 = vweird.f32 %v926
    %vm967 = vweird.f32 %v960
    %vm968 = vmor %vm966, %vm967
    %v969 = vsel %vm968, %v960, %v965
    %v970 = vrsqrt.pop %v927
    %v971 = vmul.f32 %v970, %v927
    %v972 = vmul.f32 %v971, %v970
    %v973 = vmul.f32 0.5, %v972
    %v974 = vsub.f32 1.5, %v973
    %v975 = vmul.f32 %v970, %v974
    %vm976 = vweird.f32 %v927
    %vm977 = vweird.f32 %v970
    %vm978 = vmor %vm976, %vm977
    %v979 = vsel %vm978, %v970, %v975
    %v980 = vrsqrt.pop %v928
    %v981 = vmul.f32 %v980, %v928
    %v982 = vmul.f32 %v981, %v980
    %v983 = vmul.f32 0.5, %v982
    %v984 = vsub.f32 1.5, %v983
    %v985 = vmul.f32 %v980, %v984
    %vm986 = vweird.f32 %v928
    %vm987 = vweird.f32 %v980
    %vm988 = vmor %vm986, %vm987
    %v989 = vsel %vm988, %v980, %v985
    %v990 = vrsqrt.pop %v929
    %v991 = vmul.f32 %v990, %v929
    %v992 = vmul.f32 %v991, %v990
    %v993 = vmul.f32 0.5, %v992
    %v994 = vsub.f32 1.5, %v993
    %v995 = vmul.f32 %v990, %v994
    %vm996 = vweird.f32 %v929
    %vm997 = vweird.f32 %v990
    %vm998 = vmor %vm996, %vm997
    %v999 = vsel %vm998, %v990, %v995
    %v1000 = vrsqrt.pop %v930
    %v1001 = vmul.f32 %v1000, %v930
    %v1002 = vmul.f32 %v1001, %v1000
    %v1003 = vmul.f32 0.5, %v1002
    %v1004 = vsub.f32 1.5, %v1003
    %v1005 = vmul.f32 %v1000, %v1004
    %vm1006 = vweird.f32 %v930
    %vm1007 = vweird.f32 %v1000
    %vm1008 = vmor %vm1006, %vm1007
    %v1009 = vsel %vm1008, %v1000, %v1005
    %v1010 = vrsqrt.pop %v931
    %v1011 = vmul.f32 %v1010, %v931
    %v1012 = vmul.f32 %v1011, %v1010
    %v1013 = vmul.f32 0.5, %v1012
    %v1014 = vsub.f32 1.5, %v1013
    %v1015 = vmul.f32 %v1010, %v1014
    %vm1016 = vweird.f32 %v931
    %vm1017 = vweird.f32 %v1010
    %vm1018 = vmor %vm1016, %vm1017
    %v1019 = vsel %vm1018, %v1010, %v1015
    %v1020 = vrsqrt.pop %v932
    %v1021 = vmul.f32 %v1020, %v932
    %v1022 = vmul.f32 %v1021, %v1020
    %v1023 = vmul.f32 0.5, %v1022
    %v1024 = vsub.f32 1.5, %v1023
    %v1025 = vmul.f32 %v1020, %v1024
    %vm1026 = vweird.f32 %v932
    %vm1027 = vweird.f32 %v1020
    %vm1028 = vmor %vm1026, %vm1027
    %v1029 = vsel %vm1028, %v1020, %v1025
    %v1030 = vrsqrt.pop %v933
    %v1031 = vmul.f32 %v1030, %v933
    %v1032 = vmul.f32 %v1031, %v1030
    %v1033 = vmul.f32 0.5, %v1032
    %v1034 = vsub.f32 1.5, %v1033
    %v1035 = vmul.f32 %v1030, %v1034
    %vm1036 = vweird.f32 %v933
    %vm1037 = vweird.f32 %v1030
    %vm1038 = vmor %vm1036, %vm1037
    %v1039 = vsel %vm1038, %v1030, %v1035
    %v1040 = vrsqrt.pop %v934
    %v1041 = vmul.f32 %v1040, %v934
    %v1042 = vmul.f32 %v1041, %v1040
    %v1043 = vmul.f32 0.5, %v1042
    %v1044 = vsub.f32 1.5, %v1043
    %v1045 = vmul.f32 %v1040, %v1044
    %vm1046 = vweird.f32 %v934
    %vm1047 = vweird.f32 %v1040
    %vm1048 = vmor %vm1046, %vm1047
    %v1049 = vsel %vm1048, %v1040, %v1045
    %v1050 = vrsqrt.pop %v935
    %v1051 = vmul.f32 %v1050, %v935
    %v1052 = vmul.f32 %v1051, %v1050
    %v1053 = vmul.f32 0.5, %v1052
    %v1054 = vsub.f32 1.5, %v1053
    %v1055 = vmul.f32 %v1050, %v1054
    %vm1056 = vweird.f32 %v935
    %vm1057 = vweird.f32 %v1050
    %vm1058 = vmor %vm1056, %vm1057
    %v1059 = vsel %vm1058, %v1050, %v1055
    %v1060 = vrsqrt.pop %v936
    %v1061 = vmul.f32 %v1060, %v936
    %v1062 = vmul.f32 %v1061, %v1060
    %v1063 = vmul.f32 0.5, %v1062
    %v1064 = vsub.f32 1.5, %v1063
    %v1065 = vmul.f32 %v1060, %v1064
    %vm1066 = vweird.f32 %v936
    %vm1067 = vweird.f32 %v1060
    %vm1068 = vmor %vm1066, %vm1067
    %v1069 = vsel %vm1068, %v1060, %v1065
    %v1070 = vrsqrt.pop %v937
    %v1071 = vmul.f32 %v1070, %v937
    %v1072 = vmul.f32 %v1071, %v1070
    %v1073 = vmul.f32 0.5, %v1072
    %v1074 = vsub.f32 1.5, %v1073
    %v1075 = vmul.f32 %v1070, %v1074
    %vm1076 = vweird.f32 %v937
    %vm1077 = vweird.f32 %v1070
    %vm1078 = vmor %vm1076, %vm1077
    %v1079 = vsel %vm1078, %v1070, %v1075
    %v1080 = vrsqrt.pop %v938
    %v1081 = vmul.f32 %v1080, %v938
    %v1082 = vmul.f32 %v1081, %v1080
    %v1083 = vmul.f32 0.5, %v1082
    %v1084 = vsub.f32 1.5, %v1083
    %v1085 = vmul.f32 %v1080, %v1084
    %vm1086 = vweird.f32 %v938
    %vm1087 = vweird.f32 %v1080
    %vm1088 = vmor %vm1086, %vm1087
    %v1089 = vsel %vm1088, %v1080, %v1085
    %v1090 = vrsqrt.pop %v939
    %v1091 = vmul.f32 %v1090, %v939
    %v1092 = vmul.f32 %v1091, %v1090
    %v1093 = vmul.f32 0.5, %v1092
    %v1094 = vsub.f32 1.5, %v1093
    %v1095 = vmul.f32 %v1090, %v1094
    %vm1096 = vweird.f32 %v939
    %vm1097 = vweird.f32 %v1090
    %vm1098 = vmor %vm1096, %vm1097
    %v1099 = vsel %vm1098, %v1090, %v1095
    %v1100 = vmul.f32 %v844, %v949
    %v1101 = vmul.f32 %v845, %v959
    %v1102 = vmul.f32 %v846, %v969
    %v1103 = vmul.f32 %v847, %v979
    %v1104 = vmul.f32 %v848, %v989
    %v1105 = vmul.f32 %v849, %v999
    %v1106 = vmul.f32 %v850, %v1009
    %v1107 = vmul.f32 %v851, %v1019
    %v1108 = vmul.f32 %v852, %v1029
    %v1109 = vmul.f32 %v853, %v1039
    %v1110 = vmul.f32 %v854, %v1049
    %v1111 = vmul.f32 %v855, %v1059
    %v1112 = vmul.f32 %v856, %v1069
    %v1113 = vmul.f32 %v857, %v1079
    %v1114 = vmul.f32 %v858, %v1089
    %v1115 = vmul.f32 %v859, %v1099
    %v1116 = vperm.slane %v39, 7
    %v1117 = vmul.f32 %v1100, %v1116
    %v1118 = vmul.f32 %v1101, %v1116
    %v1119 = vmul.f32 %v1102, %v1116
    %v1120 = vmul.f32 %v1103, %v1116
    %v1121 = vmul.f32 %v1104, %v1116
    %v1122 = vmul.f32 %v1105, %v1116
    %v1123 = vmul.f32 %v1106, %v1116
    %v1124 = vmul.f32 %v1107, %v1116
    %v1125 = vmul.f32 %v1108, %v1116
    %v1126 = vmul.f32 %v1109, %v1116
    %v1127 = vmul.f32 %v1110, %v1116
    %v1128 = vmul.f32 %v1111, %v1116
    %v1129 = vmul.f32 %v1112, %v1116
    %v1130 = vmul.f32 %v1113, %v1116
    %v1131 = vmul.f32 %v1114, %v1116
    %v1132 = vmul.f32 %v1115, %v1116
    %v1133 = vperm.slane %v40, 0
    %v1134 = vadd.f32 %v1117, %v1133
    %v1135 = vadd.f32 %v1118, %v1133
    %v1136 = vadd.f32 %v1119, %v1133
    %v1137 = vadd.f32 %v1120, %v1133
    %v1138 = vadd.f32 %v1121, %v1133
    %v1139 = vadd.f32 %v1122, %v1133
    %v1140 = vadd.f32 %v1123, %v1133
    %v1141 = vadd.f32 %v1124, %v1133
    %v1142 = vadd.f32 %v1125, %v1133
    %v1143 = vadd.f32 %v1126, %v1133
    %v1144 = vadd.f32 %v1127, %v1133
    %v1145 = vadd.f32 %v1128, %v1133
    %v1146 = vadd.f32 %v1129, %v1133
    %v1147 = vadd.f32 %v1130, %v1133
    %v1148 = vadd.f32 %v1131, %v1133
    %v1149 = vadd.f32 %v1132, %v1133
    %v1150 = vxor.u32 %v476, 2147483648
    %v1151 = vxor.u32 %v478, 2147483648
    %v1152 = vxor.u32 %v481, 2147483648
    %v1153 = vxor.u32 %v483, 2147483648
    %v1154 = vxor.u32 %v486, 2147483648
    %v1155 = vxor.u32 %v488, 2147483648
    %v1156 = vxor.u32 %v491, 2147483648
    %v1157 = vxor.u32 %v493, 2147483648
    %v1158 = vxor.u32 %v496, 2147483648
    %v1159 = vxor.u32 %v498, 2147483648
    %v1160 = vxor.u32 %v501, 2147483648
    %v1161 = vxor.u32 %v503, 2147483648
    %v1162 = vxor.u32 %v506, 2147483648
    %v1163 = vxor.u32 %v508, 2147483648
    %v1164 = vxor.u32 %v511, 2147483648
    %v1165 = vxor.u32 %v513, 2147483648
    %v1166 = vmul.f32 %v1150, 1.442695
    %v1167 = vpow.pop %v1166
    %v1168 = vmul.f32 %v1151, 1.442695
    %v1169 = vpow.pop %v1168
    %v1170 = vmul.f32 %v1152, 1.442695
    %v1171 = vpow.pop %v1170
    %v1172 = vmul.f32 %v1153, 1.442695
    %v1173 = vpow.pop %v1172
    %v1174 = vmul.f32 %v1154, 1.442695
    %v1175 = vpow.pop %v1174
    %v1176 = vmul.f32 %v1155, 1.442695
    %v1177 = vpow.pop %v1176
    %v1178 = vmul.f32 %v1156, 1.442695
    %v1179 = vpow.pop %v1178
    %v1180 = vmul.f32 %v1157, 1.442695
    %v1181 = vpow.pop %v1180
    %v1182 = vmul.f32 %v1158, 1.442695
    %v1183 = vpow.pop %v1182
    %v1184 = vmul.f32 %v1159, 1.442695
    %v1185 = vpow.pop %v1184
    %v1186 = vmul.f32 %v1160, 1.442695
    %v1187 = vpow.pop %v1186
    %v1188 = vmul.f32 %v1161, 1.442695
    %v1189 = vpow.pop %v1188
    %v1190 = vmul.f32 %v1162, 1.442695
    %v1191 = vpow.pop %v1190
    %v1192 = vmul.f32 %v1163, 1.442695
    %v1193 = vpow.pop %v1192
    %v1194 = vmul.f32 %v1164, 1.442695
    %v1195 = vpow.pop %v1194
    %v1196 = vmul.f32 %v1165, 1.442695
    %v1197 = vpow.pop %v1196
    %v1198 = vadd.f32 %v1167, 1.0
    %v1199 = vadd.f32 %v1169, 1.0
    %v1200 = vadd.f32 %v1171, 1.0
    %v1201 = vadd.f32 %v1173, 1.0
    %v1202 = vadd.f32 %v1175, 1.0
    %v1203 = vadd.f32 %v1177, 1.0
    %v1204 = vadd.f32 %v1179, 1.0
    %v1205 = vadd.f32 %v1181, 1.0
    %v1206 = vadd.f32 %v1183, 1.0
    %v1207 = vadd.f32 %v1185, 1.0
    %v1208 = vadd.f32 %v1187, 1.0
    %v1209 = vadd.f32 %v1189, 1.0
    %v1210 = vadd.f32 %v1191, 1.0
    %v1211 = vadd.f32 %v1193, 1.0
    %v1212 = vadd.f32 %v1195, 1.0
    %v1213 = vadd.f32 %v1197, 1.0
    %v1214 = vrcp.pop %v1198
    %v1215 = vmul.f32 %v1198, %v1214
    %v1216 = vsub.f32 1.0, %v1215
    %v1217 = vmul.f32 %v1214, %v1216
    %v1218 = vadd.f32 %v1214, %v1217
    %vm1219 = vweird.f32 %v1198
    %vm1220 = vweird.f32 %v1214
    %vm1221 = vmor %vm1219, %vm1220
    %v1222 = vsel %vm1221, %v1214, %v1218
    %v1223 = vand.u32 2147483647, %v1198
    %vm1224 = vcmp.eq.f32.partialorder %v1223, 8.507059e+37
    %v1225 = vand.u32 %v1198, 2147483648
    %v1226 = vor.u32 1.1754944e-38, %v1225
    %v1227 = vsel %vm1224, %v1226, %v1222
    %v1228 = vmul.f32 1.0, %v1227
    %v1229 = vrcp.pop %v1199
    %v1230 = vmul.f32 %v1199, %v1229
    %v1231 = vsub.f32 1.0, %v1230
    %v1232 = vmul.f32 %v1229, %v1231
    %v1233 = vadd.f32 %v1229, %v1232
    %vm1234 = vweird.f32 %v1199
    %vm1235 = vweird.f32 %v1229
    %vm1236 = vmor %vm1234, %vm1235
    %v1237 = vsel %vm1236, %v1229, %v1233
    %v1238 = vand.u32 2147483647, %v1199
    %vm1239 = vcmp.eq.f32.partialorder %v1238, 8.507059e+37
    %v1240 = vand.u32 %v1199, 2147483648
    %v1241 = vor.u32 1.1754944e-38, %v1240
    %v1242 = vsel %vm1239, %v1241, %v1237
    %v1243 = vmul.f32 1.0, %v1242
    %v1244 = vrcp.pop %v1200
    %v1245 = vmul.f32 %v1200, %v1244
    %v1246 = vsub.f32 1.0, %v1245
    %v1247 = vmul.f32 %v1244, %v1246
    %v1248 = vadd.f32 %v1244, %v1247
    %vm1249 = vweird.f32 %v1200
    %vm1250 = vweird.f32 %v1244
    %vm1251 = vmor %vm1249, %vm1250
    %v1252 = vsel %vm1251, %v1244, %v1248
    %v1253 = vand.u32 2147483647, %v1200
    %vm1254 = vcmp.eq.f32.partialorder %v1253, 8.507059e+37
    %v1255 = vand.u32 %v1200, 2147483648
    %v1256 = vor.u32 1.1754944e-38, %v1255
    %v1257 = vsel %vm1254, %v1256, %v1252
    %v1258 = vmul.f32 1.0, %v1257
    %v1259 = vrcp.pop %v1201
    %v1260 = vmul.f32 %v1201, %v1259
    %v1261 = vsub.f32 1.0, %v1260
    %v1262 = vmul.f32 %v1259, %v1261
    %v1263 = vadd.f32 %v1259, %v1262
    %vm1264 = vweird.f32 %v1201
    %vm1265 = vweird.f32 %v1259
    %vm1266 = vmor %vm1264, %vm1265
    %v1267 = vsel %vm1266, %v1259, %v1263
    %v1268 = vand.u32 2147483647, %v1201
    %vm1269 = vcmp.eq.f32.partialorder %v1268, 8.507059e+37
    %v1270 = vand.u32 %v1201, 2147483648
    %v1271 = vor.u32 1.1754944e-38, %v1270
    %v1272 = vsel %vm1269, %v1271, %v1267
    %v1273 = vmul.f32 1.0, %v1272
    %v1274 = vrcp.pop %v1202
    %v1275 = vmul.f32 %v1202, %v1274
    %v1276 = vsub.f32 1.0, %v1275
    %v1277 = vmul.f32 %v1274, %v1276
    %v1278 = vadd.f32 %v1274, %v1277
    %vm1279 = vweird.f32 %v1202
    %vm1280 = vweird.f32 %v1274
    %vm1281 = vmor %vm1279, %vm1280
    %v1282 = vsel %vm1281, %v1274, %v1278
    %v1283 = vand.u32 2147483647, %v1202
    %vm1284 = vcmp.eq.f32.partialorder %v1283, 8.507059e+37
    %v1285 = vand.u32 %v1202, 2147483648
    %v1286 = vor.u32 1.1754944e-38, %v1285
    %v1287 = vsel %vm1284, %v1286, %v1282
    %v1288 = vmul.f32 1.0, %v1287
    %v1289 = vrcp.pop %v1203
    %v1290 = vmul.f32 %v1203, %v1289
    %v1291 = vsub.f32 1.0, %v1290
    %v1292 = vmul.f32 %v1289, %v1291
    %v1293 = vadd.f32 %v1289, %v1292
    %vm1294 = vweird.f32 %v1203
    %vm1295 = vweird.f32 %v1289
    %vm1296 = vmor %vm1294, %vm1295
    %v1297 = vsel %vm1296, %v1289, %v1293
    %v1298 = vand.u32 2147483647, %v1203
    %vm1299 = vcmp.eq.f32.partialorder %v1298, 8.507059e+37
    %v1300 = vand.u32 %v1203, 2147483648
    %v1301 = vor.u32 1.1754944e-38, %v1300
    %v1302 = vsel %vm1299, %v1301, %v1297
    %v1303 = vmul.f32 1.0, %v1302
    %v1304 = vrcp.pop %v1204
    %v1305 = vmul.f32 %v1204, %v1304
    %v1306 = vsub.f32 1.0, %v1305
    %v1307 = vmul.f32 %v1304, %v1306
    %v1308 = vadd.f32 %v1304, %v1307
    %vm1309 = vweird.f32 %v1204
    %vm1310 = vweird.f32 %v1304
    %vm1311 = vmor %vm1309, %vm1310
    %v1312 = vsel %vm1311, %v1304, %v1308
    %v1313 = vand.u32 2147483647, %v1204
    %vm1314 = vcmp.eq.f32.partialorder %v1313, 8.507059e+37
    %v1315 = vand.u32 %v1204, 2147483648
    %v1316 = vor.u32 1.1754944e-38, %v1315
    %v1317 = vsel %vm1314, %v1316, %v1312
    %v1318 = vmul.f32 1.0, %v1317
    %v1319 = vrcp.pop %v1205
    %v1320 = vmul.f32 %v1205, %v1319
    %v1321 = vsub.f32 1.0, %v1320
    %v1322 = vmul.f32 %v1319, %v1321
    %v1323 = vadd.f32 %v1319, %v1322
    %vm1324 = vweird.f32 %v1205
    %vm1325 = vweird.f32 %v1319
    %vm1326 = vmor %vm1324, %vm1325
    %v1327 = vsel %vm1326, %v1319, %v1323
    %v1328 = vand.u32 2147483647, %v1205
    %vm1329 = vcmp.eq.f32.partialorder %v1328, 8.507059e+37
    %v1330 = vand.u32 %v1205, 2147483648
    %v1331 = vor.u32 1.1754944e-38, %v1330
    %v1332 = vsel %vm1329, %v1331, %v1327
    %v1333 = vmul.f32 1.0, %v1332
    %v1334 = vrcp.pop %v1206
    %v1335 = vmul.f32 %v1206, %v1334
    %v1336 = vsub.f32 1.0, %v1335
    %v1337 = vmul.f32 %v1334, %v1336
    %v1338 = vadd.f32 %v1334, %v1337
    %vm1339 = vweird.f32 %v1206
    %vm1340 = vweird.f32 %v1334
    %vm1341 = vmor %vm1339, %vm1340
    %v1342 = vsel %vm1341, %v1334, %v1338
    %v1343 = vand.u32 2147483647, %v1206
    %vm1344 = vcmp.eq.f32.partialorder %v1343, 8.507059e+37
    %v1345 = vand.u32 %v1206, 2147483648
    %v1346 = vor.u32 1.1754944e-38, %v1345
    %v1347 = vsel %vm1344, %v1346, %v1342
    %v1348 = vmul.f32 1.0, %v1347
    %v1349 = vrcp.pop %v1207
    %v1350 = vmul.f32 %v1207, %v1349
    %v1351 = vsub.f32 1.0, %v1350
    %v1352 = vmul.f32 %v1349, %v1351
    %v1353 = vadd.f32 %v1349, %v1352
    %vm1354 = vweird.f32 %v1207
    %vm1355 = vweird.f32 %v1349
    %vm1356 = vmor %vm1354, %vm1355
    %v1357 = vsel %vm1356, %v1349, %v1353
    %v1358 = vand.u32 2147483647, %v1207
    %vm1359 = vcmp.eq.f32.partialorder %v1358, 8.507059e+37
    %v1360 = vand.u32 %v1207, 2147483648
    %v1361 = vor.u32 1.1754944e-38, %v1360
    %v1362 = vsel %vm1359, %v1361, %v1357
    %v1363 = vmul.f32 1.0, %v1362
    %v1364 = vrcp.pop %v1208
    %v1365 = vmul.f32 %v1208, %v1364
    %v1366 = vsub.f32 1.0, %v1365
    %v1367 = vmul.f32 %v1364, %v1366
    %v1368 = vadd.f32 %v1364, %v1367
    %vm1369 = vweird.f32 %v1208
    %vm1370 = vweird.f32 %v1364
    %vm1371 = vmor %vm1369, %vm1370
    %v1372 = vsel %vm1371, %v1364, %v1368
    %v1373 = vand.u32 2147483647, %v1208
    %vm1374 = vcmp.eq.f32.partialorder %v1373, 8.507059e+37
    %v1375 = vand.u32 %v1208, 2147483648
    %v1376 = vor.u32 1.1754944e-38, %v1375
    %v1377 = vsel %vm1374, %v1376, %v1372
    %v1378 = vmul.f32 1.0, %v1377
    %v1379 = vrcp.pop %v1209
    %v1380 = vmul.f32 %v1209, %v1379
    %v1381 = vsub.f32 1.0, %v1380
    %v1382 = vmul.f32 %v1379, %v1381
    %v1383 = vadd.f32 %v1379, %v1382
    %vm1384 = vweird.f32 %v1209
    %vm1385 = vweird.f32 %v1379
    %vm1386 = vmor %vm1384, %vm1385
    %v1387 = vsel %vm1386, %v1379, %v1383
    %v1388 = vand.u32 2147483647, %v1209
    %vm1389 = vcmp.eq.f32.partialorder %v1388, 8.507059e+37
    %v1390 = vand.u32 %v1209, 2147483648
    %v1391 = vor.u32 1.1754944e-38, %v1390
    %v1392 = vsel %vm1389, %v1391, %v1387
    %v1393 = vmul.f32 1.0, %v1392
    %v1394 = vrcp.pop %v1210
    %v1395 = vmul.f32 %v1210, %v1394
    %v1396 = vsub.f32 1.0, %v1395
    %v1397 = vmul.f32 %v1394, %v1396
    %v1398 = vadd.f32 %v1394, %v1397
    %vm1399 = vweird.f32 %v1210
    %vm1400 = vweird.f32 %v1394
    %vm1401 = vmor %vm1399, %vm1400
    %v1402 = vsel %vm1401, %v1394, %v1398
    %v1403 = vand.u32 2147483647, %v1210
    %vm1404 = vcmp.eq.f32.partialorder %v1403, 8.507059e+37
    %v1405 = vand.u32 %v1210, 2147483648
    %v1406 = vor.u32 1.1754944e-38, %v1405
    %v1407 = vsel %vm1404, %v1406, %v1402
    %v1408 = vmul.f32 1.0, %v1407
    %v1409 = vrcp.pop %v1211
    %v1410 = vmul.f32 %v1211, %v1409
    %v1411 = vsub.f32 1.0, %v1410
    %v1412 = vmul.f32 %v1409, %v1411
    %v1413 = vadd.f32 %v1409, %v1412
    %vm1414 = vweird.f32 %v1211
    %vm1415 = vweird.f32 %v1409
    %vm1416 = vmor %vm1414, %vm1415
    %v1417 = vsel %vm1416, %v1409, %v1413
    %v1418 = vand.u32 2147483647, %v1211
    %vm1419 = vcmp.eq.f32.partialorder %v1418, 8.507059e+37
    %v1420 = vand.u32 %v1211, 2147483648
    %v1421 = vor.u32 1.1754944e-38, %v1420
    %v1422 = vsel %vm1419, %v1421, %v1417
    %v1423 = vmul.f32 1.0, %v1422
    %v1424 = vrcp.pop %v1212
    %v1425 = vmul.f32 %v1212, %v1424
    %v1426 = vsub.f32 1.0, %v1425
    %v1427 = vmul.f32 %v1424, %v1426
    %v1428 = vadd.f32 %v1424, %v1427
    %vm1429 = vweird.f32 %v1212
    %vm1430 = vweird.f32 %v1424
    %vm1431 = vmor %vm1429, %vm1430
    %v1432 = vsel %vm1431, %v1424, %v1428
    %v1433 = vand.u32 2147483647, %v1212
    %vm1434 = vcmp.eq.f32.partialorder %v1433, 8.507059e+37
    %v1435 = vand.u32 %v1212, 2147483648
    %v1436 = vor.u32 1.1754944e-38, %v1435
    %v1437 = vsel %vm1434, %v1436, %v1432
    %v1438 = vmul.f32 1.0, %v1437
    %v1439 = vrcp.pop %v1213
    %v1440 = vmul.f32 %v1213, %v1439
    %v1441 = vsub.f32 1.0, %v1440
    %v1442 = vmul.f32 %v1439, %v1441
    %v1443 = vadd.f32 %v1439, %v1442
    %vm1444 = vweird.f32 %v1213
    %vm1445 = vweird.f32 %v1439
    %vm1446 = vmor %vm1444, %vm1445
    %v1447 = vsel %vm1446, %v1439, %v1443
    %v1448 = vand.u32 2147483647, %v1213
    %vm1449 = vcmp.eq.f32.partialorder %v1448, 8.507059e+37
    %v1450 = vand.u32 %v1213, 2147483648
    %v1451 = vor.u32 1.1754944e-38, %v1450
    %v1452 = vsel %vm1449, %v1451, %v1447
    %v1453 = vmul.f32 1.0, %v1452
    %v1454 = vmul.f32 %v476, %v1228
    %v1455 = vmul.f32 %v478, %v1243
    %v1456 = vmul.f32 %v481, %v1258
    %v1457 = vmul.f32 %v483, %v1273
    %v1458 = vmul.f32 %v486, %v1288
    %v1459 = vmul.f32 %v488, %v1303
    %v1460 = vmul.f32 %v491, %v1318
    %v1461 = vmul.f32 %v493, %v1333
    %v1462 = vmul.f32 %v496, %v1348
    %v1463 = vmul.f32 %v498, %v1363
    %v1464 = vmul.f32 %v501, %v1378
    %v1465 = vmul.f32 %v503, %v1393
    %v1466 = vmul.f32 %v506, %v1408
    %v1467 = vmul.f32 %v508, %v1423
    %v1468 = vmul.f32 %v511, %v1438
    %v1469 = vmul.f32 %v513, %v1453
    %v1470 = vmul.f32 %v1134, %v1454
    %v1471 = vmul.f32 %v1135, %v1455
    %v1472 = vmul.f32 %v1136, %v1456
    %v1473 = vmul.f32 %v1137, %v1457
    %v1474 = vmul.f32 %v1138, %v1458
    %v1475 = vmul.f32 %v1139, %v1459
    %v1476 = vmul.f32 %v1140, %v1460
    %v1477 = vmul.f32 %v1141, %v1461
    %v1478 = vmul.f32 %v1142, %v1462
    %v1479 = vmul.f32 %v1143, %v1463
    %v1480 = vmul.f32 %v1144, %v1464
    %v1481 = vmul.f32 %v1145, %v1465
    %v1482 = vmul.f32 %v1146, %v1466
    %v1483 = vmul.f32 %v1147, %v1467
    %v1484 = vmul.f32 %v1148, %v1468
    %v1485 = vmul.f32 %v1149, %v1469
    %v1486 = vpack.c.bf16 %v1471, %v1470
    %v1487 = vpack.c.bf16 %v1473, %v1472
    %v1488 = vpack.c.bf16 %v1475, %v1474
    %v1489 = vpack.c.bf16 %v1477, %v1476
    %v1490 = vpack.c.bf16 %v1479, %v1478
    %v1491 = vpack.c.bf16 %v1481, %v1480
    %v1492 = vpack.c.bf16 %v1483, %v1482
    %v1493 = vpack.c.bf16 %v1485, %v1484
    %v1494 = vld [vmem:[%s8] sm:$0xf]
    %v1495 = vld [vmem:[%s8 + $0x4] sm:$0xf]
    %v1496 = vld [vmem:[%s8 + $0x8] sm:$0xf]
    %v1497 = vld [vmem:[%s8 + $0xc] sm:$0xf]
    %v1498 = vld [vmem:[%s8 + $0x10] sm:$0xf]
    %v1499 = vld [vmem:[%s8 + $0x14] sm:$0xf]
    %v1500 = vld [vmem:[%s8 + $0x18] sm:$0xf]
    %v1501 = vld [vmem:[%s8 + $0x1c] sm:$0xf]
    %v1502 = vld [vmem:[%s8 + $0x20] sm:$0xf]
    %v1503 = vld [vmem:[%s8 + $0x24] sm:$0xf]
    %v1504 = vld [vmem:[%s8 + $0x28] sm:$0xf]
    %v1505 = vld [vmem:[%s8 + $0x2c] sm:$0xf]
    %v1506 = vld [vmem:[%s8 + $0x30] sm:$0xf]
    %v1507 = vld [vmem:[%s8 + $0x34] sm:$0xf]
    %v1508 = vld [vmem:[%s8 + $0x38] sm:$0xf]
    %v1509 = vld [vmem:[%s8 + $0x3c] sm:$0xf]
    %v1510 = vperm.slane %v39, 6
    %v1527 = vunpack.c.l.b16 %v1494
    %v1528 = vunpack.c.l.b16 %v1495
    %v1529 = vunpack.c.l.b16 %v1496
    %v1530 = vunpack.c.l.b16 %v1497
    %v1531 = vunpack.c.l.b16 %v1498
    %v1532 = vunpack.c.l.b16 %v1499
    %v1533 = vunpack.c.l.b16 %v1500
    %v1534 = vunpack.c.l.b16 %v1501
    %v1535 = vunpack.c.l.b16 %v1502
    %v1536 = vunpack.c.l.b16 %v1503
    %v1537 = vunpack.c.l.b16 %v1504
    %v1538 = vunpack.c.l.b16 %v1505
    %v1539 = vunpack.c.l.b16 %v1506
    %v1540 = vunpack.c.l.b16 %v1507
    %v1541 = vunpack.c.l.b16 %v1508
    %v1542 = vunpack.c.l.b16 %v1509
    %v1543 = vpack.c.b16 %v1528, %v1527
    %v1544 = vpack.c.b16 %v1530, %v1529
    %v1545 = vpack.c.b16 %v1532, %v1531
    %v1546 = vpack.c.b16 %v1534, %v1533
    %v1547 = vpack.c.b16 %v1536, %v1535
    %v1548 = vpack.c.b16 %v1538, %v1537
    %v1549 = vpack.c.b16 %v1540, %v1539
    %v1550 = vpack.c.b16 %v1542, %v1541
    %1559 = vmatpush.bf16.msra.mxu0 %v1550
    %1560 = vmatpush.bf16.msra.mxu0 %v1549
    %1561 = vmatpush.bf16.msra.mxu0 %v1548
    %1562 = vmatpush.bf16.msra.mxu0 %v1547
    %1563 = vmatpush.bf16.msra.mxu0 %v1546
    %1564 = vmatpush.bf16.msra.mxu0 %v1545
    %1565 = vmatpush.bf16.msra.mxu0 %v1544
    %1566 = vmatpush.bf16.msra.mxu0 %v1543
    %1567 = vmatmul.bf16.gmra.mxu0 %v1486
    %v1568 = vpop.f32.mrf.mxu0
    %v1569 = vadd.f32 %v1510, %v1568
    %v1570 = vpop.f32.mrf.mxu0
    %v1571 = vadd.f32 %v1510, %v1570
    %1572 = vmatmul.bf16.gmra.mxu0 %v1487
    %v1573 = vpop.f32.mrf.mxu0
    %v1574 = vadd.f32 %v1510, %v1573
    %v1575 = vpop.f32.mrf.mxu0
    %v1576 = vadd.f32 %v1510, %v1575
    %1577 = vmatmul.bf16.gmra.mxu0 %v1488
    %v1578 = vpop.f32.mrf.mxu0
    %v1579 = vadd.f32 %v1510, %v1578
    %v1580 = vpop.f32.mrf.mxu0
    %v1581 = vadd.f32 %v1510, %v1580
    %1582 = vmatmul.bf16.gmra.mxu0 %v1489
    %v1583 = vpop.f32.mrf.mxu0
    %v1584 = vadd.f32 %v1510, %v1583
    %v1585 = vpop.f32.mrf.mxu0
    %v1586 = vadd.f32 %v1510, %v1585
    %1587 = vmatmul.bf16.gmra.mxu0 %v1490
    %v1588 = vpop.f32.mrf.mxu0
    %v1589 = vadd.f32 %v1510, %v1588
    %v1590 = vpop.f32.mrf.mxu0
    %v1591 = vadd.f32 %v1510, %v1590
    %1592 = vmatmul.bf16.gmra.mxu0 %v1491
    %v1593 = vpop.f32.mrf.mxu0
    %v1594 = vadd.f32 %v1510, %v1593
    %v1595 = vpop.f32.mrf.mxu0
    %v1596 = vadd.f32 %v1510, %v1595
    %1597 = vmatmul.bf16.gmra.mxu0 %v1492
    %v1598 = vpop.f32.mrf.mxu0
    %v1599 = vadd.f32 %v1510, %v1598
    %v1600 = vpop.f32.mrf.mxu0
    %v1601 = vadd.f32 %v1510, %v1600
    %1602 = vmatmul.bf16.gmra.mxu0 %v1493
    %v1603 = vpop.f32.mrf.mxu0
    %v1604 = vadd.f32 %v1510, %v1603
    %v1605 = vpop.f32.mrf.mxu0
    %v1606 = vadd.f32 %v1510, %v1605
    %1607 = vdwg.mxu0
    %1608 = vadd.xlane.f32.xlu0 %v1569
    %v1609 = vpop.xlane.xlu0 %1608
    %1610 = vadd.xlane.f32.xlu0 %v1571
    %v1611 = vpop.xlane.xlu0 %1610
    %1612 = vadd.xlane.f32.xlu0 %v1574
    %v1613 = vpop.xlane.xlu0 %1612
    %1614 = vadd.xlane.f32.xlu0 %v1576
    %v1615 = vpop.xlane.xlu0 %1614
    %1616 = vadd.xlane.f32.xlu0 %v1579
    %v1617 = vpop.xlane.xlu0 %1616
    %1618 = vadd.xlane.f32.xlu0 %v1581
    %v1619 = vpop.xlane.xlu0 %1618
    %1620 = vadd.xlane.f32.xlu0 %v1584
    %v1621 = vpop.xlane.xlu0 %1620
    %1622 = vadd.xlane.f32.xlu0 %v1586
    %v1623 = vpop.xlane.xlu0 %1622
    %1624 = vadd.xlane.f32.xlu0 %v1589
    %v1625 = vpop.xlane.xlu0 %1624
    %1626 = vadd.xlane.f32.xlu0 %v1591
    %v1627 = vpop.xlane.xlu0 %1626
    %1628 = vadd.xlane.f32.xlu0 %v1594
    %v1629 = vpop.xlane.xlu0 %1628
    %1630 = vadd.xlane.f32.xlu0 %v1596
    %v1631 = vpop.xlane.xlu0 %1630
    %1632 = vadd.xlane.f32.xlu0 %v1599
    %v1633 = vpop.xlane.xlu0 %1632
    %1634 = vadd.xlane.f32.xlu0 %v1601
    %v1635 = vpop.xlane.xlu0 %1634
    %1636 = vadd.xlane.f32.xlu0 %v1604
    %v1637 = vpop.xlane.xlu0 %1636
    %1638 = vadd.xlane.f32.xlu0 %v1606
    %v1639 = vpop.xlane.xlu0 %1638
    %v1640 = vmul.f32 %v1609, %v827
    %v1641 = vmul.f32 %v1611, %v827
    %v1642 = vmul.f32 %v1613, %v827
    %v1643 = vmul.f32 %v1615, %v827
    %v1644 = vmul.f32 %v1617, %v827
    %v1645 = vmul.f32 %v1619, %v827
    %v1646 = vmul.f32 %v1621, %v827
    %v1647 = vmul.f32 %v1623, %v827
    %v1648 = vmul.f32 %v1625, %v827
    %v1649 = vmul.f32 %v1627, %v827
    %v1650 = vmul.f32 %v1629, %v827
    %v1651 = vmul.f32 %v1631, %v827
    %v1652 = vmul.f32 %v1633, %v827
    %v1653 = vmul.f32 %v1635, %v827
    %v1654 = vmul.f32 %v1637, %v827
    %v1655 = vmul.f32 %v1639, %v827
    %v1656 = vsub.f32 %v1569, %v1640
    %v1657 = vsub.f32 %v1571, %v1641
    %v1658 = vsub.f32 %v1574, %v1642
    %v1659 = vsub.f32 %v1576, %v1643
    %v1660 = vsub.f32 %v1579, %v1644
    %v1661 = vsub.f32 %v1581, %v1645
    %v1662 = vsub.f32 %v1584, %v1646
    %v1663 = vsub.f32 %v1586, %v1647
    %v1664 = vsub.f32 %v1589, %v1648
    %v1665 = vsub.f32 %v1591, %v1649
    %v1666 = vsub.f32 %v1594, %v1650
    %v1667 = vsub.f32 %v1596, %v1651
    %v1668 = vsub.f32 %v1599, %v1652
    %v1669 = vsub.f32 %v1601, %v1653
    %v1670 = vsub.f32 %v1604, %v1654
    %v1671 = vsub.f32 %v1606, %v1655
    %v1672 = vmul.f32 %v1656, %v1656
    %v1673 = vmul.f32 %v1657, %v1657
    %v1674 = vmul.f32 %v1658, %v1658
    %v1675 = vmul.f32 %v1659, %v1659
    %v1676 = vmul.f32 %v1660, %v1660
    %v1677 = vmul.f32 %v1661, %v1661
    %v1678 = vmul.f32 %v1662, %v1662
    %v1679 = vmul.f32 %v1663, %v1663
    %v1680 = vmul.f32 %v1664, %v1664
    %v1681 = vmul.f32 %v1665, %v1665
    %v1682 = vmul.f32 %v1666, %v1666
    %v1683 = vmul.f32 %v1667, %v1667
    %v1684 = vmul.f32 %v1668, %v1668
    %v1685 = vmul.f32 %v1669, %v1669
    %v1686 = vmul.f32 %v1670, %v1670
    %v1687 = vmul.f32 %v1671, %v1671
    %1688 = vadd.xlane.f32.xlu0 %v1672
    %v1689 = vpop.xlane.xlu0 %1688
    %1690 = vadd.xlane.f32.xlu0 %v1673
    %v1691 = vpop.xlane.xlu0 %1690
    %1692 = vadd.xlane.f32.xlu0 %v1674
    %v1693 = vpop.xlane.xlu0 %1692
    %1694 = vadd.xlane.f32.xlu0 %v1675
    %v1695 = vpop.xlane.xlu0 %1694
    %1696 = vadd.xlane.f32.xlu0 %v1676
    %v1697 = vpop.xlane.xlu0 %1696
    %1698 = vadd.xlane.f32.xlu0 %v1677
    %v1699 = vpop.xlane.xlu0 %1698
    %1700 = vadd.xlane.f32.xlu0 %v1678
    %v1701 = vpop.xlane.xlu0 %1700
    %1702 = vadd.xlane.f32.xlu0 %v1679
    %v1703 = vpop.xlane.xlu0 %1702
    %1704 = vadd.xlane.f32.xlu0 %v1680
    %v1705 = vpop.xlane.xlu0 %1704
    %1706 = vadd.xlane.f32.xlu0 %v1681
    %v1707 = vpop.xlane.xlu0 %1706
    %1708 = vadd.xlane.f32.xlu0 %v1682
    %v1709 = vpop.xlane.xlu0 %1708
    %1710 = vadd.xlane.f32.xlu0 %v1683
    %v1711 = vpop.xlane.xlu0 %1710
    %1712 = vadd.xlane.f32.xlu0 %v1684
    %v1713 = vpop.xlane.xlu0 %1712
    %1714 = vadd.xlane.f32.xlu0 %v1685
    %v1715 = vpop.xlane.xlu0 %1714
    %1716 = vadd.xlane.f32.xlu0 %v1686
    %v1717 = vpop.xlane.xlu0 %1716
    %1718 = vadd.xlane.f32.xlu0 %v1687
    %v1719 = vpop.xlane.xlu0 %1718
    %v1720 = vmul.f32 %v1689, %v827
    %v1721 = vmul.f32 %v1691, %v827
    %v1722 = vmul.f32 %v1693, %v827
    %v1723 = vmul.f32 %v1695, %v827
    %v1724 = vmul.f32 %v1697, %v827
    %v1725 = vmul.f32 %v1699, %v827
    %v1726 = vmul.f32 %v1701, %v827
    %v1727 = vmul.f32 %v1703, %v827
    %v1728 = vmul.f32 %v1705, %v827
    %v1729 = vmul.f32 %v1707, %v827
    %v1730 = vmul.f32 %v1709, %v827
    %v1731 = vmul.f32 %v1711, %v827
    %v1732 = vmul.f32 %v1713, %v827
    %v1733 = vmul.f32 %v1715, %v827
    %v1734 = vmul.f32 %v1717, %v827
    %v1735 = vmul.f32 %v1719, %v827
    %v1736 = vadd.f32 %v1720, 1e-06
    %v1737 = vadd.f32 %v1721, 1e-06
    %v1738 = vadd.f32 %v1722, 1e-06
    %v1739 = vadd.f32 %v1723, 1e-06
    %v1740 = vadd.f32 %v1724, 1e-06
    %v1741 = vadd.f32 %v1725, 1e-06
    %v1742 = vadd.f32 %v1726, 1e-06
    %v1743 = vadd.f32 %v1727, 1e-06
    %v1744 = vadd.f32 %v1728, 1e-06
    %v1745 = vadd.f32 %v1729, 1e-06
    %v1746 = vadd.f32 %v1730, 1e-06
    %v1747 = vadd.f32 %v1731, 1e-06
    %v1748 = vadd.f32 %v1732, 1e-06
    %v1749 = vadd.f32 %v1733, 1e-06
    %v1750 = vadd.f32 %v1734, 1e-06
    %v1751 = vadd.f32 %v1735, 1e-06
    %v1752 = vrsqrt.pop %v1736
    %v1753 = vmul.f32 %v1752, %v1736
    %v1754 = vmul.f32 %v1753, %v1752
    %v1755 = vmul.f32 0.5, %v1754
    %v1756 = vsub.f32 1.5, %v1755
    %v1757 = vmul.f32 %v1752, %v1756
    %vm1758 = vweird.f32 %v1736
    %vm1759 = vweird.f32 %v1752
    %vm1760 = vmor %vm1758, %vm1759
    %v1761 = vsel %vm1760, %v1752, %v1757
    %v1762 = vrsqrt.pop %v1737
    %v1763 = vmul.f32 %v1762, %v1737
    %v1764 = vmul.f32 %v1763, %v1762
    %v1765 = vmul.f32 0.5, %v1764
    %v1766 = vsub.f32 1.5, %v1765
    %v1767 = vmul.f32 %v1762, %v1766
    %vm1768 = vweird.f32 %v1737
    %vm1769 = vweird.f32 %v1762
    %vm1770 = vmor %vm1768, %vm1769
    %v1771 = vsel %vm1770, %v1762, %v1767
    %v1772 = vrsqrt.pop %v1738
    %v1773 = vmul.f32 %v1772, %v1738
    %v1774 = vmul.f32 %v1773, %v1772
    %v1775 = vmul.f32 0.5, %v1774
    %v1776 = vsub.f32 1.5, %v1775
    %v1777 = vmul.f32 %v1772, %v1776
    %vm1778 = vweird.f32 %v1738
    %vm1779 = vweird.f32 %v1772
    %vm1780 = vmor %vm1778, %vm1779
    %v1781 = vsel %vm1780, %v1772, %v1777
    %v1782 = vrsqrt.pop %v1739
    %v1783 = vmul.f32 %v1782, %v1739
    %v1784 = vmul.f32 %v1783, %v1782
    %v1785 = vmul.f32 0.5, %v1784
    %v1786 = vsub.f32 1.5, %v1785
    %v1787 = vmul.f32 %v1782, %v1786
    %vm1788 = vweird.f32 %v1739
    %vm1789 = vweird.f32 %v1782
    %vm1790 = vmor %vm1788, %vm1789
    %v1791 = vsel %vm1790, %v1782, %v1787
    %v1792 = vrsqrt.pop %v1740
    %v1793 = vmul.f32 %v1792, %v1740
    %v1794 = vmul.f32 %v1793, %v1792
    %v1795 = vmul.f32 0.5, %v1794
    %v1796 = vsub.f32 1.5, %v1795
    %v1797 = vmul.f32 %v1792, %v1796
    %vm1798 = vweird.f32 %v1740
    %vm1799 = vweird.f32 %v1792
    %vm1800 = vmor %vm1798, %vm1799
    %v1801 = vsel %vm1800, %v1792, %v1797
    %v1802 = vrsqrt.pop %v1741
    %v1803 = vmul.f32 %v1802, %v1741
    %v1804 = vmul.f32 %v1803, %v1802
    %v1805 = vmul.f32 0.5, %v1804
    %v1806 = vsub.f32 1.5, %v1805
    %v1807 = vmul.f32 %v1802, %v1806
    %vm1808 = vweird.f32 %v1741
    %vm1809 = vweird.f32 %v1802
    %vm1810 = vmor %vm1808, %vm1809
    %v1811 = vsel %vm1810, %v1802, %v1807
    %v1812 = vrsqrt.pop %v1742
    %v1813 = vmul.f32 %v1812, %v1742
    %v1814 = vmul.f32 %v1813, %v1812
    %v1815 = vmul.f32 0.5, %v1814
    %v1816 = vsub.f32 1.5, %v1815
    %v1817 = vmul.f32 %v1812, %v1816
    %vm1818 = vweird.f32 %v1742
    %vm1819 = vweird.f32 %v1812
    %vm1820 = vmor %vm1818, %vm1819
    %v1821 = vsel %vm1820, %v1812, %v1817
    %v1822 = vrsqrt.pop %v1743
    %v1823 = vmul.f32 %v1822, %v1743
    %v1824 = vmul.f32 %v1823, %v1822
    %v1825 = vmul.f32 0.5, %v1824
    %v1826 = vsub.f32 1.5, %v1825
    %v1827 = vmul.f32 %v1822, %v1826
    %vm1828 = vweird.f32 %v1743
    %vm1829 = vweird.f32 %v1822
    %vm1830 = vmor %vm1828, %vm1829
    %v1831 = vsel %vm1830, %v1822, %v1827
    %v1832 = vrsqrt.pop %v1744
    %v1833 = vmul.f32 %v1832, %v1744
    %v1834 = vmul.f32 %v1833, %v1832
    %v1835 = vmul.f32 0.5, %v1834
    %v1836 = vsub.f32 1.5, %v1835
    %v1837 = vmul.f32 %v1832, %v1836
    %vm1838 = vweird.f32 %v1744
    %vm1839 = vweird.f32 %v1832
    %vm1840 = vmor %vm1838, %vm1839
    %v1841 = vsel %vm1840, %v1832, %v1837
    %v1842 = vrsqrt.pop %v1745
    %v1843 = vmul.f32 %v1842, %v1745
    %v1844 = vmul.f32 %v1843, %v1842
    %v1845 = vmul.f32 0.5, %v1844
    %v1846 = vsub.f32 1.5, %v1845
    %v1847 = vmul.f32 %v1842, %v1846
    %vm1848 = vweird.f32 %v1745
    %vm1849 = vweird.f32 %v1842
    %vm1850 = vmor %vm1848, %vm1849
    %v1851 = vsel %vm1850, %v1842, %v1847
    %v1852 = vrsqrt.pop %v1746
    %v1853 = vmul.f32 %v1852, %v1746
    %v1854 = vmul.f32 %v1853, %v1852
    %v1855 = vmul.f32 0.5, %v1854
    %v1856 = vsub.f32 1.5, %v1855
    %v1857 = vmul.f32 %v1852, %v1856
    %vm1858 = vweird.f32 %v1746
    %vm1859 = vweird.f32 %v1852
    %vm1860 = vmor %vm1858, %vm1859
    %v1861 = vsel %vm1860, %v1852, %v1857
    %v1862 = vrsqrt.pop %v1747
    %v1863 = vmul.f32 %v1862, %v1747
    %v1864 = vmul.f32 %v1863, %v1862
    %v1865 = vmul.f32 0.5, %v1864
    %v1866 = vsub.f32 1.5, %v1865
    %v1867 = vmul.f32 %v1862, %v1866
    %vm1868 = vweird.f32 %v1747
    %vm1869 = vweird.f32 %v1862
    %vm1870 = vmor %vm1868, %vm1869
    %v1871 = vsel %vm1870, %v1862, %v1867
    %v1872 = vrsqrt.pop %v1748
    %v1873 = vmul.f32 %v1872, %v1748
    %v1874 = vmul.f32 %v1873, %v1872
    %v1875 = vmul.f32 0.5, %v1874
    %v1876 = vsub.f32 1.5, %v1875
    %v1877 = vmul.f32 %v1872, %v1876
    %vm1878 = vweird.f32 %v1748
    %vm1879 = vweird.f32 %v1872
    %vm1880 = vmor %vm1878, %vm1879
    %v1881 = vsel %vm1880, %v1872, %v1877
    %v1882 = vrsqrt.pop %v1749
    %v1883 = vmul.f32 %v1882, %v1749
    %v1884 = vmul.f32 %v1883, %v1882
    %v1885 = vmul.f32 0.5, %v1884
    %v1886 = vsub.f32 1.5, %v1885
    %v1887 = vmul.f32 %v1882, %v1886
    %vm1888 = vweird.f32 %v1749
    %vm1889 = vweird.f32 %v1882
    %vm1890 = vmor %vm1888, %vm1889
    %v1891 = vsel %vm1890, %v1882, %v1887
    %v1892 = vrsqrt.pop %v1750
    %v1893 = vmul.f32 %v1892, %v1750
    %v1894 = vmul.f32 %v1893, %v1892
    %v1895 = vmul.f32 0.5, %v1894
    %v1896 = vsub.f32 1.5, %v1895
    %v1897 = vmul.f32 %v1892, %v1896
    %vm1898 = vweird.f32 %v1750
    %vm1899 = vweird.f32 %v1892
    %vm1900 = vmor %vm1898, %vm1899
    %v1901 = vsel %vm1900, %v1892, %v1897
    %v1902 = vrsqrt.pop %v1751
    %v1903 = vmul.f32 %v1902, %v1751
    %v1904 = vmul.f32 %v1903, %v1902
    %v1905 = vmul.f32 0.5, %v1904
    %v1906 = vsub.f32 1.5, %v1905
    %v1907 = vmul.f32 %v1902, %v1906
    %vm1908 = vweird.f32 %v1751
    %vm1909 = vweird.f32 %v1902
    %vm1910 = vmor %vm1908, %vm1909
    %v1911 = vsel %vm1910, %v1902, %v1907
    %v1912 = vmul.f32 %v1656, %v1761
    %v1913 = vmul.f32 %v1657, %v1771
    %v1914 = vmul.f32 %v1658, %v1781
    %v1915 = vmul.f32 %v1659, %v1791
    %v1916 = vmul.f32 %v1660, %v1801
    %v1917 = vmul.f32 %v1661, %v1811
    %v1918 = vmul.f32 %v1662, %v1821
    %v1919 = vmul.f32 %v1663, %v1831
    %v1920 = vmul.f32 %v1664, %v1841
    %v1921 = vmul.f32 %v1665, %v1851
    %v1922 = vmul.f32 %v1666, %v1861
    %v1923 = vmul.f32 %v1667, %v1871
    %v1924 = vmul.f32 %v1668, %v1881
    %v1925 = vmul.f32 %v1669, %v1891
    %v1926 = vmul.f32 %v1670, %v1901
    %v1927 = vmul.f32 %v1671, %v1911
    %v1928 = vperm.slane %v40, 1
    %v1929 = vmul.f32 %v1912, %v1928
    %v1930 = vmul.f32 %v1913, %v1928
    %v1931 = vmul.f32 %v1914, %v1928
    %v1932 = vmul.f32 %v1915, %v1928
    %v1933 = vmul.f32 %v1916, %v1928
    %v1934 = vmul.f32 %v1917, %v1928
    %v1935 = vmul.f32 %v1918, %v1928
    %v1936 = vmul.f32 %v1919, %v1928
    %v1937 = vmul.f32 %v1920, %v1928
    %v1938 = vmul.f32 %v1921, %v1928
    %v1939 = vmul.f32 %v1922, %v1928
    %v1940 = vmul.f32 %v1923, %v1928
    %v1941 = vmul.f32 %v1924, %v1928
    %v1942 = vmul.f32 %v1925, %v1928
    %v1943 = vmul.f32 %v1926, %v1928
    %v1944 = vmul.f32 %v1927, %v1928
    %v1945 = vperm.slane %v40, 2
    %v1946 = vadd.f32 %v1929, %v1945
    %v1947 = vadd.f32 %v1930, %v1945
    %v1948 = vadd.f32 %v1931, %v1945
    %v1949 = vadd.f32 %v1932, %v1945
    %v1950 = vadd.f32 %v1933, %v1945
    %v1951 = vadd.f32 %v1934, %v1945
    %v1952 = vadd.f32 %v1935, %v1945
    %v1953 = vadd.f32 %v1936, %v1945
    %v1954 = vadd.f32 %v1937, %v1945
    %v1955 = vadd.f32 %v1938, %v1945
    %v1956 = vadd.f32 %v1939, %v1945
    %v1957 = vadd.f32 %v1940, %v1945
    %v1958 = vadd.f32 %v1941, %v1945
    %v1959 = vadd.f32 %v1942, %v1945
    %v1960 = vadd.f32 %v1943, %v1945
    %v1961 = vadd.f32 %v1944, %v1945
    %v1962 = vadd.f32 %v80, %v1946
    %v1963 = vadd.f32 %v82, %v1947
    %v1964 = vadd.f32 %v84, %v1948
    %v1965 = vadd.f32 %v86, %v1949
    %v1966 = vadd.f32 %v88, %v1950
    %v1967 = vadd.f32 %v90, %v1951
    %v1968 = vadd.f32 %v92, %v1952
    %v1969 = vadd.f32 %v94, %v1953
    %v1970 = vadd.f32 %v97, %v1954
    %v1971 = vadd.f32 %v99, %v1955
    %v1972 = vadd.f32 %v101, %v1956
    %v1973 = vadd.f32 %v103, %v1957
    %v1974 = vadd.f32 %v105, %v1958
    %v1975 = vadd.f32 %v107, %v1959
    %v1976 = vadd.f32 %v109, %v1960
    %v1977 = vadd.f32 %v111, %v1961
    %v1978 = vpack.c.bf16 %v1963, %v1962
    %v1979 = vpack.c.bf16 %v1965, %v1964
    %v1980 = vpack.c.bf16 %v1967, %v1966
    %v1981 = vpack.c.bf16 %v1969, %v1968
    %v1982 = vpack.c.bf16 %v1971, %v1970
    %v1983 = vpack.c.bf16 %v1973, %v1972
    %v1984 = vpack.c.bf16 %v1975, %v1974
    %v1985 = vpack.c.bf16 %v1977, %v1976
    %v1986 = vld [vmem:[%s9] sm:$0xff]
    %v1987 = vld [vmem:[%s9 + $0x8] sm:$0xff]
    %v1988 = vld [vmem:[%s9 + $0x10] sm:$0xff]
    %v1989 = vld [vmem:[%s9 + $0x18] sm:$0xff]
    %v1990 = vld [vmem:[%s9 + $0x20] sm:$0xff]
    %v1991 = vld [vmem:[%s9 + $0x28] sm:$0xff]
    %v1992 = vld [vmem:[%s9 + $0x30] sm:$0xff]
    %v1993 = vld [vmem:[%s9 + $0x38] sm:$0xff]
    %v1994 = vld [vmem:[%s9 + $0x40] sm:$0xff]
    %v1995 = vld [vmem:[%s9 + $0x48] sm:$0xff]
    %v1996 = vld [vmem:[%s9 + $0x50] sm:$0xff]
    %v1997 = vld [vmem:[%s9 + $0x58] sm:$0xff]
    %v1998 = vld [vmem:[%s9 + $0x60] sm:$0xff]
    %v1999 = vld [vmem:[%s9 + $0x68] sm:$0xff]
    %v2000 = vld [vmem:[%s9 + $0x70] sm:$0xff]
    %v2001 = vld [vmem:[%s9 + $0x78] sm:$0xff]
    %v2002 = vld [vmem:[%s9 + $0x80] sm:$0xff]
    %v2003 = vld [vmem:[%s9 + $0x88] sm:$0xff]
    %v2004 = vld [vmem:[%s9 + $0x90] sm:$0xff]
    %v2005 = vld [vmem:[%s9 + $0x98] sm:$0xff]
    %v2006 = vld [vmem:[%s9 + $0xa0] sm:$0xff]
    %v2007 = vld [vmem:[%s9 + $0xa8] sm:$0xff]
    %v2008 = vld [vmem:[%s9 + $0xb0] sm:$0xff]
    %v2009 = vld [vmem:[%s9 + $0xb8] sm:$0xff]
    %v2010 = vld [vmem:[%s9 + $0xc0] sm:$0xff]
    %v2011 = vld [vmem:[%s9 + $0xc8] sm:$0xff]
    %v2012 = vld [vmem:[%s9 + $0xd0] sm:$0xff]
    %v2013 = vld [vmem:[%s9 + $0xd8] sm:$0xff]
    %v2014 = vld [vmem:[%s9 + $0xe0] sm:$0xff]
    %v2015 = vld [vmem:[%s9 + $0xe8] sm:$0xff]
    %v2016 = vld [vmem:[%s9 + $0xf0] sm:$0xff]
    %v2017 = vld [vmem:[%s9 + $0xf8] sm:$0xff]
    %v2018 = vld [vmem:[%s5] sm:$0xf]
    %v2020 = vperm.slane %v2018, 0
    %v2021 = vperm.slane %v2018, 1
    %v2022 = vperm.slane %v2018, 2
    %v2023 = vperm.slane %v2018, 3
    %v2060 = vunpack.c.l.b16 %v1986
    %v2061 = vunpack.c.h.b16 %v1986
    %v2062 = vunpack.c.l.b16 %v1987
    %v2063 = vunpack.c.h.b16 %v1987
    %v2064 = vunpack.c.l.b16 %v1988
    %v2065 = vunpack.c.h.b16 %v1988
    %v2066 = vunpack.c.l.b16 %v1989
    %v2067 = vunpack.c.h.b16 %v1989
    %v2068 = vunpack.c.l.b16 %v1990
    %v2069 = vunpack.c.h.b16 %v1990
    %v2070 = vunpack.c.l.b16 %v1991
    %v2071 = vunpack.c.h.b16 %v1991
    %v2072 = vunpack.c.l.b16 %v1992
    %v2073 = vunpack.c.h.b16 %v1992
    %v2074 = vunpack.c.l.b16 %v1993
    %v2075 = vunpack.c.h.b16 %v1993
    %v2076 = vunpack.c.l.b16 %v1994
    %v2077 = vunpack.c.h.b16 %v1994
    %v2078 = vunpack.c.l.b16 %v1995
    %v2079 = vunpack.c.h.b16 %v1995
    %v2080 = vunpack.c.l.b16 %v1996
    %v2081 = vunpack.c.h.b16 %v1996
    %v2082 = vunpack.c.l.b16 %v1997
    %v2083 = vunpack.c.h.b16 %v1997
    %v2084 = vunpack.c.l.b16 %v1998
    %v2085 = vunpack.c.h.b16 %v1998
    %v2086 = vunpack.c.l.b16 %v1999
    %v2087 = vunpack.c.h.b16 %v1999
    %v2088 = vunpack.c.l.b16 %v2000
    %v2089 = vunpack.c.h.b16 %v2000
    %v2090 = vunpack.c.l.b16 %v2001
    %v2091 = vunpack.c.h.b16 %v2001
    %v2092 = vunpack.c.l.b16 %v2002
    %v2093 = vunpack.c.h.b16 %v2002
    %v2094 = vunpack.c.l.b16 %v2003
    %v2095 = vunpack.c.h.b16 %v2003
    %v2096 = vunpack.c.l.b16 %v2004
    %v2097 = vunpack.c.h.b16 %v2004
    %v2098 = vunpack.c.l.b16 %v2005
    %v2099 = vunpack.c.h.b16 %v2005
    %v2100 = vunpack.c.l.b16 %v2006
    %v2101 = vunpack.c.h.b16 %v2006
    %v2102 = vunpack.c.l.b16 %v2007
    %v2103 = vunpack.c.h.b16 %v2007
    %v2104 = vunpack.c.l.b16 %v2008
    %v2105 = vunpack.c.h.b16 %v2008
    %v2106 = vunpack.c.l.b16 %v2009
    %v2107 = vunpack.c.h.b16 %v2009
    %v2108 = vunpack.c.l.b16 %v2010
    %v2109 = vunpack.c.h.b16 %v2010
    %v2110 = vunpack.c.l.b16 %v2011
    %v2111 = vunpack.c.h.b16 %v2011
    %v2112 = vunpack.c.l.b16 %v2012
    %v2113 = vunpack.c.h.b16 %v2012
    %v2114 = vunpack.c.l.b16 %v2013
    %v2115 = vunpack.c.h.b16 %v2013
    %v2116 = vunpack.c.l.b16 %v2014
    %v2117 = vunpack.c.h.b16 %v2014
    %v2118 = vunpack.c.l.b16 %v2015
    %v2119 = vunpack.c.h.b16 %v2015
    %v2120 = vunpack.c.l.b16 %v2016
    %v2121 = vunpack.c.h.b16 %v2016
    %v2122 = vunpack.c.l.b16 %v2017
    %v2123 = vunpack.c.h.b16 %v2017
    %v2124 = vpack.c.b16 %v2064, %v2060
    %v2125 = vpack.c.b16 %v2065, %v2061
    %v2126 = vpack.c.b16 %v2066, %v2062
    %v2127 = vpack.c.b16 %v2067, %v2063
    %v2128 = vpack.c.b16 %v2072, %v2068
    %v2129 = vpack.c.b16 %v2073, %v2069
    %v2130 = vpack.c.b16 %v2074, %v2070
    %v2131 = vpack.c.b16 %v2075, %v2071
    %v2132 = vpack.c.b16 %v2080, %v2076
    %v2133 = vpack.c.b16 %v2081, %v2077
    %v2134 = vpack.c.b16 %v2082, %v2078
    %v2135 = vpack.c.b16 %v2083, %v2079
    %v2136 = vpack.c.b16 %v2088, %v2084
    %v2137 = vpack.c.b16 %v2089, %v2085
    %v2138 = vpack.c.b16 %v2090, %v2086
    %v2139 = vpack.c.b16 %v2091, %v2087
    %v2140 = vpack.c.b16 %v2096, %v2092
    %v2141 = vpack.c.b16 %v2097, %v2093
    %v2142 = vpack.c.b16 %v2098, %v2094
    %v2143 = vpack.c.b16 %v2099, %v2095
    %v2144 = vpack.c.b16 %v2104, %v2100
    %v2145 = vpack.c.b16 %v2105, %v2101
    %v2146 = vpack.c.b16 %v2106, %v2102
    %v2147 = vpack.c.b16 %v2107, %v2103
    %v2148 = vpack.c.b16 %v2112, %v2108
    %v2149 = vpack.c.b16 %v2113, %v2109
    %v2150 = vpack.c.b16 %v2114, %v2110
    %v2151 = vpack.c.b16 %v2115, %v2111
    %v2152 = vpack.c.b16 %v2120, %v2116
    %v2153 = vpack.c.b16 %v2121, %v2117
    %v2154 = vpack.c.b16 %v2122, %v2118
    %v2155 = vpack.c.b16 %v2123, %v2119
    %2188 = vmatpush.bf16.msra.mxu0 %v2152
    %2189 = vmatpush.bf16.msra.mxu0 %v2148
    %2190 = vmatpush.bf16.msra.mxu0 %v2144
    %2191 = vmatpush.bf16.msra.mxu0 %v2140
    %2192 = vmatpush.bf16.msra.mxu0 %v2136
    %2193 = vmatpush.bf16.msra.mxu0 %v2132
    %2194 = vmatpush.bf16.msra.mxu0 %v2128
    %2195 = vmatpush.bf16.msra.mxu0 %v2124
    %2196 = vmatmul.bf16.gmra.mxu0 %v1978
    %v2197 = vpop.f32.mrf.mxu0
    %v2198 = vadd.f32 %v2020, %v2197
    %v2199 = vpop.f32.mrf.mxu0
    %v2200 = vadd.f32 %v2020, %v2199
    %2201 = vmatmul.bf16.gmra.mxu0 %v1979
    %v2202 = vpop.f32.mrf.mxu0
    %v2203 = vadd.f32 %v2020, %v2202
    %v2204 = vpop.f32.mrf.mxu0
    %v2205 = vadd.f32 %v2020, %v2204
    %2206 = vmatmul.bf16.gmra.mxu0 %v1980
    %v2207 = vpop.f32.mrf.mxu0
    %v2208 = vadd.f32 %v2020, %v2207
    %v2209 = vpop.f32.mrf.mxu0
    %v2210 = vadd.f32 %v2020, %v2209
    %2211 = vmatmul.bf16.gmra.mxu0 %v1981
    %v2212 = vpop.f32.mrf.mxu0
    %v2213 = vadd.f32 %v2020, %v2212
    %v2214 = vpop.f32.mrf.mxu0
    %v2215 = vadd.f32 %v2020, %v2214
    %2216 = vmatmul.bf16.gmra.mxu0 %v1982
    %v2217 = vpop.f32.mrf.mxu0
    %v2218 = vadd.f32 %v2020, %v2217
    %v2219 = vpop.f32.mrf.mxu0
    %v2220 = vadd.f32 %v2020, %v2219
    %2221 = vmatmul.bf16.gmra.mxu0 %v1983
    %v2222 = vpop.f32.mrf.mxu0
    %v2223 = vadd.f32 %v2020, %v2222
    %v2224 = vpop.f32.mrf.mxu0
    %v2225 = vadd.f32 %v2020, %v2224
    %2226 = vmatmul.bf16.gmra.mxu0 %v1984
    %v2227 = vpop.f32.mrf.mxu0
    %v2228 = vadd.f32 %v2020, %v2227
    %v2229 = vpop.f32.mrf.mxu0
    %v2230 = vadd.f32 %v2020, %v2229
    %2231 = vmatmul.bf16.gmra.mxu0 %v1985
    %v2232 = vpop.f32.mrf.mxu0
    %v2233 = vadd.f32 %v2020, %v2232
    %v2234 = vpop.f32.mrf.mxu0
    %v2235 = vadd.f32 %v2020, %v2234
    %2236 = vdwg.mxu0
    %2237 = vmatpush.bf16.msra.mxu0 %v2153
    %2238 = vmatpush.bf16.msra.mxu0 %v2149
    %2239 = vmatpush.bf16.msra.mxu0 %v2145
    %2240 = vmatpush.bf16.msra.mxu0 %v2141
    %2241 = vmatpush.bf16.msra.mxu0 %v2137
    %2242 = vmatpush.bf16.msra.mxu0 %v2133
    %2243 = vmatpush.bf16.msra.mxu0 %v2129
    %2244 = vmatpush.bf16.msra.mxu0 %v2125
    %2245 = vmatmul.bf16.gmra.mxu0 %v1978
    %v2246 = vpop.f32.mrf.mxu0
    %v2247 = vadd.f32 %v2021, %v2246
    %v2248 = vpop.f32.mrf.mxu0
    %v2249 = vadd.f32 %v2021, %v2248
    %2250 = vmatmul.bf16.gmra.mxu0 %v1979
    %v2251 = vpop.f32.mrf.mxu0
    %v2252 = vadd.f32 %v2021, %v2251
    %v2253 = vpop.f32.mrf.mxu0
    %v2254 = vadd.f32 %v2021, %v2253
    %2255 = vmatmul.bf16.gmra.mxu0 %v1980
    %v2256 = vpop.f32.mrf.mxu0
    %v2257 = vadd.f32 %v2021, %v2256
    %v2258 = vpop.f32.mrf.mxu0
    %v2259 = vadd.f32 %v2021, %v2258
    %2260 = vmatmul.bf16.gmra.mxu0 %v1981
    %v2261 = vpop.f32.mrf.mxu0
    %v2262 = vadd.f32 %v2021, %v2261
    %v2263 = vpop.f32.mrf.mxu0
    %v2264 = vadd.f32 %v2021, %v2263
    %2265 = vmatmul.bf16.gmra.mxu0 %v1982
    %v2266 = vpop.f32.mrf.mxu0
    %v2267 = vadd.f32 %v2021, %v2266
    %v2268 = vpop.f32.mrf.mxu0
    %v2269 = vadd.f32 %v2021, %v2268
    %2270 = vmatmul.bf16.gmra.mxu0 %v1983
    %v2271 = vpop.f32.mrf.mxu0
    %v2272 = vadd.f32 %v2021, %v2271
    %v2273 = vpop.f32.mrf.mxu0
    %v2274 = vadd.f32 %v2021, %v2273
    %2275 = vmatmul.bf16.gmra.mxu0 %v1984
    %v2276 = vpop.f32.mrf.mxu0
    %v2277 = vadd.f32 %v2021, %v2276
    %v2278 = vpop.f32.mrf.mxu0
    %v2279 = vadd.f32 %v2021, %v2278
    %2280 = vmatmul.bf16.gmra.mxu0 %v1985
    %v2281 = vpop.f32.mrf.mxu0
    %v2282 = vadd.f32 %v2021, %v2281
    %v2283 = vpop.f32.mrf.mxu0
    %v2284 = vadd.f32 %v2021, %v2283
    %2285 = vdwg.mxu0
    %2286 = vmatpush.bf16.msra.mxu0 %v2154
    %2287 = vmatpush.bf16.msra.mxu0 %v2150
    %2288 = vmatpush.bf16.msra.mxu0 %v2146
    %2289 = vmatpush.bf16.msra.mxu0 %v2142
    %2290 = vmatpush.bf16.msra.mxu0 %v2138
    %2291 = vmatpush.bf16.msra.mxu0 %v2134
    %2292 = vmatpush.bf16.msra.mxu0 %v2130
    %2293 = vmatpush.bf16.msra.mxu0 %v2126
    %2294 = vmatmul.bf16.gmra.mxu0 %v1978
    %v2295 = vpop.f32.mrf.mxu0
    %v2296 = vadd.f32 %v2022, %v2295
    %v2297 = vpop.f32.mrf.mxu0
    %v2298 = vadd.f32 %v2022, %v2297
    %2299 = vmatmul.bf16.gmra.mxu0 %v1979
    %v2300 = vpop.f32.mrf.mxu0
    %v2301 = vadd.f32 %v2022, %v2300
    %v2302 = vpop.f32.mrf.mxu0
    %v2303 = vadd.f32 %v2022, %v2302
    %2304 = vmatmul.bf16.gmra.mxu0 %v1980
    %v2305 = vpop.f32.mrf.mxu0
    %v2306 = vadd.f32 %v2022, %v2305
    %v2307 = vpop.f32.mrf.mxu0
    %v2308 = vadd.f32 %v2022, %v2307
    %2309 = vmatmul.bf16.gmra.mxu0 %v1981
    %v2310 = vpop.f32.mrf.mxu0
    %v2311 = vadd.f32 %v2022, %v2310
    %v2312 = vpop.f32.mrf.mxu0
    %v2313 = vadd.f32 %v2022, %v2312
    %2314 = vmatmul.bf16.gmra.mxu0 %v1982
    %v2315 = vpop.f32.mrf.mxu0
    %v2316 = vadd.f32 %v2022, %v2315
    %v2317 = vpop.f32.mrf.mxu0
    %v2318 = vadd.f32 %v2022, %v2317
    %2319 = vmatmul.bf16.gmra.mxu0 %v1983
    %v2320 = vpop.f32.mrf.mxu0
    %v2321 = vadd.f32 %v2022, %v2320
    %v2322 = vpop.f32.mrf.mxu0
    %v2323 = vadd.f32 %v2022, %v2322
    %2324 = vmatmul.bf16.gmra.mxu0 %v1984
    %v2325 = vpop.f32.mrf.mxu0
    %v2326 = vadd.f32 %v2022, %v2325
    %v2327 = vpop.f32.mrf.mxu0
    %v2328 = vadd.f32 %v2022, %v2327
    %2329 = vmatmul.bf16.gmra.mxu0 %v1985
    %v2330 = vpop.f32.mrf.mxu0
    %v2331 = vadd.f32 %v2022, %v2330
    %v2332 = vpop.f32.mrf.mxu0
    %v2333 = vadd.f32 %v2022, %v2332
    %2334 = vdwg.mxu0
    %2335 = vmatpush.bf16.msra.mxu0 %v2155
    %2336 = vmatpush.bf16.msra.mxu0 %v2151
    %2337 = vmatpush.bf16.msra.mxu0 %v2147
    %2338 = vmatpush.bf16.msra.mxu0 %v2143
    %2339 = vmatpush.bf16.msra.mxu0 %v2139
    %2340 = vmatpush.bf16.msra.mxu0 %v2135
    %2341 = vmatpush.bf16.msra.mxu0 %v2131
    %2342 = vmatpush.bf16.msra.mxu0 %v2127
    %2343 = vmatmul.bf16.gmra.mxu0 %v1978
    %v2344 = vpop.f32.mrf.mxu0
    %v2345 = vadd.f32 %v2023, %v2344
    %v2346 = vpop.f32.mrf.mxu0
    %v2347 = vadd.f32 %v2023, %v2346
    %2348 = vmatmul.bf16.gmra.mxu0 %v1979
    %v2349 = vpop.f32.mrf.mxu0
    %v2350 = vadd.f32 %v2023, %v2349
    %v2351 = vpop.f32.mrf.mxu0
    %v2352 = vadd.f32 %v2023, %v2351
    %2353 = vmatmul.bf16.gmra.mxu0 %v1980
    %v2354 = vpop.f32.mrf.mxu0
    %v2355 = vadd.f32 %v2023, %v2354
    %v2356 = vpop.f32.mrf.mxu0
    %v2357 = vadd.f32 %v2023, %v2356
    %2358 = vmatmul.bf16.gmra.mxu0 %v1981
    %v2359 = vpop.f32.mrf.mxu0
    %v2360 = vadd.f32 %v2023, %v2359
    %v2361 = vpop.f32.mrf.mxu0
    %v2362 = vadd.f32 %v2023, %v2361
    %2363 = vmatmul.bf16.gmra.mxu0 %v1982
    %v2364 = vpop.f32.mrf.mxu0
    %v2365 = vadd.f32 %v2023, %v2364
    %v2366 = vpop.f32.mrf.mxu0
    %v2367 = vadd.f32 %v2023, %v2366
    %2368 = vmatmul.bf16.gmra.mxu0 %v1983
    %v2369 = vpop.f32.mrf.mxu0
    %v2370 = vadd.f32 %v2023, %v2369
    %v2371 = vpop.f32.mrf.mxu0
    %v2372 = vadd.f32 %v2023, %v2371
    %2373 = vmatmul.bf16.gmra.mxu0 %v1984
    %v2374 = vpop.f32.mrf.mxu0
    %v2375 = vadd.f32 %v2023, %v2374
    %v2376 = vpop.f32.mrf.mxu0
    %v2377 = vadd.f32 %v2023, %v2376
    %2378 = vmatmul.bf16.gmra.mxu0 %v1985
    %v2379 = vpop.f32.mrf.mxu0
    %v2380 = vadd.f32 %v2023, %v2379
    %v2381 = vpop.f32.mrf.mxu0
    %v2382 = vadd.f32 %v2023, %v2381
    %2383 = vdwg.mxu0
    %v2384 = vmul.f32 %v2198, 0.5
    %v2385 = vmul.f32 %v2247, 0.5
    %v2386 = vmul.f32 %v2296, 0.5
    %v2387 = vmul.f32 %v2345, 0.5
    %v2388 = vmul.f32 %v2200, 0.5
    %v2389 = vmul.f32 %v2249, 0.5
    %v2390 = vmul.f32 %v2298, 0.5
    %v2391 = vmul.f32 %v2347, 0.5
    %v2392 = vmul.f32 %v2203, 0.5
    %v2393 = vmul.f32 %v2252, 0.5
    %v2394 = vmul.f32 %v2301, 0.5
    %v2395 = vmul.f32 %v2350, 0.5
    %v2396 = vmul.f32 %v2205, 0.5
    %v2397 = vmul.f32 %v2254, 0.5
    %v2398 = vmul.f32 %v2303, 0.5
    %v2399 = vmul.f32 %v2352, 0.5
    %v2400 = vmul.f32 %v2208, 0.5
    %v2401 = vmul.f32 %v2257, 0.5
    %v2402 = vmul.f32 %v2306, 0.5
    %v2403 = vmul.f32 %v2355, 0.5
    %v2404 = vmul.f32 %v2210, 0.5
    %v2405 = vmul.f32 %v2259, 0.5
    %v2406 = vmul.f32 %v2308, 0.5
    %v2407 = vmul.f32 %v2357, 0.5
    %v2408 = vmul.f32 %v2213, 0.5
    %v2409 = vmul.f32 %v2262, 0.5
    %v2410 = vmul.f32 %v2311, 0.5
    %v2411 = vmul.f32 %v2360, 0.5
    %v2412 = vmul.f32 %v2215, 0.5
    %v2413 = vmul.f32 %v2264, 0.5
    %v2414 = vmul.f32 %v2313, 0.5
    %v2415 = vmul.f32 %v2362, 0.5
    %v2416 = vmul.f32 %v2218, 0.5
    %v2417 = vmul.f32 %v2267, 0.5
    %v2418 = vmul.f32 %v2316, 0.5
    %v2419 = vmul.f32 %v2365, 0.5
    %v2420 = vmul.f32 %v2220, 0.5
    %v2421 = vmul.f32 %v2269, 0.5
    %v2422 = vmul.f32 %v2318, 0.5
    %v2423 = vmul.f32 %v2367, 0.5
    %v2424 = vmul.f32 %v2223, 0.5
    %v2425 = vmul.f32 %v2272, 0.5
    %v2426 = vmul.f32 %v2321, 0.5
    %v2427 = vmul.f32 %v2370, 0.5
    %v2428 = vmul.f32 %v2225, 0.5
    %v2429 = vmul.f32 %v2274, 0.5
    %v2430 = vmul.f32 %v2323, 0.5
    %v2431 = vmul.f32 %v2372, 0.5
    %v2432 = vmul.f32 %v2228, 0.5
    %v2433 = vmul.f32 %v2277, 0.5
    %v2434 = vmul.f32 %v2326, 0.5
    %v2435 = vmul.f32 %v2375, 0.5
    %v2436 = vmul.f32 %v2230, 0.5
    %v2437 = vmul.f32 %v2279, 0.5
    %v2438 = vmul.f32 %v2328, 0.5
    %v2439 = vmul.f32 %v2377, 0.5
    %v2440 = vmul.f32 %v2233, 0.5
    %v2441 = vmul.f32 %v2282, 0.5
    %v2442 = vmul.f32 %v2331, 0.5
    %v2443 = vmul.f32 %v2380, 0.5
    %v2444 = vmul.f32 %v2235, 0.5
    %v2445 = vmul.f32 %v2284, 0.5
    %v2446 = vmul.f32 %v2333, 0.5
    %v2447 = vmul.f32 %v2382, 0.5
    %v2448 = vmul.f32 %v2198, 0.70710677
    %v2449 = vmul.f32 %v2247, 0.70710677
    %v2450 = vmul.f32 %v2296, 0.70710677
    %v2451 = vmul.f32 %v2345, 0.70710677
    %v2452 = vmul.f32 %v2200, 0.70710677
    %v2453 = vmul.f32 %v2249, 0.70710677
    %v2454 = vmul.f32 %v2298, 0.70710677
    %v2455 = vmul.f32 %v2347, 0.70710677
    %v2456 = vmul.f32 %v2203, 0.70710677
    %v2457 = vmul.f32 %v2252, 0.70710677
    %v2458 = vmul.f32 %v2301, 0.70710677
    %v2459 = vmul.f32 %v2350, 0.70710677
    %v2460 = vmul.f32 %v2205, 0.70710677
    %v2461 = vmul.f32 %v2254, 0.70710677
    %v2462 = vmul.f32 %v2303, 0.70710677
    %v2463 = vmul.f32 %v2352, 0.70710677
    %v2464 = vmul.f32 %v2208, 0.70710677
    %v2465 = vmul.f32 %v2257, 0.70710677
    %v2466 = vmul.f32 %v2306, 0.70710677
    %v2467 = vmul.f32 %v2355, 0.70710677
    %v2468 = vmul.f32 %v2210, 0.70710677
    %v2469 = vmul.f32 %v2259, 0.70710677
    %v2470 = vmul.f32 %v2308, 0.70710677
    %v2471 = vmul.f32 %v2357, 0.70710677
    %v2472 = vmul.f32 %v2213, 0.70710677
    %v2473 = vmul.f32 %v2262, 0.70710677
    %v2474 = vmul.f32 %v2311, 0.70710677
    %v2475 = vmul.f32 %v2360, 0.70710677
    %v2476 = vmul.f32 %v2215, 0.70710677
    %v2477 = vmul.f32 %v2264, 0.70710677
    %v2478 = vmul.f32 %v2313, 0.70710677
    %v2479 = vmul.f32 %v2362, 0.70710677
    %v2480 = vmul.f32 %v2218, 0.70710677
    %v2481 = vmul.f32 %v2267, 0.70710677
    %v2482 = vmul.f32 %v2316, 0.70710677
    %v2483 = vmul.f32 %v2365, 0.70710677
    %v2484 = vmul.f32 %v2220, 0.70710677
    %v2485 = vmul.f32 %v2269, 0.70710677
    %v2486 = vmul.f32 %v2318, 0.70710677
    %v2487 = vmul.f32 %v2367, 0.70710677
    %v2488 = vmul.f32 %v2223, 0.70710677
    %v2489 = vmul.f32 %v2272, 0.70710677
    %v2490 = vmul.f32 %v2321, 0.70710677
    %v2491 = vmul.f32 %v2370, 0.70710677
    %v2492 = vmul.f32 %v2225, 0.70710677
    %v2493 = vmul.f32 %v2274, 0.70710677
    %v2494 = vmul.f32 %v2323, 0.70710677
    %v2495 = vmul.f32 %v2372, 0.70710677
    %v2496 = vmul.f32 %v2228, 0.70710677
    %v2497 = vmul.f32 %v2277, 0.70710677
    %v2498 = vmul.f32 %v2326, 0.70710677
    %v2499 = vmul.f32 %v2375, 0.70710677
    %v2500 = vmul.f32 %v2230, 0.70710677
    %v2501 = vmul.f32 %v2279, 0.70710677
    %v2502 = vmul.f32 %v2328, 0.70710677
    %v2503 = vmul.f32 %v2377, 0.70710677
    %v2504 = vmul.f32 %v2233, 0.70710677
    %v2505 = vmul.f32 %v2282, 0.70710677
    %v2506 = vmul.f32 %v2331, 0.70710677
    %v2507 = vmul.f32 %v2380, 0.70710677
    %v2508 = vmul.f32 %v2235, 0.70710677
    %v2509 = vmul.f32 %v2284, 0.70710677
    %v2510 = vmul.f32 %v2333, 0.70710677
    %v2511 = vmul.f32 %v2382, 0.70710677
    %v2512 = vmul.f32 %v2448, %v2448
    %v2513 = vmin.f32 16.0, %v2512
    %v2514 = vmul.f32 %v2513, 2.1237322e-06
    %v2515 = vadd.f32 %v2514, 0.00028619796
    %v2516 = vmul.f32 %v2513, %v2515
    %v2517 = vadd.f32 %v2516, 0.0036580483
    %v2518 = vmul.f32 %v2513, %v2517
    %v2519 = vadd.f32 %v2518, 0.05243302
    %v2520 = vmul.f32 %v2513, %v2519
    %v2521 = vadd.f32 %v2520, 0.18741608
    %v2522 = vmul.f32 %v2513, %v2521
    %v2523 = vadd.f32 %v2522, 1.1283791
    %v2524 = vmul.f32 %v2448, %v2523
    %v2525 = vmul.f32 %v2513, 3.8918573e-05
    %v2526 = vadd.f32 %v2525, 0.001143296
    %v2527 = vmul.f32 %v2513, %v2526
    %v2528 = vadd.f32 %v2527, 0.014752088
    %v2529 = vmul.f32 %v2513, %v2528
    %v2530 = vadd.f32 %v2529, 0.112945676
    %v2531 = vmul.f32 %v2513, %v2530
    %v2532 = vadd.f32 %v2531, 0.4994258
    %v2533 = vmul.f32 %v2513, %v2532
    %v2534 = vadd.f32 %v2533, 1.0
    %v2535 = vrcp.pop %v2534
    %v2536 = vmul.f32 %v2534, %v2535
    %v2537 = vsub.f32 1.0, %v2536
    %v2538 = vmul.f32 %v2535, %v2537
    %v2539 = vadd.f32 %v2535, %v2538
    %vm2540 = vweird.f32 %v2534
    %vm2541 = vweird.f32 %v2535
    %vm2542 = vmor %vm2540, %vm2541
    %v2543 = vsel %vm2542, %v2535, %v2539
    %v2544 = vand.u32 2147483647, %v2534
    %vm2545 = vcmp.eq.f32.partialorder %v2544, 8.507059e+37
    %v2546 = vand.u32 %v2534, 2147483648
    %v2547 = vor.u32 1.1754944e-38, %v2546
    %v2548 = vsel %vm2545, %v2547, %v2543
    %v2549 = vmul.f32 %v2524, %v2548
    %v2550 = vmin.f32 %v2549, 1.0
    %v2551 = vmax.f32 %v2550, -1.0
    %v2552 = vmul.f32 %v2449, %v2449
    %v2553 = vmin.f32 16.0, %v2552
    %v2554 = vmul.f32 %v2553, 2.1237322e-06
    %v2555 = vadd.f32 %v2554, 0.00028619796
    %v2556 = vmul.f32 %v2553, %v2555
    %v2557 = vadd.f32 %v2556, 0.0036580483
    %v2558 = vmul.f32 %v2553, %v2557
    %v2559 = vadd.f32 %v2558, 0.05243302
    %v2560 = vmul.f32 %v2553, %v2559
    %v2561 = vadd.f32 %v2560, 0.18741608
    %v2562 = vmul.f32 %v2553, %v2561
    %v2563 = vadd.f32 %v2562, 1.1283791
    %v2564 = vmul.f32 %v2449, %v2563
    %v2565 = vmul.f32 %v2553, 3.8918573e-05
    %v2566 = vadd.f32 %v2565, 0.001143296
    %v2567 = vmul.f32 %v2553, %v2566
    %v2568 = vadd.f32 %v2567, 0.014752088
    %v2569 = vmul.f32 %v2553, %v2568
    %v2570 = vadd.f32 %v2569, 0.112945676
    %v2571 = vmul.f32 %v2553, %v2570
    %v2572 = vadd.f32 %v2571, 0.4994258
    %v2573 = vmul.f32 %v2553, %v2572
    %v2574 = vadd.f32 %v2573, 1.0
    %v2575 = vrcp.pop %v2574
    %v2576 = vmul.f32 %v2574, %v2575
    %v2577 = vsub.f32 1.0, %v2576
    %v2578 = vmul.f32 %v2575, %v2577
    %v2579 = vadd.f32 %v2575, %v2578
    %vm2580 = vweird.f32 %v2574
    %vm2581 = vweird.f32 %v2575
    %vm2582 = vmor %vm2580, %vm2581
    %v2583 = vsel %vm2582, %v2575, %v2579
    %v2584 = vand.u32 2147483647, %v2574
    %vm2585 = vcmp.eq.f32.partialorder %v2584, 8.507059e+37
    %v2586 = vand.u32 %v2574, 2147483648
    %v2587 = vor.u32 1.1754944e-38, %v2586
    %v2588 = vsel %vm2585, %v2587, %v2583
    %v2589 = vmul.f32 %v2564, %v2588
    %v2590 = vmin.f32 %v2589, 1.0
    %v2591 = vmax.f32 %v2590, -1.0
    %v2592 = vmul.f32 %v2450, %v2450
    %v2593 = vmin.f32 16.0, %v2592
    %v2594 = vmul.f32 %v2593, 2.1237322e-06
    %v2595 = vadd.f32 %v2594, 0.00028619796
    %v2596 = vmul.f32 %v2593, %v2595
    %v2597 = vadd.f32 %v2596, 0.0036580483
    %v2598 = vmul.f32 %v2593, %v2597
    %v2599 = vadd.f32 %v2598, 0.05243302
    %v2600 = vmul.f32 %v2593, %v2599
    %v2601 = vadd.f32 %v2600, 0.18741608
    %v2602 = vmul.f32 %v2593, %v2601
    %v2603 = vadd.f32 %v2602, 1.1283791
    %v2604 = vmul.f32 %v2450, %v2603
    %v2605 = vmul.f32 %v2593, 3.8918573e-05
    %v2606 = vadd.f32 %v2605, 0.001143296
    %v2607 = vmul.f32 %v2593, %v2606
    %v2608 = vadd.f32 %v2607, 0.014752088
    %v2609 = vmul.f32 %v2593, %v2608
    %v2610 = vadd.f32 %v2609, 0.112945676
    %v2611 = vmul.f32 %v2593, %v2610
    %v2612 = vadd.f32 %v2611, 0.4994258
    %v2613 = vmul.f32 %v2593, %v2612
    %v2614 = vadd.f32 %v2613, 1.0
    %v2615 = vrcp.pop %v2614
    %v2616 = vmul.f32 %v2614, %v2615
    %v2617 = vsub.f32 1.0, %v2616
    %v2618 = vmul.f32 %v2615, %v2617
    %v2619 = vadd.f32 %v2615, %v2618
    %vm2620 = vweird.f32 %v2614
    %vm2621 = vweird.f32 %v2615
    %vm2622 = vmor %vm2620, %vm2621
    %v2623 = vsel %vm2622, %v2615, %v2619
    %v2624 = vand.u32 2147483647, %v2614
    %vm2625 = vcmp.eq.f32.partialorder %v2624, 8.507059e+37
    %v2626 = vand.u32 %v2614, 2147483648
    %v2627 = vor.u32 1.1754944e-38, %v2626
    %v2628 = vsel %vm2625, %v2627, %v2623
    %v2629 = vmul.f32 %v2604, %v2628
    %v2630 = vmin.f32 %v2629, 1.0
    %v2631 = vmax.f32 %v2630, -1.0
    %v2632 = vmul.f32 %v2451, %v2451
    %v2633 = vmin.f32 16.0, %v2632
    %v2634 = vmul.f32 %v2633, 2.1237322e-06
    %v2635 = vadd.f32 %v2634, 0.00028619796
    %v2636 = vmul.f32 %v2633, %v2635
    %v2637 = vadd.f32 %v2636, 0.0036580483
    %v2638 = vmul.f32 %v2633, %v2637
    %v2639 = vadd.f32 %v2638, 0.05243302
    %v2640 = vmul.f32 %v2633, %v2639
    %v2641 = vadd.f32 %v2640, 0.18741608
    %v2642 = vmul.f32 %v2633, %v2641
    %v2643 = vadd.f32 %v2642, 1.1283791
    %v2644 = vmul.f32 %v2451, %v2643
    %v2645 = vmul.f32 %v2633, 3.8918573e-05
    %v2646 = vadd.f32 %v2645, 0.001143296
    %v2647 = vmul.f32 %v2633, %v2646
    %v2648 = vadd.f32 %v2647, 0.014752088
    %v2649 = vmul.f32 %v2633, %v2648
    %v2650 = vadd.f32 %v2649, 0.112945676
    %v2651 = vmul.f32 %v2633, %v2650
    %v2652 = vadd.f32 %v2651, 0.4994258
    %v2653 = vmul.f32 %v2633, %v2652
    %v2654 = vadd.f32 %v2653, 1.0
    %v2655 = vrcp.pop %v2654
    %v2656 = vmul.f32 %v2654, %v2655
    %v2657 = vsub.f32 1.0, %v2656
    %v2658 = vmul.f32 %v2655, %v2657
    %v2659 = vadd.f32 %v2655, %v2658
    %vm2660 = vweird.f32 %v2654
    %vm2661 = vweird.f32 %v2655
    %vm2662 = vmor %vm2660, %vm2661
    %v2663 = vsel %vm2662, %v2655, %v2659
    %v2664 = vand.u32 2147483647, %v2654
    %vm2665 = vcmp.eq.f32.partialorder %v2664, 8.507059e+37
    %v2666 = vand.u32 %v2654, 2147483648
    %v2667 = vor.u32 1.1754944e-38, %v2666
    %v2668 = vsel %vm2665, %v2667, %v2663
    %v2669 = vmul.f32 %v2644, %v2668
    %v2670 = vmin.f32 %v2669, 1.0
    %v2671 = vmax.f32 %v2670, -1.0
    %v2672 = vmul.f32 %v2452, %v2452
    %v2673 = vmin.f32 16.0, %v2672
    %v2674 = vmul.f32 %v2673, 2.1237322e-06
    %v2675 = vadd.f32 %v2674, 0.00028619796
    %v2676 = vmul.f32 %v2673, %v2675
    %v2677 = vadd.f32 %v2676, 0.0036580483
    %v2678 = vmul.f32 %v2673, %v2677
    %v2679 = vadd.f32 %v2678, 0.05243302
    %v2680 = vmul.f32 %v2673, %v2679
    %v2681 = vadd.f32 %v2680, 0.18741608
    %v2682 = vmul.f32 %v2673, %v2681
    %v2683 = vadd.f32 %v2682, 1.1283791
    %v2684 = vmul.f32 %v2452, %v2683
    %v2685 = vmul.f32 %v2673, 3.8918573e-05
    %v2686 = vadd.f32 %v2685, 0.001143296
    %v2687 = vmul.f32 %v2673, %v2686
    %v2688 = vadd.f32 %v2687, 0.014752088
    %v2689 = vmul.f32 %v2673, %v2688
    %v2690 = vadd.f32 %v2689, 0.112945676
    %v2691 = vmul.f32 %v2673, %v2690
    %v2692 = vadd.f32 %v2691, 0.4994258
    %v2693 = vmul.f32 %v2673, %v2692
    %v2694 = vadd.f32 %v2693, 1.0
    %v2695 = vrcp.pop %v2694
    %v2696 = vmul.f32 %v2694, %v2695
    %v2697 = vsub.f32 1.0, %v2696
    %v2698 = vmul.f32 %v2695, %v2697
    %v2699 = vadd.f32 %v2695, %v2698
    %vm2700 = vweird.f32 %v2694
    %vm2701 = vweird.f32 %v2695
    %vm2702 = vmor %vm2700, %vm2701
    %v2703 = vsel %vm2702, %v2695, %v2699
    %v2704 = vand.u32 2147483647, %v2694
    %vm2705 = vcmp.eq.f32.partialorder %v2704, 8.507059e+37
    %v2706 = vand.u32 %v2694, 2147483648
    %v2707 = vor.u32 1.1754944e-38, %v2706
    %v2708 = vsel %vm2705, %v2707, %v2703
    %v2709 = vmul.f32 %v2684, %v2708
    %v2710 = vmin.f32 %v2709, 1.0
    %v2711 = vmax.f32 %v2710, -1.0
    %v2712 = vmul.f32 %v2453, %v2453
    %v2713 = vmin.f32 16.0, %v2712
    %v2714 = vmul.f32 %v2713, 2.1237322e-06
    %v2715 = vadd.f32 %v2714, 0.00028619796
    %v2716 = vmul.f32 %v2713, %v2715
    %v2717 = vadd.f32 %v2716, 0.0036580483
    %v2718 = vmul.f32 %v2713, %v2717
    %v2719 = vadd.f32 %v2718, 0.05243302
    %v2720 = vmul.f32 %v2713, %v2719
    %v2721 = vadd.f32 %v2720, 0.18741608
    %v2722 = vmul.f32 %v2713, %v2721
    %v2723 = vadd.f32 %v2722, 1.1283791
    %v2724 = vmul.f32 %v2453, %v2723
    %v2725 = vmul.f32 %v2713, 3.8918573e-05
    %v2726 = vadd.f32 %v2725, 0.001143296
    %v2727 = vmul.f32 %v2713, %v2726
    %v2728 = vadd.f32 %v2727, 0.014752088
    %v2729 = vmul.f32 %v2713, %v2728
    %v2730 = vadd.f32 %v2729, 0.112945676
    %v2731 = vmul.f32 %v2713, %v2730
    %v2732 = vadd.f32 %v2731, 0.4994258
    %v2733 = vmul.f32 %v2713, %v2732
    %v2734 = vadd.f32 %v2733, 1.0
    %v2735 = vrcp.pop %v2734
    %v2736 = vmul.f32 %v2734, %v2735
    %v2737 = vsub.f32 1.0, %v2736
    %v2738 = vmul.f32 %v2735, %v2737
    %v2739 = vadd.f32 %v2735, %v2738
    %vm2740 = vweird.f32 %v2734
    %vm2741 = vweird.f32 %v2735
    %vm2742 = vmor %vm2740, %vm2741
    %v2743 = vsel %vm2742, %v2735, %v2739
    %v2744 = vand.u32 2147483647, %v2734
    %vm2745 = vcmp.eq.f32.partialorder %v2744, 8.507059e+37
    %v2746 = vand.u32 %v2734, 2147483648
    %v2747 = vor.u32 1.1754944e-38, %v2746
    %v2748 = vsel %vm2745, %v2747, %v2743
    %v2749 = vmul.f32 %v2724, %v2748
    %v2750 = vmin.f32 %v2749, 1.0
    %v2751 = vmax.f32 %v2750, -1.0
    %v2752 = vmul.f32 %v2454, %v2454
    %v2753 = vmin.f32 16.0, %v2752
    %v2754 = vmul.f32 %v2753, 2.1237322e-06
    %v2755 = vadd.f32 %v2754, 0.00028619796
    %v2756 = vmul.f32 %v2753, %v2755
    %v2757 = vadd.f32 %v2756, 0.0036580483
    %v2758 = vmul.f32 %v2753, %v2757
    %v2759 = vadd.f32 %v2758, 0.05243302
    %v2760 = vmul.f32 %v2753, %v2759
    %v2761 = vadd.f32 %v2760, 0.18741608
    %v2762 = vmul.f32 %v2753, %v2761
    %v2763 = vadd.f32 %v2762, 1.1283791
    %v2764 = vmul.f32 %v2454, %v2763
    %v2765 = vmul.f32 %v2753, 3.8918573e-05
    %v2766 = vadd.f32 %v2765, 0.001143296
    %v2767 = vmul.f32 %v2753, %v2766
    %v2768 = vadd.f32 %v2767, 0.014752088
    %v2769 = vmul.f32 %v2753, %v2768
    %v2770 = vadd.f32 %v2769, 0.112945676
    %v2771 = vmul.f32 %v2753, %v2770
    %v2772 = vadd.f32 %v2771, 0.4994258
    %v2773 = vmul.f32 %v2753, %v2772
    %v2774 = vadd.f32 %v2773, 1.0
    %v2775 = vrcp.pop %v2774
    %v2776 = vmul.f32 %v2774, %v2775
    %v2777 = vsub.f32 1.0, %v2776
    %v2778 = vmul.f32 %v2775, %v2777
    %v2779 = vadd.f32 %v2775, %v2778
    %vm2780 = vweird.f32 %v2774
    %vm2781 = vweird.f32 %v2775
    %vm2782 = vmor %vm2780, %vm2781
    %v2783 = vsel %vm2782, %v2775, %v2779
    %v2784 = vand.u32 2147483647, %v2774
    %vm2785 = vcmp.eq.f32.partialorder %v2784, 8.507059e+37
    %v2786 = vand.u32 %v2774, 2147483648
    %v2787 = vor.u32 1.1754944e-38, %v2786
    %v2788 = vsel %vm2785, %v2787, %v2783
    %v2789 = vmul.f32 %v2764, %v2788
    %v2790 = vmin.f32 %v2789, 1.0
    %v2791 = vmax.f32 %v2790, -1.0
    %v2792 = vmul.f32 %v2455, %v2455
    %v2793 = vmin.f32 16.0, %v2792
    %v2794 = vmul.f32 %v2793, 2.1237322e-06
    %v2795 = vadd.f32 %v2794, 0.00028619796
    %v2796 = vmul.f32 %v2793, %v2795
    %v2797 = vadd.f32 %v2796, 0.0036580483
    %v2798 = vmul.f32 %v2793, %v2797
    %v2799 = vadd.f32 %v2798, 0.05243302
    %v2800 = vmul.f32 %v2793, %v2799
    %v2801 = vadd.f32 %v2800, 0.18741608
    %v2802 = vmul.f32 %v2793, %v2801
    %v2803 = vadd.f32 %v2802, 1.1283791
    %v2804 = vmul.f32 %v2455, %v2803
    %v2805 = vmul.f32 %v2793, 3.8918573e-05
    %v2806 = vadd.f32 %v2805, 0.001143296
    %v2807 = vmul.f32 %v2793, %v2806
    %v2808 = vadd.f32 %v2807, 0.014752088
    %v2809 = vmul.f32 %v2793, %v2808
    %v2810 = vadd.f32 %v2809, 0.112945676
    %v2811 = vmul.f32 %v2793, %v2810
    %v2812 = vadd.f32 %v2811, 0.4994258
    %v2813 = vmul.f32 %v2793, %v2812
    %v2814 = vadd.f32 %v2813, 1.0
    %v2815 = vrcp.pop %v2814
    %v2816 = vmul.f32 %v2814, %v2815
    %v2817 = vsub.f32 1.0, %v2816
    %v2818 = vmul.f32 %v2815, %v2817
    %v2819 = vadd.f32 %v2815, %v2818
    %vm2820 = vweird.f32 %v2814
    %vm2821 = vweird.f32 %v2815
    %vm2822 = vmor %vm2820, %vm2821
    %v2823 = vsel %vm2822, %v2815, %v2819
    %v2824 = vand.u32 2147483647, %v2814
    %vm2825 = vcmp.eq.f32.partialorder %v2824, 8.507059e+37
    %v2826 = vand.u32 %v2814, 2147483648
    %v2827 = vor.u32 1.1754944e-38, %v2826
    %v2828 = vsel %vm2825, %v2827, %v2823
    %v2829 = vmul.f32 %v2804, %v2828
    %v2830 = vmin.f32 %v2829, 1.0
    %v2831 = vmax.f32 %v2830, -1.0
    %v2832 = vmul.f32 %v2456, %v2456
    %v2833 = vmin.f32 16.0, %v2832
    %v2834 = vmul.f32 %v2833, 2.1237322e-06
    %v2835 = vadd.f32 %v2834, 0.00028619796
    %v2836 = vmul.f32 %v2833, %v2835
    %v2837 = vadd.f32 %v2836, 0.0036580483
    %v2838 = vmul.f32 %v2833, %v2837
    %v2839 = vadd.f32 %v2838, 0.05243302
    %v2840 = vmul.f32 %v2833, %v2839
    %v2841 = vadd.f32 %v2840, 0.18741608
    %v2842 = vmul.f32 %v2833, %v2841
    %v2843 = vadd.f32 %v2842, 1.1283791
    %v2844 = vmul.f32 %v2456, %v2843
    %v2845 = vmul.f32 %v2833, 3.8918573e-05
    %v2846 = vadd.f32 %v2845, 0.001143296
    %v2847 = vmul.f32 %v2833, %v2846
    %v2848 = vadd.f32 %v2847, 0.014752088
    %v2849 = vmul.f32 %v2833, %v2848
    %v2850 = vadd.f32 %v2849, 0.112945676
    %v2851 = vmul.f32 %v2833, %v2850
    %v2852 = vadd.f32 %v2851, 0.4994258
    %v2853 = vmul.f32 %v2833, %v2852
    %v2854 = vadd.f32 %v2853, 1.0
    %v2855 = vrcp.pop %v2854
    %v2856 = vmul.f32 %v2854, %v2855
    %v2857 = vsub.f32 1.0, %v2856
    %v2858 = vmul.f32 %v2855, %v2857
    %v2859 = vadd.f32 %v2855, %v2858
    %vm2860 = vweird.f32 %v2854
    %vm2861 = vweird.f32 %v2855
    %vm2862 = vmor %vm2860, %vm2861
    %v2863 = vsel %vm2862, %v2855, %v2859
    %v2864 = vand.u32 2147483647, %v2854
    %vm2865 = vcmp.eq.f32.partialorder %v2864, 8.507059e+37
    %v2866 = vand.u32 %v2854, 2147483648
    %v2867 = vor.u32 1.1754944e-38, %v2866
    %v2868 = vsel %vm2865, %v2867, %v2863
    %v2869 = vmul.f32 %v2844, %v2868
    %v2870 = vmin.f32 %v2869, 1.0
    %v2871 = vmax.f32 %v2870, -1.0
    %v2872 = vmul.f32 %v2457, %v2457
    %v2873 = vmin.f32 16.0, %v2872
    %v2874 = vmul.f32 %v2873, 2.1237322e-06
    %v2875 = vadd.f32 %v2874, 0.00028619796
    %v2876 = vmul.f32 %v2873, %v2875
    %v2877 = vadd.f32 %v2876, 0.0036580483
    %v2878 = vmul.f32 %v2873, %v2877
    %v2879 = vadd.f32 %v2878, 0.05243302
    %v2880 = vmul.f32 %v2873, %v2879
    %v2881 = vadd.f32 %v2880, 0.18741608
    %v2882 = vmul.f32 %v2873, %v2881
    %v2883 = vadd.f32 %v2882, 1.1283791
    %v2884 = vmul.f32 %v2457, %v2883
    %v2885 = vmul.f32 %v2873, 3.8918573e-05
    %v2886 = vadd.f32 %v2885, 0.001143296
    %v2887 = vmul.f32 %v2873, %v2886
    %v2888 = vadd.f32 %v2887, 0.014752088
    %v2889 = vmul.f32 %v2873, %v2888
    %v2890 = vadd.f32 %v2889, 0.112945676
    %v2891 = vmul.f32 %v2873, %v2890
    %v2892 = vadd.f32 %v2891, 0.4994258
    %v2893 = vmul.f32 %v2873, %v2892
    %v2894 = vadd.f32 %v2893, 1.0
    %v2895 = vrcp.pop %v2894
    %v2896 = vmul.f32 %v2894, %v2895
    %v2897 = vsub.f32 1.0, %v2896
    %v2898 = vmul.f32 %v2895, %v2897
    %v2899 = vadd.f32 %v2895, %v2898
    %vm2900 = vweird.f32 %v2894
    %vm2901 = vweird.f32 %v2895
    %vm2902 = vmor %vm2900, %vm2901
    %v2903 = vsel %vm2902, %v2895, %v2899
    %v2904 = vand.u32 2147483647, %v2894
    %vm2905 = vcmp.eq.f32.partialorder %v2904, 8.507059e+37
    %v2906 = vand.u32 %v2894, 2147483648
    %v2907 = vor.u32 1.1754944e-38, %v2906
    %v2908 = vsel %vm2905, %v2907, %v2903
    %v2909 = vmul.f32 %v2884, %v2908
    %v2910 = vmin.f32 %v2909, 1.0
    %v2911 = vmax.f32 %v2910, -1.0
    %v2912 = vmul.f32 %v2458, %v2458
    %v2913 = vmin.f32 16.0, %v2912
    %v2914 = vmul.f32 %v2913, 2.1237322e-06
    %v2915 = vadd.f32 %v2914, 0.00028619796
    %v2916 = vmul.f32 %v2913, %v2915
    %v2917 = vadd.f32 %v2916, 0.0036580483
    %v2918 = vmul.f32 %v2913, %v2917
    %v2919 = vadd.f32 %v2918, 0.05243302
    %v2920 = vmul.f32 %v2913, %v2919
    %v2921 = vadd.f32 %v2920, 0.18741608
    %v2922 = vmul.f32 %v2913, %v2921
    %v2923 = vadd.f32 %v2922, 1.1283791
    %v2924 = vmul.f32 %v2458, %v2923
    %v2925 = vmul.f32 %v2913, 3.8918573e-05
    %v2926 = vadd.f32 %v2925, 0.001143296
    %v2927 = vmul.f32 %v2913, %v2926
    %v2928 = vadd.f32 %v2927, 0.014752088
    %v2929 = vmul.f32 %v2913, %v2928
    %v2930 = vadd.f32 %v2929, 0.112945676
    %v2931 = vmul.f32 %v2913, %v2930
    %v2932 = vadd.f32 %v2931, 0.4994258
    %v2933 = vmul.f32 %v2913, %v2932
    %v2934 = vadd.f32 %v2933, 1.0
    %v2935 = vrcp.pop %v2934
    %v2936 = vmul.f32 %v2934, %v2935
    %v2937 = vsub.f32 1.0, %v2936
    %v2938 = vmul.f32 %v2935, %v2937
    %v2939 = vadd.f32 %v2935, %v2938
    %vm2940 = vweird.f32 %v2934
    %vm2941 = vweird.f32 %v2935
    %vm2942 = vmor %vm2940, %vm2941
    %v2943 = vsel %vm2942, %v2935, %v2939
    %v2944 = vand.u32 2147483647, %v2934
    %vm2945 = vcmp.eq.f32.partialorder %v2944, 8.507059e+37
    %v2946 = vand.u32 %v2934, 2147483648
    %v2947 = vor.u32 1.1754944e-38, %v2946
    %v2948 = vsel %vm2945, %v2947, %v2943
    %v2949 = vmul.f32 %v2924, %v2948
    %v2950 = vmin.f32 %v2949, 1.0
    %v2951 = vmax.f32 %v2950, -1.0
    %v2952 = vmul.f32 %v2459, %v2459
    %v2953 = vmin.f32 16.0, %v2952
    %v2954 = vmul.f32 %v2953, 2.1237322e-06
    %v2955 = vadd.f32 %v2954, 0.00028619796
    %v2956 = vmul.f32 %v2953, %v2955
    %v2957 = vadd.f32 %v2956, 0.0036580483
    %v2958 = vmul.f32 %v2953, %v2957
    %v2959 = vadd.f32 %v2958, 0.05243302
    %v2960 = vmul.f32 %v2953, %v2959
    %v2961 = vadd.f32 %v2960, 0.18741608
    %v2962 = vmul.f32 %v2953, %v2961
    %v2963 = vadd.f32 %v2962, 1.1283791
    %v2964 = vmul.f32 %v2459, %v2963
    %v2965 = vmul.f32 %v2953, 3.8918573e-05
    %v2966 = vadd.f32 %v2965, 0.001143296
    %v2967 = vmul.f32 %v2953, %v2966
    %v2968 = vadd.f32 %v2967, 0.014752088
    %v2969 = vmul.f32 %v2953, %v2968
    %v2970 = vadd.f32 %v2969, 0.112945676
    %v2971 = vmul.f32 %v2953, %v2970
    %v2972 = vadd.f32 %v2971, 0.4994258
    %v2973 = vmul.f32 %v2953, %v2972
    %v2974 = vadd.f32 %v2973, 1.0
    %v2975 = vrcp.pop %v2974
    %v2976 = vmul.f32 %v2974, %v2975
    %v2977 = vsub.f32 1.0, %v2976
    %v2978 = vmul.f32 %v2975, %v2977
    %v2979 = vadd.f32 %v2975, %v2978
    %vm2980 = vweird.f32 %v2974
    %vm2981 = vweird.f32 %v2975
    %vm2982 = vmor %vm2980, %vm2981
    %v2983 = vsel %vm2982, %v2975, %v2979
    %v2984 = vand.u32 2147483647, %v2974
    %vm2985 = vcmp.eq.f32.partialorder %v2984, 8.507059e+37
    %v2986 = vand.u32 %v2974, 2147483648
    %v2987 = vor.u32 1.1754944e-38, %v2986
    %v2988 = vsel %vm2985, %v2987, %v2983
    %v2989 = vmul.f32 %v2964, %v2988
    %v2990 = vmin.f32 %v2989, 1.0
    %v2991 = vmax.f32 %v2990, -1.0
    %v2992 = vmul.f32 %v2460, %v2460
    %v2993 = vmin.f32 16.0, %v2992
    %v2994 = vmul.f32 %v2993, 2.1237322e-06
    %v2995 = vadd.f32 %v2994, 0.00028619796
    %v2996 = vmul.f32 %v2993, %v2995
    %v2997 = vadd.f32 %v2996, 0.0036580483
    %v2998 = vmul.f32 %v2993, %v2997
    %v2999 = vadd.f32 %v2998, 0.05243302
    %v3000 = vmul.f32 %v2993, %v2999
    %v3001 = vadd.f32 %v3000, 0.18741608
    %v3002 = vmul.f32 %v2993, %v3001
    %v3003 = vadd.f32 %v3002, 1.1283791
    %v3004 = vmul.f32 %v2460, %v3003
    %v3005 = vmul.f32 %v2993, 3.8918573e-05
    %v3006 = vadd.f32 %v3005, 0.001143296
    %v3007 = vmul.f32 %v2993, %v3006
    %v3008 = vadd.f32 %v3007, 0.014752088
    %v3009 = vmul.f32 %v2993, %v3008
    %v3010 = vadd.f32 %v3009, 0.112945676
    %v3011 = vmul.f32 %v2993, %v3010
    %v3012 = vadd.f32 %v3011, 0.4994258
    %v3013 = vmul.f32 %v2993, %v3012
    %v3014 = vadd.f32 %v3013, 1.0
    %v3015 = vrcp.pop %v3014
    %v3016 = vmul.f32 %v3014, %v3015
    %v3017 = vsub.f32 1.0, %v3016
    %v3018 = vmul.f32 %v3015, %v3017
    %v3019 = vadd.f32 %v3015, %v3018
    %vm3020 = vweird.f32 %v3014
    %vm3021 = vweird.f32 %v3015
    %vm3022 = vmor %vm3020, %vm3021
    %v3023 = vsel %vm3022, %v3015, %v3019
    %v3024 = vand.u32 2147483647, %v3014
    %vm3025 = vcmp.eq.f32.partialorder %v3024, 8.507059e+37
    %v3026 = vand.u32 %v3014, 2147483648
    %v3027 = vor.u32 1.1754944e-38, %v3026
    %v3028 = vsel %vm3025, %v3027, %v3023
    %v3029 = vmul.f32 %v3004, %v3028
    %v3030 = vmin.f32 %v3029, 1.0
    %v3031 = vmax.f32 %v3030, -1.0
    %v3032 = vmul.f32 %v2461, %v2461
    %v3033 = vmin.f32 16.0, %v3032
    %v3034 = vmul.f32 %v3033, 2.1237322e-06
    %v3035 = vadd.f32 %v3034, 0.00028619796
    %v3036 = vmul.f32 %v3033, %v3035
    %v3037 = vadd.f32 %v3036, 0.0036580483
    %v3038 = vmul.f32 %v3033, %v3037
    %v3039 = vadd.f32 %v3038, 0.05243302
    %v3040 = vmul.f32 %v3033, %v3039
    %v3041 = vadd.f32 %v3040, 0.18741608
    %v3042 = vmul.f32 %v3033, %v3041
    %v3043 = vadd.f32 %v3042, 1.1283791
    %v3044 = vmul.f32 %v2461, %v3043
    %v3045 = vmul.f32 %v3033, 3.8918573e-05
    %v3046 = vadd.f32 %v3045, 0.001143296
    %v3047 = vmul.f32 %v3033, %v3046
    %v3048 = vadd.f32 %v3047, 0.014752088
    %v3049 = vmul.f32 %v3033, %v3048
    %v3050 = vadd.f32 %v3049, 0.112945676
    %v3051 = vmul.f32 %v3033, %v3050
    %v3052 = vadd.f32 %v3051, 0.4994258
    %v3053 = vmul.f32 %v3033, %v3052
    %v3054 = vadd.f32 %v3053, 1.0
    %v3055 = vrcp.pop %v3054
    %v3056 = vmul.f32 %v3054, %v3055
    %v3057 = vsub.f32 1.0, %v3056
    %v3058 = vmul.f32 %v3055, %v3057
    %v3059 = vadd.f32 %v3055, %v3058
    %vm3060 = vweird.f32 %v3054
    %vm3061 = vweird.f32 %v3055
    %vm3062 = vmor %vm3060, %vm3061
    %v3063 = vsel %vm3062, %v3055, %v3059
    %v3064 = vand.u32 2147483647, %v3054
    %vm3065 = vcmp.eq.f32.partialorder %v3064, 8.507059e+37
    %v3066 = vand.u32 %v3054, 2147483648
    %v3067 = vor.u32 1.1754944e-38, %v3066
    %v3068 = vsel %vm3065, %v3067, %v3063
    %v3069 = vmul.f32 %v3044, %v3068
    %v3070 = vmin.f32 %v3069, 1.0
    %v3071 = vmax.f32 %v3070, -1.0
    %v3072 = vmul.f32 %v2462, %v2462
    %v3073 = vmin.f32 16.0, %v3072
    %v3074 = vmul.f32 %v3073, 2.1237322e-06
    %v3075 = vadd.f32 %v3074, 0.00028619796
    %v3076 = vmul.f32 %v3073, %v3075
    %v3077 = vadd.f32 %v3076, 0.0036580483
    %v3078 = vmul.f32 %v3073, %v3077
    %v3079 = vadd.f32 %v3078, 0.05243302
    %v3080 = vmul.f32 %v3073, %v3079
    %v3081 = vadd.f32 %v3080, 0.18741608
    %v3082 = vmul.f32 %v3073, %v3081
    %v3083 = vadd.f32 %v3082, 1.1283791
    %v3084 = vmul.f32 %v2462, %v3083
    %v3085 = vmul.f32 %v3073, 3.8918573e-05
    %v3086 = vadd.f32 %v3085, 0.001143296
    %v3087 = vmul.f32 %v3073, %v3086
    %v3088 = vadd.f32 %v3087, 0.014752088
    %v3089 = vmul.f32 %v3073, %v3088
    %v3090 = vadd.f32 %v3089, 0.112945676
    %v3091 = vmul.f32 %v3073, %v3090
    %v3092 = vadd.f32 %v3091, 0.4994258
    %v3093 = vmul.f32 %v3073, %v3092
    %v3094 = vadd.f32 %v3093, 1.0
    %v3095 = vrcp.pop %v3094
    %v3096 = vmul.f32 %v3094, %v3095
    %v3097 = vsub.f32 1.0, %v3096
    %v3098 = vmul.f32 %v3095, %v3097
    %v3099 = vadd.f32 %v3095, %v3098
    %vm3100 = vweird.f32 %v3094
    %vm3101 = vweird.f32 %v3095
    %vm3102 = vmor %vm3100, %vm3101
    %v3103 = vsel %vm3102, %v3095, %v3099
    %v3104 = vand.u32 2147483647, %v3094
    %vm3105 = vcmp.eq.f32.partialorder %v3104, 8.507059e+37
    %v3106 = vand.u32 %v3094, 2147483648
    %v3107 = vor.u32 1.1754944e-38, %v3106
    %v3108 = vsel %vm3105, %v3107, %v3103
    %v3109 = vmul.f32 %v3084, %v3108
    %v3110 = vmin.f32 %v3109, 1.0
    %v3111 = vmax.f32 %v3110, -1.0
    %v3112 = vmul.f32 %v2463, %v2463
    %v3113 = vmin.f32 16.0, %v3112
    %v3114 = vmul.f32 %v3113, 2.1237322e-06
    %v3115 = vadd.f32 %v3114, 0.00028619796
    %v3116 = vmul.f32 %v3113, %v3115
    %v3117 = vadd.f32 %v3116, 0.0036580483
    %v3118 = vmul.f32 %v3113, %v3117
    %v3119 = vadd.f32 %v3118, 0.05243302
    %v3120 = vmul.f32 %v3113, %v3119
    %v3121 = vadd.f32 %v3120, 0.18741608
    %v3122 = vmul.f32 %v3113, %v3121
    %v3123 = vadd.f32 %v3122, 1.1283791
    %v3124 = vmul.f32 %v2463, %v3123
    %v3125 = vmul.f32 %v3113, 3.8918573e-05
    %v3126 = vadd.f32 %v3125, 0.001143296
    %v3127 = vmul.f32 %v3113, %v3126
    %v3128 = vadd.f32 %v3127, 0.014752088
    %v3129 = vmul.f32 %v3113, %v3128
    %v3130 = vadd.f32 %v3129, 0.112945676
    %v3131 = vmul.f32 %v3113, %v3130
    %v3132 = vadd.f32 %v3131, 0.4994258
    %v3133 = vmul.f32 %v3113, %v3132
    %v3134 = vadd.f32 %v3133, 1.0
    %v3135 = vrcp.pop %v3134
    %v3136 = vmul.f32 %v3134, %v3135
    %v3137 = vsub.f32 1.0, %v3136
    %v3138 = vmul.f32 %v3135, %v3137
    %v3139 = vadd.f32 %v3135, %v3138
    %vm3140 = vweird.f32 %v3134
    %vm3141 = vweird.f32 %v3135
    %vm3142 = vmor %vm3140, %vm3141
    %v3143 = vsel %vm3142, %v3135, %v3139
    %v3144 = vand.u32 2147483647, %v3134
    %vm3145 = vcmp.eq.f32.partialorder %v3144, 8.507059e+37
    %v3146 = vand.u32 %v3134, 2147483648
    %v3147 = vor.u32 1.1754944e-38, %v3146
    %v3148 = vsel %vm3145, %v3147, %v3143
    %v3149 = vmul.f32 %v3124, %v3148
    %v3150 = vmin.f32 %v3149, 1.0
    %v3151 = vmax.f32 %v3150, -1.0
    %v3152 = vmul.f32 %v2464, %v2464
    %v3153 = vmin.f32 16.0, %v3152
    %v3154 = vmul.f32 %v3153, 2.1237322e-06
    %v3155 = vadd.f32 %v3154, 0.00028619796
    %v3156 = vmul.f32 %v3153, %v3155
    %v3157 = vadd.f32 %v3156, 0.0036580483
    %v3158 = vmul.f32 %v3153, %v3157
    %v3159 = vadd.f32 %v3158, 0.05243302
    %v3160 = vmul.f32 %v3153, %v3159
    %v3161 = vadd.f32 %v3160, 0.18741608
    %v3162 = vmul.f32 %v3153, %v3161
    %v3163 = vadd.f32 %v3162, 1.1283791
    %v3164 = vmul.f32 %v2464, %v3163
    %v3165 = vmul.f32 %v3153, 3.8918573e-05
    %v3166 = vadd.f32 %v3165, 0.001143296
    %v3167 = vmul.f32 %v3153, %v3166
    %v3168 = vadd.f32 %v3167, 0.014752088
    %v3169 = vmul.f32 %v3153, %v3168
    %v3170 = vadd.f32 %v3169, 0.112945676
    %v3171 = vmul.f32 %v3153, %v3170
    %v3172 = vadd.f32 %v3171, 0.4994258
    %v3173 = vmul.f32 %v3153, %v3172
    %v3174 = vadd.f32 %v3173, 1.0
    %v3175 = vrcp.pop %v3174
    %v3176 = vmul.f32 %v3174, %v3175
    %v3177 = vsub.f32 1.0, %v3176
    %v3178 = vmul.f32 %v3175, %v3177
    %v3179 = vadd.f32 %v3175, %v3178
    %vm3180 = vweird.f32 %v3174
    %vm3181 = vweird.f32 %v3175
    %vm3182 = vmor %vm3180, %vm3181
    %v3183 = vsel %vm3182, %v3175, %v3179
    %v3184 = vand.u32 2147483647, %v3174
    %vm3185 = vcmp.eq.f32.partialorder %v3184, 8.507059e+37
    %v3186 = vand.u32 %v3174, 2147483648
    %v3187 = vor.u32 1.1754944e-38, %v3186
    %v3188 = vsel %vm3185, %v3187, %v3183
    %v3189 = vmul.f32 %v3164, %v3188
    %v3190 = vmin.f32 %v3189, 1.0
    %v3191 = vmax.f32 %v3190, -1.0
    %v3192 = vmul.f32 %v2465, %v2465
    %v3193 = vmin.f32 16.0, %v3192
    %v3194 = vmul.f32 %v3193, 2.1237322e-06
    %v3195 = vadd.f32 %v3194, 0.00028619796
    %v3196 = vmul.f32 %v3193, %v3195
    %v3197 = vadd.f32 %v3196, 0.0036580483
    %v3198 = vmul.f32 %v3193, %v3197
    %v3199 = vadd.f32 %v3198, 0.05243302
    %v3200 = vmul.f32 %v3193, %v3199
    %v3201 = vadd.f32 %v3200, 0.18741608
    %v3202 = vmul.f32 %v3193, %v3201
    %v3203 = vadd.f32 %v3202, 1.1283791
    %v3204 = vmul.f32 %v2465, %v3203
    %v3205 = vmul.f32 %v3193, 3.8918573e-05
    %v3206 = vadd.f32 %v3205, 0.001143296
    %v3207 = vmul.f32 %v3193, %v3206
    %v3208 = vadd.f32 %v3207, 0.014752088
    %v3209 = vmul.f32 %v3193, %v3208
    %v3210 = vadd.f32 %v3209, 0.112945676
    %v3211 = vmul.f32 %v3193, %v3210
    %v3212 = vadd.f32 %v3211, 0.4994258
    %v3213 = vmul.f32 %v3193, %v3212
    %v3214 = vadd.f32 %v3213, 1.0
    %v3215 = vrcp.pop %v3214
    %v3216 = vmul.f32 %v3214, %v3215
    %v3217 = vsub.f32 1.0, %v3216
    %v3218 = vmul.f32 %v3215, %v3217
    %v3219 = vadd.f32 %v3215, %v3218
    %vm3220 = vweird.f32 %v3214
    %vm3221 = vweird.f32 %v3215
    %vm3222 = vmor %vm3220, %vm3221
    %v3223 = vsel %vm3222, %v3215, %v3219
    %v3224 = vand.u32 2147483647, %v3214
    %vm3225 = vcmp.eq.f32.partialorder %v3224, 8.507059e+37
    %v3226 = vand.u32 %v3214, 2147483648
    %v3227 = vor.u32 1.1754944e-38, %v3226
    %v3228 = vsel %vm3225, %v3227, %v3223
    %v3229 = vmul.f32 %v3204, %v3228
    %v3230 = vmin.f32 %v3229, 1.0
    %v3231 = vmax.f32 %v3230, -1.0
    %v3232 = vmul.f32 %v2466, %v2466
    %v3233 = vmin.f32 16.0, %v3232
    %v3234 = vmul.f32 %v3233, 2.1237322e-06
    %v3235 = vadd.f32 %v3234, 0.00028619796
    %v3236 = vmul.f32 %v3233, %v3235
    %v3237 = vadd.f32 %v3236, 0.0036580483
    %v3238 = vmul.f32 %v3233, %v3237
    %v3239 = vadd.f32 %v3238, 0.05243302
    %v3240 = vmul.f32 %v3233, %v3239
    %v3241 = vadd.f32 %v3240, 0.18741608
    %v3242 = vmul.f32 %v3233, %v3241
    %v3243 = vadd.f32 %v3242, 1.1283791
    %v3244 = vmul.f32 %v2466, %v3243
    %v3245 = vmul.f32 %v3233, 3.8918573e-05
    %v3246 = vadd.f32 %v3245, 0.001143296
    %v3247 = vmul.f32 %v3233, %v3246
    %v3248 = vadd.f32 %v3247, 0.014752088
    %v3249 = vmul.f32 %v3233, %v3248
    %v3250 = vadd.f32 %v3249, 0.112945676
    %v3251 = vmul.f32 %v3233, %v3250
    %v3252 = vadd.f32 %v3251, 0.4994258
    %v3253 = vmul.f32 %v3233, %v3252
    %v3254 = vadd.f32 %v3253, 1.0
    %v3255 = vrcp.pop %v3254
    %v3256 = vmul.f32 %v3254, %v3255
    %v3257 = vsub.f32 1.0, %v3256
    %v3258 = vmul.f32 %v3255, %v3257
    %v3259 = vadd.f32 %v3255, %v3258
    %vm3260 = vweird.f32 %v3254
    %vm3261 = vweird.f32 %v3255
    %vm3262 = vmor %vm3260, %vm3261
    %v3263 = vsel %vm3262, %v3255, %v3259
    %v3264 = vand.u32 2147483647, %v3254
    %vm3265 = vcmp.eq.f32.partialorder %v3264, 8.507059e+37
    %v3266 = vand.u32 %v3254, 2147483648
    %v3267 = vor.u32 1.1754944e-38, %v3266
    %v3268 = vsel %vm3265, %v3267, %v3263
    %v3269 = vmul.f32 %v3244, %v3268
    %v3270 = vmin.f32 %v3269, 1.0
    %v3271 = vmax.f32 %v3270, -1.0
    %v3272 = vmul.f32 %v2467, %v2467
    %v3273 = vmin.f32 16.0, %v3272
    %v3274 = vmul.f32 %v3273, 2.1237322e-06
    %v3275 = vadd.f32 %v3274, 0.00028619796
    %v3276 = vmul.f32 %v3273, %v3275
    %v3277 = vadd.f32 %v3276, 0.0036580483
    %v3278 = vmul.f32 %v3273, %v3277
    %v3279 = vadd.f32 %v3278, 0.05243302
    %v3280 = vmul.f32 %v3273, %v3279
    %v3281 = vadd.f32 %v3280, 0.18741608
    %v3282 = vmul.f32 %v3273, %v3281
    %v3283 = vadd.f32 %v3282, 1.1283791
    %v3284 = vmul.f32 %v2467, %v3283
    %v3285 = vmul.f32 %v3273, 3.8918573e-05
    %v3286 = vadd.f32 %v3285, 0.001143296
    %v3287 = vmul.f32 %v3273, %v3286
    %v3288 = vadd.f32 %v3287, 0.014752088
    %v3289 = vmul.f32 %v3273, %v3288
    %v3290 = vadd.f32 %v3289, 0.112945676
    %v3291 = vmul.f32 %v3273, %v3290
    %v3292 = vadd.f32 %v3291, 0.4994258
    %v3293 = vmul.f32 %v3273, %v3292
    %v3294 = vadd.f32 %v3293, 1.0
    %v3295 = vrcp.pop %v3294
    %v3296 = vmul.f32 %v3294, %v3295
    %v3297 = vsub.f32 1.0, %v3296
    %v3298 = vmul.f32 %v3295, %v3297
    %v3299 = vadd.f32 %v3295, %v3298
    %vm3300 = vweird.f32 %v3294
    %vm3301 = vweird.f32 %v3295
    %vm3302 = vmor %vm3300, %vm3301
    %v3303 = vsel %vm3302, %v3295, %v3299
    %v3304 = vand.u32 2147483647, %v3294
    %vm3305 = vcmp.eq.f32.partialorder %v3304, 8.507059e+37
    %v3306 = vand.u32 %v3294, 2147483648
    %v3307 = vor.u32 1.1754944e-38, %v3306
    %v3308 = vsel %vm3305, %v3307, %v3303
    %v3309 = vmul.f32 %v3284, %v3308
    %v3310 = vmin.f32 %v3309, 1.0
    %v3311 = vmax.f32 %v3310, -1.0
    %v3312 = vmul.f32 %v2468, %v2468
    %v3313 = vmin.f32 16.0, %v3312
    %v3314 = vmul.f32 %v3313, 2.1237322e-06
    %v3315 = vadd.f32 %v3314, 0.00028619796
    %v3316 = vmul.f32 %v3313, %v3315
    %v3317 = vadd.f32 %v3316, 0.0036580483
    %v3318 = vmul.f32 %v3313, %v3317
    %v3319 = vadd.f32 %v3318, 0.05243302
    %v3320 = vmul.f32 %v3313, %v3319
    %v3321 = vadd.f32 %v3320, 0.18741608
    %v3322 = vmul.f32 %v3313, %v3321
    %v3323 = vadd.f32 %v3322, 1.1283791
    %v3324 = vmul.f32 %v2468, %v3323
    %v3325 = vmul.f32 %v3313, 3.8918573e-05
    %v3326 = vadd.f32 %v3325, 0.001143296
    %v3327 = vmul.f32 %v3313, %v3326
    %v3328 = vadd.f32 %v3327, 0.014752088
    %v3329 = vmul.f32 %v3313, %v3328
    %v3330 = vadd.f32 %v3329, 0.112945676
    %v3331 = vmul.f32 %v3313, %v3330
    %v3332 = vadd.f32 %v3331, 0.4994258
    %v3333 = vmul.f32 %v3313, %v3332
    %v3334 = vadd.f32 %v3333, 1.0
    %v3335 = vrcp.pop %v3334
    %v3336 = vmul.f32 %v3334, %v3335
    %v3337 = vsub.f32 1.0, %v3336
    %v3338 = vmul.f32 %v3335, %v3337
    %v3339 = vadd.f32 %v3335, %v3338
    %vm3340 = vweird.f32 %v3334
    %vm3341 = vweird.f32 %v3335
    %vm3342 = vmor %vm3340, %vm3341
    %v3343 = vsel %vm3342, %v3335, %v3339
    %v3344 = vand.u32 2147483647, %v3334
    %vm3345 = vcmp.eq.f32.partialorder %v3344, 8.507059e+37
    %v3346 = vand.u32 %v3334, 2147483648
    %v3347 = vor.u32 1.1754944e-38, %v3346
    %v3348 = vsel %vm3345, %v3347, %v3343
    %v3349 = vmul.f32 %v3324, %v3348
    %v3350 = vmin.f32 %v3349, 1.0
    %v3351 = vmax.f32 %v3350, -1.0
    %v3352 = vmul.f32 %v2469, %v2469
    %v3353 = vmin.f32 16.0, %v3352
    %v3354 = vmul.f32 %v3353, 2.1237322e-06
    %v3355 = vadd.f32 %v3354, 0.00028619796
    %v3356 = vmul.f32 %v3353, %v3355
    %v3357 = vadd.f32 %v3356, 0.0036580483
    %v3358 = vmul.f32 %v3353, %v3357
    %v3359 = vadd.f32 %v3358, 0.05243302
    %v3360 = vmul.f32 %v3353, %v3359
    %v3361 = vadd.f32 %v3360, 0.18741608
    %v3362 = vmul.f32 %v3353, %v3361
    %v3363 = vadd.f32 %v3362, 1.1283791
    %v3364 = vmul.f32 %v2469, %v3363
    %v3365 = vmul.f32 %v3353, 3.8918573e-05
    %v3366 = vadd.f32 %v3365, 0.001143296
    %v3367 = vmul.f32 %v3353, %v3366
    %v3368 = vadd.f32 %v3367, 0.014752088
    %v3369 = vmul.f32 %v3353, %v3368
    %v3370 = vadd.f32 %v3369, 0.112945676
    %v3371 = vmul.f32 %v3353, %v3370
    %v3372 = vadd.f32 %v3371, 0.4994258
    %v3373 = vmul.f32 %v3353, %v3372
    %v3374 = vadd.f32 %v3373, 1.0
    %v3375 = vrcp.pop %v3374
    %v3376 = vmul.f32 %v3374, %v3375
    %v3377 = vsub.f32 1.0, %v3376
    %v3378 = vmul.f32 %v3375, %v3377
    %v3379 = vadd.f32 %v3375, %v3378
    %vm3380 = vweird.f32 %v3374
    %vm3381 = vweird.f32 %v3375
    %vm3382 = vmor %vm3380, %vm3381
    %v3383 = vsel %vm3382, %v3375, %v3379
    %v3384 = vand.u32 2147483647, %v3374
    %vm3385 = vcmp.eq.f32.partialorder %v3384, 8.507059e+37
    %v3386 = vand.u32 %v3374, 2147483648
    %v3387 = vor.u32 1.1754944e-38, %v3386
    %v3388 = vsel %vm3385, %v3387, %v3383
    %v3389 = vmul.f32 %v3364, %v3388
    %v3390 = vmin.f32 %v3389, 1.0
    %v3391 = vmax.f32 %v3390, -1.0
    %v3392 = vmul.f32 %v2470, %v2470
    %v3393 = vmin.f32 16.0, %v3392
    %v3394 = vmul.f32 %v3393, 2.1237322e-06
    %v3395 = vadd.f32 %v3394, 0.00028619796
    %v3396 = vmul.f32 %v3393, %v3395
    %v3397 = vadd.f32 %v3396, 0.0036580483
    %v3398 = vmul.f32 %v3393, %v3397
    %v3399 = vadd.f32 %v3398, 0.05243302
    %v3400 = vmul.f32 %v3393, %v3399
    %v3401 = vadd.f32 %v3400, 0.18741608
    %v3402 = vmul.f32 %v3393, %v3401
    %v3403 = vadd.f32 %v3402, 1.1283791
    %v3404 = vmul.f32 %v2470, %v3403
    %v3405 = vmul.f32 %v3393, 3.8918573e-05
    %v3406 = vadd.f32 %v3405, 0.001143296
    %v3407 = vmul.f32 %v3393, %v3406
    %v3408 = vadd.f32 %v3407, 0.014752088
    %v3409 = vmul.f32 %v3393, %v3408
    %v3410 = vadd.f32 %v3409, 0.112945676
    %v3411 = vmul.f32 %v3393, %v3410
    %v3412 = vadd.f32 %v3411, 0.4994258
    %v3413 = vmul.f32 %v3393, %v3412
    %v3414 = vadd.f32 %v3413, 1.0
    %v3415 = vrcp.pop %v3414
    %v3416 = vmul.f32 %v3414, %v3415
    %v3417 = vsub.f32 1.0, %v3416
    %v3418 = vmul.f32 %v3415, %v3417
    %v3419 = vadd.f32 %v3415, %v3418
    %vm3420 = vweird.f32 %v3414
    %vm3421 = vweird.f32 %v3415
    %vm3422 = vmor %vm3420, %vm3421
    %v3423 = vsel %vm3422, %v3415, %v3419
    %v3424 = vand.u32 2147483647, %v3414
    %vm3425 = vcmp.eq.f32.partialorder %v3424, 8.507059e+37
    %v3426 = vand.u32 %v3414, 2147483648
    %v3427 = vor.u32 1.1754944e-38, %v3426
    %v3428 = vsel %vm3425, %v3427, %v3423
    %v3429 = vmul.f32 %v3404, %v3428
    %v3430 = vmin.f32 %v3429, 1.0
    %v3431 = vmax.f32 %v3430, -1.0
    %v3432 = vmul.f32 %v2471, %v2471
    %v3433 = vmin.f32 16.0, %v3432
    %v3434 = vmul.f32 %v3433, 2.1237322e-06
    %v3435 = vadd.f32 %v3434, 0.00028619796
    %v3436 = vmul.f32 %v3433, %v3435
    %v3437 = vadd.f32 %v3436, 0.0036580483
    %v3438 = vmul.f32 %v3433, %v3437
    %v3439 = vadd.f32 %v3438, 0.05243302
    %v3440 = vmul.f32 %v3433, %v3439
    %v3441 = vadd.f32 %v3440, 0.18741608
    %v3442 = vmul.f32 %v3433, %v3441
    %v3443 = vadd.f32 %v3442, 1.1283791
    %v3444 = vmul.f32 %v2471, %v3443
    %v3445 = vmul.f32 %v3433, 3.8918573e-05
    %v3446 = vadd.f32 %v3445, 0.001143296
    %v3447 = vmul.f32 %v3433, %v3446
    %v3448 = vadd.f32 %v3447, 0.014752088
    %v3449 = vmul.f32 %v3433, %v3448
    %v3450 = vadd.f32 %v3449, 0.112945676
    %v3451 = vmul.f32 %v3433, %v3450
    %v3452 = vadd.f32 %v3451, 0.4994258
    %v3453 = vmul.f32 %v3433, %v3452
    %v3454 = vadd.f32 %v3453, 1.0
    %v3455 = vrcp.pop %v3454
    %v3456 = vmul.f32 %v3454, %v3455
    %v3457 = vsub.f32 1.0, %v3456
    %v3458 = vmul.f32 %v3455, %v3457
    %v3459 = vadd.f32 %v3455, %v3458
    %vm3460 = vweird.f32 %v3454
    %vm3461 = vweird.f32 %v3455
    %vm3462 = vmor %vm3460, %vm3461
    %v3463 = vsel %vm3462, %v3455, %v3459
    %v3464 = vand.u32 2147483647, %v3454
    %vm3465 = vcmp.eq.f32.partialorder %v3464, 8.507059e+37
    %v3466 = vand.u32 %v3454, 2147483648
    %v3467 = vor.u32 1.1754944e-38, %v3466
    %v3468 = vsel %vm3465, %v3467, %v3463
    %v3469 = vmul.f32 %v3444, %v3468
    %v3470 = vmin.f32 %v3469, 1.0
    %v3471 = vmax.f32 %v3470, -1.0
    %v3472 = vmul.f32 %v2472, %v2472
    %v3473 = vmin.f32 16.0, %v3472
    %v3474 = vmul.f32 %v3473, 2.1237322e-06
    %v3475 = vadd.f32 %v3474, 0.00028619796
    %v3476 = vmul.f32 %v3473, %v3475
    %v3477 = vadd.f32 %v3476, 0.0036580483
    %v3478 = vmul.f32 %v3473, %v3477
    %v3479 = vadd.f32 %v3478, 0.05243302
    %v3480 = vmul.f32 %v3473, %v3479
    %v3481 = vadd.f32 %v3480, 0.18741608
    %v3482 = vmul.f32 %v3473, %v3481
    %v3483 = vadd.f32 %v3482, 1.1283791
    %v3484 = vmul.f32 %v2472, %v3483
    %v3485 = vmul.f32 %v3473, 3.8918573e-05
    %v3486 = vadd.f32 %v3485, 0.001143296
    %v3487 = vmul.f32 %v3473, %v3486
    %v3488 = vadd.f32 %v3487, 0.014752088
    %v3489 = vmul.f32 %v3473, %v3488
    %v3490 = vadd.f32 %v3489, 0.112945676
    %v3491 = vmul.f32 %v3473, %v3490
    %v3492 = vadd.f32 %v3491, 0.4994258
    %v3493 = vmul.f32 %v3473, %v3492
    %v3494 = vadd.f32 %v3493, 1.0
    %v3495 = vrcp.pop %v3494
    %v3496 = vmul.f32 %v3494, %v3495
    %v3497 = vsub.f32 1.0, %v3496
    %v3498 = vmul.f32 %v3495, %v3497
    %v3499 = vadd.f32 %v3495, %v3498
    %vm3500 = vweird.f32 %v3494
    %vm3501 = vweird.f32 %v3495
    %vm3502 = vmor %vm3500, %vm3501
    %v3503 = vsel %vm3502, %v3495, %v3499
    %v3504 = vand.u32 2147483647, %v3494
    %vm3505 = vcmp.eq.f32.partialorder %v3504, 8.507059e+37
    %v3506 = vand.u32 %v3494, 2147483648
    %v3507 = vor.u32 1.1754944e-38, %v3506
    %v3508 = vsel %vm3505, %v3507, %v3503
    %v3509 = vmul.f32 %v3484, %v3508
    %v3510 = vmin.f32 %v3509, 1.0
    %v3511 = vmax.f32 %v3510, -1.0
    %v3512 = vmul.f32 %v2473, %v2473
    %v3513 = vmin.f32 16.0, %v3512
    %v3514 = vmul.f32 %v3513, 2.1237322e-06
    %v3515 = vadd.f32 %v3514, 0.00028619796
    %v3516 = vmul.f32 %v3513, %v3515
    %v3517 = vadd.f32 %v3516, 0.0036580483
    %v3518 = vmul.f32 %v3513, %v3517
    %v3519 = vadd.f32 %v3518, 0.05243302
    %v3520 = vmul.f32 %v3513, %v3519
    %v3521 = vadd.f32 %v3520, 0.18741608
    %v3522 = vmul.f32 %v3513, %v3521
    %v3523 = vadd.f32 %v3522, 1.1283791
    %v3524 = vmul.f32 %v2473, %v3523
    %v3525 = vmul.f32 %v3513, 3.8918573e-05
    %v3526 = vadd.f32 %v3525, 0.001143296
    %v3527 = vmul.f32 %v3513, %v3526
    %v3528 = vadd.f32 %v3527, 0.014752088
    %v3529 = vmul.f32 %v3513, %v3528
    %v3530 = vadd.f32 %v3529, 0.112945676
    %v3531 = vmul.f32 %v3513, %v3530
    %v3532 = vadd.f32 %v3531, 0.4994258
    %v3533 = vmul.f32 %v3513, %v3532
    %v3534 = vadd.f32 %v3533, 1.0
    %v3535 = vrcp.pop %v3534
    %v3536 = vmul.f32 %v3534, %v3535
    %v3537 = vsub.f32 1.0, %v3536
    %v3538 = vmul.f32 %v3535, %v3537
    %v3539 = vadd.f32 %v3535, %v3538
    %vm3540 = vweird.f32 %v3534
    %vm3541 = vweird.f32 %v3535
    %vm3542 = vmor %vm3540, %vm3541
    %v3543 = vsel %vm3542, %v3535, %v3539
    %v3544 = vand.u32 2147483647, %v3534
    %vm3545 = vcmp.eq.f32.partialorder %v3544, 8.507059e+37
    %v3546 = vand.u32 %v3534, 2147483648
    %v3547 = vor.u32 1.1754944e-38, %v3546
    %v3548 = vsel %vm3545, %v3547, %v3543
    %v3549 = vmul.f32 %v3524, %v3548
    %v3550 = vmin.f32 %v3549, 1.0
    %v3551 = vmax.f32 %v3550, -1.0
    %v3552 = vmul.f32 %v2474, %v2474
    %v3553 = vmin.f32 16.0, %v3552
    %v3554 = vmul.f32 %v3553, 2.1237322e-06
    %v3555 = vadd.f32 %v3554, 0.00028619796
    %v3556 = vmul.f32 %v3553, %v3555
    %v3557 = vadd.f32 %v3556, 0.0036580483
    %v3558 = vmul.f32 %v3553, %v3557
    %v3559 = vadd.f32 %v3558, 0.05243302
    %v3560 = vmul.f32 %v3553, %v3559
    %v3561 = vadd.f32 %v3560, 0.18741608
    %v3562 = vmul.f32 %v3553, %v3561
    %v3563 = vadd.f32 %v3562, 1.1283791
    %v3564 = vmul.f32 %v2474, %v3563
    %v3565 = vmul.f32 %v3553, 3.8918573e-05
    %v3566 = vadd.f32 %v3565, 0.001143296
    %v3567 = vmul.f32 %v3553, %v3566
    %v3568 = vadd.f32 %v3567, 0.014752088
    %v3569 = vmul.f32 %v3553, %v3568
    %v3570 = vadd.f32 %v3569, 0.112945676
    %v3571 = vmul.f32 %v3553, %v3570
    %v3572 = vadd.f32 %v3571, 0.4994258
    %v3573 = vmul.f32 %v3553, %v3572
    %v3574 = vadd.f32 %v3573, 1.0
    %v3575 = vrcp.pop %v3574
    %v3576 = vmul.f32 %v3574, %v3575
    %v3577 = vsub.f32 1.0, %v3576
    %v3578 = vmul.f32 %v3575, %v3577
    %v3579 = vadd.f32 %v3575, %v3578
    %vm3580 = vweird.f32 %v3574
    %vm3581 = vweird.f32 %v3575
    %vm3582 = vmor %vm3580, %vm3581
    %v3583 = vsel %vm3582, %v3575, %v3579
    %v3584 = vand.u32 2147483647, %v3574
    %vm3585 = vcmp.eq.f32.partialorder %v3584, 8.507059e+37
    %v3586 = vand.u32 %v3574, 2147483648
    %v3587 = vor.u32 1.1754944e-38, %v3586
    %v3588 = vsel %vm3585, %v3587, %v3583
    %v3589 = vmul.f32 %v3564, %v3588
    %v3590 = vmin.f32 %v3589, 1.0
    %v3591 = vmax.f32 %v3590, -1.0
    %v3592 = vmul.f32 %v2475, %v2475
    %v3593 = vmin.f32 16.0, %v3592
    %v3594 = vmul.f32 %v3593, 2.1237322e-06
    %v3595 = vadd.f32 %v3594, 0.00028619796
    %v3596 = vmul.f32 %v3593, %v3595
    %v3597 = vadd.f32 %v3596, 0.0036580483
    %v3598 = vmul.f32 %v3593, %v3597
    %v3599 = vadd.f32 %v3598, 0.05243302
    %v3600 = vmul.f32 %v3593, %v3599
    %v3601 = vadd.f32 %v3600, 0.18741608
    %v3602 = vmul.f32 %v3593, %v3601
    %v3603 = vadd.f32 %v3602, 1.1283791
    %v3604 = vmul.f32 %v2475, %v3603
    %v3605 = vmul.f32 %v3593, 3.8918573e-05
    %v3606 = vadd.f32 %v3605, 0.001143296
    %v3607 = vmul.f32 %v3593, %v3606
    %v3608 = vadd.f32 %v3607, 0.014752088
    %v3609 = vmul.f32 %v3593, %v3608
    %v3610 = vadd.f32 %v3609, 0.112945676
    %v3611 = vmul.f32 %v3593, %v3610
    %v3612 = vadd.f32 %v3611, 0.4994258
    %v3613 = vmul.f32 %v3593, %v3612
    %v3614 = vadd.f32 %v3613, 1.0
    %v3615 = vrcp.pop %v3614
    %v3616 = vmul.f32 %v3614, %v3615
    %v3617 = vsub.f32 1.0, %v3616
    %v3618 = vmul.f32 %v3615, %v3617
    %v3619 = vadd.f32 %v3615, %v3618
    %vm3620 = vweird.f32 %v3614
    %vm3621 = vweird.f32 %v3615
    %vm3622 = vmor %vm3620, %vm3621
    %v3623 = vsel %vm3622, %v3615, %v3619
    %v3624 = vand.u32 2147483647, %v3614
    %vm3625 = vcmp.eq.f32.partialorder %v3624, 8.507059e+37
    %v3626 = vand.u32 %v3614, 2147483648
    %v3627 = vor.u32 1.1754944e-38, %v3626
    %v3628 = vsel %vm3625, %v3627, %v3623
    %v3629 = vmul.f32 %v3604, %v3628
    %v3630 = vmin.f32 %v3629, 1.0
    %v3631 = vmax.f32 %v3630, -1.0
    %v3632 = vmul.f32 %v2476, %v2476
    %v3633 = vmin.f32 16.0, %v3632
    %v3634 = vmul.f32 %v3633, 2.1237322e-06
    %v3635 = vadd.f32 %v3634, 0.00028619796
    %v3636 = vmul.f32 %v3633, %v3635
    %v3637 = vadd.f32 %v3636, 0.0036580483
    %v3638 = vmul.f32 %v3633, %v3637
    %v3639 = vadd.f32 %v3638, 0.05243302
    %v3640 = vmul.f32 %v3633, %v3639
    %v3641 = vadd.f32 %v3640, 0.18741608
    %v3642 = vmul.f32 %v3633, %v3641
    %v3643 = vadd.f32 %v3642, 1.1283791
    %v3644 = vmul.f32 %v2476, %v3643
    %v3645 = vmul.f32 %v3633, 3.8918573e-05
    %v3646 = vadd.f32 %v3645, 0.001143296
    %v3647 = vmul.f32 %v3633, %v3646
    %v3648 = vadd.f32 %v3647, 0.014752088
    %v3649 = vmul.f32 %v3633, %v3648
    %v3650 = vadd.f32 %v3649, 0.112945676
    %v3651 = vmul.f32 %v3633, %v3650
    %v3652 = vadd.f32 %v3651, 0.4994258
    %v3653 = vmul.f32 %v3633, %v3652
    %v3654 = vadd.f32 %v3653, 1.0
    %v3655 = vrcp.pop %v3654
    %v3656 = vmul.f32 %v3654, %v3655
    %v3657 = vsub.f32 1.0, %v3656
    %v3658 = vmul.f32 %v3655, %v3657
    %v3659 = vadd.f32 %v3655, %v3658
    %vm3660 = vweird.f32 %v3654
    %vm3661 = vweird.f32 %v3655
    %vm3662 = vmor %vm3660, %vm3661
    %v3663 = vsel %vm3662, %v3655, %v3659
    %v3664 = vand.u32 2147483647, %v3654
    %vm3665 = vcmp.eq.f32.partialorder %v3664, 8.507059e+37
    %v3666 = vand.u32 %v3654, 2147483648
    %v3667 = vor.u32 1.1754944e-38, %v3666
    %v3668 = vsel %vm3665, %v3667, %v3663
    %v3669 = vmul.f32 %v3644, %v3668
    %v3670 = vmin.f32 %v3669, 1.0
    %v3671 = vmax.f32 %v3670, -1.0
    %v3672 = vmul.f32 %v2477, %v2477
    %v3673 = vmin.f32 16.0, %v3672
    %v3674 = vmul.f32 %v3673, 2.1237322e-06
    %v3675 = vadd.f32 %v3674, 0.00028619796
    %v3676 = vmul.f32 %v3673, %v3675
    %v3677 = vadd.f32 %v3676, 0.0036580483
    %v3678 = vmul.f32 %v3673, %v3677
    %v3679 = vadd.f32 %v3678, 0.05243302
    %v3680 = vmul.f32 %v3673, %v3679
    %v3681 = vadd.f32 %v3680, 0.18741608
    %v3682 = vmul.f32 %v3673, %v3681
    %v3683 = vadd.f32 %v3682, 1.1283791
    %v3684 = vmul.f32 %v2477, %v3683
    %v3685 = vmul.f32 %v3673, 3.8918573e-05
    %v3686 = vadd.f32 %v3685, 0.001143296
    %v3687 = vmul.f32 %v3673, %v3686
    %v3688 = vadd.f32 %v3687, 0.014752088
    %v3689 = vmul.f32 %v3673, %v3688
    %v3690 = vadd.f32 %v3689, 0.112945676
    %v3691 = vmul.f32 %v3673, %v3690
    %v3692 = vadd.f32 %v3691, 0.4994258
    %v3693 = vmul.f32 %v3673, %v3692
    %v3694 = vadd.f32 %v3693, 1.0
    %v3695 = vrcp.pop %v3694
    %v3696 = vmul.f32 %v3694, %v3695
    %v3697 = vsub.f32 1.0, %v3696
    %v3698 = vmul.f32 %v3695, %v3697
    %v3699 = vadd.f32 %v3695, %v3698
    %vm3700 = vweird.f32 %v3694
    %vm3701 = vweird.f32 %v3695
    %vm3702 = vmor %vm3700, %vm3701
    %v3703 = vsel %vm3702, %v3695, %v3699
    %v3704 = vand.u32 2147483647, %v3694
    %vm3705 = vcmp.eq.f32.partialorder %v3704, 8.507059e+37
    %v3706 = vand.u32 %v3694, 2147483648
    %v3707 = vor.u32 1.1754944e-38, %v3706
    %v3708 = vsel %vm3705, %v3707, %v3703
    %v3709 = vmul.f32 %v3684, %v3708
    %v3710 = vmin.f32 %v3709, 1.0
    %v3711 = vmax.f32 %v3710, -1.0
    %v3712 = vmul.f32 %v2478, %v2478
    %v3713 = vmin.f32 16.0, %v3712
    %v3714 = vmul.f32 %v3713, 2.1237322e-06
    %v3715 = vadd.f32 %v3714, 0.00028619796
    %v3716 = vmul.f32 %v3713, %v3715
    %v3717 = vadd.f32 %v3716, 0.0036580483
    %v3718 = vmul.f32 %v3713, %v3717
    %v3719 = vadd.f32 %v3718, 0.05243302
    %v3720 = vmul.f32 %v3713, %v3719
    %v3721 = vadd.f32 %v3720, 0.18741608
    %v3722 = vmul.f32 %v3713, %v3721
    %v3723 = vadd.f32 %v3722, 1.1283791
    %v3724 = vmul.f32 %v2478, %v3723
    %v3725 = vmul.f32 %v3713, 3.8918573e-05
    %v3726 = vadd.f32 %v3725, 0.001143296
    %v3727 = vmul.f32 %v3713, %v3726
    %v3728 = vadd.f32 %v3727, 0.014752088
    %v3729 = vmul.f32 %v3713, %v3728
    %v3730 = vadd.f32 %v3729, 0.112945676
    %v3731 = vmul.f32 %v3713, %v3730
    %v3732 = vadd.f32 %v3731, 0.4994258
    %v3733 = vmul.f32 %v3713, %v3732
    %v3734 = vadd.f32 %v3733, 1.0
    %v3735 = vrcp.pop %v3734
    %v3736 = vmul.f32 %v3734, %v3735
    %v3737 = vsub.f32 1.0, %v3736
    %v3738 = vmul.f32 %v3735, %v3737
    %v3739 = vadd.f32 %v3735, %v3738
    %vm3740 = vweird.f32 %v3734
    %vm3741 = vweird.f32 %v3735
    %vm3742 = vmor %vm3740, %vm3741
    %v3743 = vsel %vm3742, %v3735, %v3739
    %v3744 = vand.u32 2147483647, %v3734
    %vm3745 = vcmp.eq.f32.partialorder %v3744, 8.507059e+37
    %v3746 = vand.u32 %v3734, 2147483648
    %v3747 = vor.u32 1.1754944e-38, %v3746
    %v3748 = vsel %vm3745, %v3747, %v3743
    %v3749 = vmul.f32 %v3724, %v3748
    %v3750 = vmin.f32 %v3749, 1.0
    %v3751 = vmax.f32 %v3750, -1.0
    %v3752 = vmul.f32 %v2479, %v2479
    %v3753 = vmin.f32 16.0, %v3752
    %v3754 = vmul.f32 %v3753, 2.1237322e-06
    %v3755 = vadd.f32 %v3754, 0.00028619796
    %v3756 = vmul.f32 %v3753, %v3755
    %v3757 = vadd.f32 %v3756, 0.0036580483
    %v3758 = vmul.f32 %v3753, %v3757
    %v3759 = vadd.f32 %v3758, 0.05243302
    %v3760 = vmul.f32 %v3753, %v3759
    %v3761 = vadd.f32 %v3760, 0.18741608
    %v3762 = vmul.f32 %v3753, %v3761
    %v3763 = vadd.f32 %v3762, 1.1283791
    %v3764 = vmul.f32 %v2479, %v3763
    %v3765 = vmul.f32 %v3753, 3.8918573e-05
    %v3766 = vadd.f32 %v3765, 0.001143296
    %v3767 = vmul.f32 %v3753, %v3766
    %v3768 = vadd.f32 %v3767, 0.014752088
    %v3769 = vmul.f32 %v3753, %v3768
    %v3770 = vadd.f32 %v3769, 0.112945676
    %v3771 = vmul.f32 %v3753, %v3770
    %v3772 = vadd.f32 %v3771, 0.4994258
    %v3773 = vmul.f32 %v3753, %v3772
    %v3774 = vadd.f32 %v3773, 1.0
    %v3775 = vrcp.pop %v3774
    %v3776 = vmul.f32 %v3774, %v3775
    %v3777 = vsub.f32 1.0, %v3776
    %v3778 = vmul.f32 %v3775, %v3777
    %v3779 = vadd.f32 %v3775, %v3778
    %vm3780 = vweird.f32 %v3774
    %vm3781 = vweird.f32 %v3775
    %vm3782 = vmor %vm3780, %vm3781
    %v3783 = vsel %vm3782, %v3775, %v3779
    %v3784 = vand.u32 2147483647, %v3774
    %vm3785 = vcmp.eq.f32.partialorder %v3784, 8.507059e+37
    %v3786 = vand.u32 %v3774, 2147483648
    %v3787 = vor.u32 1.1754944e-38, %v3786
    %v3788 = vsel %vm3785, %v3787, %v3783
    %v3789 = vmul.f32 %v3764, %v3788
    %v3790 = vmin.f32 %v3789, 1.0
    %v3791 = vmax.f32 %v3790, -1.0
    %v3792 = vmul.f32 %v2480, %v2480
    %v3793 = vmin.f32 16.0, %v3792
    %v3794 = vmul.f32 %v3793, 2.1237322e-06
    %v3795 = vadd.f32 %v3794, 0.00028619796
    %v3796 = vmul.f32 %v3793, %v3795
    %v3797 = vadd.f32 %v3796, 0.0036580483
    %v3798 = vmul.f32 %v3793, %v3797
    %v3799 = vadd.f32 %v3798, 0.05243302
    %v3800 = vmul.f32 %v3793, %v3799
    %v3801 = vadd.f32 %v3800, 0.18741608
    %v3802 = vmul.f32 %v3793, %v3801
    %v3803 = vadd.f32 %v3802, 1.1283791
    %v3804 = vmul.f32 %v2480, %v3803
    %v3805 = vmul.f32 %v3793, 3.8918573e-05
    %v3806 = vadd.f32 %v3805, 0.001143296
    %v3807 = vmul.f32 %v3793, %v3806
    %v3808 = vadd.f32 %v3807, 0.014752088
    %v3809 = vmul.f32 %v3793, %v3808
    %v3810 = vadd.f32 %v3809, 0.112945676
    %v3811 = vmul.f32 %v3793, %v3810
    %v3812 = vadd.f32 %v3811, 0.4994258
    %v3813 = vmul.f32 %v3793, %v3812
    %v3814 = vadd.f32 %v3813, 1.0
    %v3815 = vrcp.pop %v3814
    %v3816 = vmul.f32 %v3814, %v3815
    %v3817 = vsub.f32 1.0, %v3816
    %v3818 = vmul.f32 %v3815, %v3817
    %v3819 = vadd.f32 %v3815, %v3818
    %vm3820 = vweird.f32 %v3814
    %vm3821 = vweird.f32 %v3815
    %vm3822 = vmor %vm3820, %vm3821
    %v3823 = vsel %vm3822, %v3815, %v3819
    %v3824 = vand.u32 2147483647, %v3814
    %vm3825 = vcmp.eq.f32.partialorder %v3824, 8.507059e+37
    %v3826 = vand.u32 %v3814, 2147483648
    %v3827 = vor.u32 1.1754944e-38, %v3826
    %v3828 = vsel %vm3825, %v3827, %v3823
    %v3829 = vmul.f32 %v3804, %v3828
    %v3830 = vmin.f32 %v3829, 1.0
    %v3831 = vmax.f32 %v3830, -1.0
    %v3832 = vmul.f32 %v2481, %v2481
    %v3833 = vmin.f32 16.0, %v3832
    %v3834 = vmul.f32 %v3833, 2.1237322e-06
    %v3835 = vadd.f32 %v3834, 0.00028619796
    %v3836 = vmul.f32 %v3833, %v3835
    %v3837 = vadd.f32 %v3836, 0.0036580483
    %v3838 = vmul.f32 %v3833, %v3837
    %v3839 = vadd.f32 %v3838, 0.05243302
    %v3840 = vmul.f32 %v3833, %v3839
    %v3841 = vadd.f32 %v3840, 0.18741608
    %v3842 = vmul.f32 %v3833, %v3841
    %v3843 = vadd.f32 %v3842, 1.1283791
    %v3844 = vmul.f32 %v2481, %v3843
    %v3845 = vmul.f32 %v3833, 3.8918573e-05
    %v3846 = vadd.f32 %v3845, 0.001143296
    %v3847 = vmul.f32 %v3833, %v3846
    %v3848 = vadd.f32 %v3847, 0.014752088
    %v3849 = vmul.f32 %v3833, %v3848
    %v3850 = vadd.f32 %v3849, 0.112945676
    %v3851 = vmul.f32 %v3833, %v3850
    %v3852 = vadd.f32 %v3851, 0.4994258
    %v3853 = vmul.f32 %v3833, %v3852
    %v3854 = vadd.f32 %v3853, 1.0
    %v3855 = vrcp.pop %v3854
    %v3856 = vmul.f32 %v3854, %v3855
    %v3857 = vsub.f32 1.0, %v3856
    %v3858 = vmul.f32 %v3855, %v3857
    %v3859 = vadd.f32 %v3855, %v3858
    %vm3860 = vweird.f32 %v3854
    %vm3861 = vweird.f32 %v3855
    %vm3862 = vmor %vm3860, %vm3861
    %v3863 = vsel %vm3862, %v3855, %v3859
    %v3864 = vand.u32 2147483647, %v3854
    %vm3865 = vcmp.eq.f32.partialorder %v3864, 8.507059e+37
    %v3866 = vand.u32 %v3854, 2147483648
    %v3867 = vor.u32 1.1754944e-38, %v3866
    %v3868 = vsel %vm3865, %v3867, %v3863
    %v3869 = vmul.f32 %v3844, %v3868
    %v3870 = vmin.f32 %v3869, 1.0
    %v3871 = vmax.f32 %v3870, -1.0
    %v3872 = vmul.f32 %v2482, %v2482
    %v3873 = vmin.f32 16.0, %v3872
    %v3874 = vmul.f32 %v3873, 2.1237322e-06
    %v3875 = vadd.f32 %v3874, 0.00028619796
    %v3876 = vmul.f32 %v3873, %v3875
    %v3877 = vadd.f32 %v3876, 0.0036580483
    %v3878 = vmul.f32 %v3873, %v3877
    %v3879 = vadd.f32 %v3878, 0.05243302
    %v3880 = vmul.f32 %v3873, %v3879
    %v3881 = vadd.f32 %v3880, 0.18741608
    %v3882 = vmul.f32 %v3873, %v3881
    %v3883 = vadd.f32 %v3882, 1.1283791
    %v3884 = vmul.f32 %v2482, %v3883
    %v3885 = vmul.f32 %v3873, 3.8918573e-05
    %v3886 = vadd.f32 %v3885, 0.001143296
    %v3887 = vmul.f32 %v3873, %v3886
    %v3888 = vadd.f32 %v3887, 0.014752088
    %v3889 = vmul.f32 %v3873, %v3888
    %v3890 = vadd.f32 %v3889, 0.112945676
    %v3891 = vmul.f32 %v3873, %v3890
    %v3892 = vadd.f32 %v3891, 0.4994258
    %v3893 = vmul.f32 %v3873, %v3892
    %v3894 = vadd.f32 %v3893, 1.0
    %v3895 = vrcp.pop %v3894
    %v3896 = vmul.f32 %v3894, %v3895
    %v3897 = vsub.f32 1.0, %v3896
    %v3898 = vmul.f32 %v3895, %v3897
    %v3899 = vadd.f32 %v3895, %v3898
    %vm3900 = vweird.f32 %v3894
    %vm3901 = vweird.f32 %v3895
    %vm3902 = vmor %vm3900, %vm3901
    %v3903 = vsel %vm3902, %v3895, %v3899
    %v3904 = vand.u32 2147483647, %v3894
    %vm3905 = vcmp.eq.f32.partialorder %v3904, 8.507059e+37
    %v3906 = vand.u32 %v3894, 2147483648
    %v3907 = vor.u32 1.1754944e-38, %v3906
    %v3908 = vsel %vm3905, %v3907, %v3903
    %v3909 = vmul.f32 %v3884, %v3908
    %v3910 = vmin.f32 %v3909, 1.0
    %v3911 = vmax.f32 %v3910, -1.0
    %v3912 = vmul.f32 %v2483, %v2483
    %v3913 = vmin.f32 16.0, %v3912
    %v3914 = vmul.f32 %v3913, 2.1237322e-06
    %v3915 = vadd.f32 %v3914, 0.00028619796
    %v3916 = vmul.f32 %v3913, %v3915
    %v3917 = vadd.f32 %v3916, 0.0036580483
    %v3918 = vmul.f32 %v3913, %v3917
    %v3919 = vadd.f32 %v3918, 0.05243302
    %v3920 = vmul.f32 %v3913, %v3919
    %v3921 = vadd.f32 %v3920, 0.18741608
    %v3922 = vmul.f32 %v3913, %v3921
    %v3923 = vadd.f32 %v3922, 1.1283791
    %v3924 = vmul.f32 %v2483, %v3923
    %v3925 = vmul.f32 %v3913, 3.8918573e-05
    %v3926 = vadd.f32 %v3925, 0.001143296
    %v3927 = vmul.f32 %v3913, %v3926
    %v3928 = vadd.f32 %v3927, 0.014752088
    %v3929 = vmul.f32 %v3913, %v3928
    %v3930 = vadd.f32 %v3929, 0.112945676
    %v3931 = vmul.f32 %v3913, %v3930
    %v3932 = vadd.f32 %v3931, 0.4994258
    %v3933 = vmul.f32 %v3913, %v3932
    %v3934 = vadd.f32 %v3933, 1.0
    %v3935 = vrcp.pop %v3934
    %v3936 = vmul.f32 %v3934, %v3935
    %v3937 = vsub.f32 1.0, %v3936
    %v3938 = vmul.f32 %v3935, %v3937
    %v3939 = vadd.f32 %v3935, %v3938
    %vm3940 = vweird.f32 %v3934
    %vm3941 = vweird.f32 %v3935
    %vm3942 = vmor %vm3940, %vm3941
    %v3943 = vsel %vm3942, %v3935, %v3939
    %v3944 = vand.u32 2147483647, %v3934
    %vm3945 = vcmp.eq.f32.partialorder %v3944, 8.507059e+37
    %v3946 = vand.u32 %v3934, 2147483648
    %v3947 = vor.u32 1.1754944e-38, %v3946
    %v3948 = vsel %vm3945, %v3947, %v3943
    %v3949 = vmul.f32 %v3924, %v3948
    %v3950 = vmin.f32 %v3949, 1.0
    %v3951 = vmax.f32 %v3950, -1.0
    %v3952 = vmul.f32 %v2484, %v2484
    %v3953 = vmin.f32 16.0, %v3952
    %v3954 = vmul.f32 %v3953, 2.1237322e-06
    %v3955 = vadd.f32 %v3954, 0.00028619796
    %v3956 = vmul.f32 %v3953, %v3955
    %v3957 = vadd.f32 %v3956, 0.0036580483
    %v3958 = vmul.f32 %v3953, %v3957
    %v3959 = vadd.f32 %v3958, 0.05243302
    %v3960 = vmul.f32 %v3953, %v3959
    %v3961 = vadd.f32 %v3960, 0.18741608
    %v3962 = vmul.f32 %v3953, %v3961
    %v3963 = vadd.f32 %v3962, 1.1283791
    %v3964 = vmul.f32 %v2484, %v3963
    %v3965 = vmul.f32 %v3953, 3.8918573e-05
    %v3966 = vadd.f32 %v3965, 0.001143296
    %v3967 = vmul.f32 %v3953, %v3966
    %v3968 = vadd.f32 %v3967, 0.014752088
    %v3969 = vmul.f32 %v3953, %v3968
    %v3970 = vadd.f32 %v3969, 0.112945676
    %v3971 = vmul.f32 %v3953, %v3970
    %v3972 = vadd.f32 %v3971, 0.4994258
    %v3973 = vmul.f32 %v3953, %v3972
    %v3974 = vadd.f32 %v3973, 1.0
    %v3975 = vrcp.pop %v3974
    %v3976 = vmul.f32 %v3974, %v3975
    %v3977 = vsub.f32 1.0, %v3976
    %v3978 = vmul.f32 %v3975, %v3977
    %v3979 = vadd.f32 %v3975, %v3978
    %vm3980 = vweird.f32 %v3974
    %vm3981 = vweird.f32 %v3975
    %vm3982 = vmor %vm3980, %vm3981
    %v3983 = vsel %vm3982, %v3975, %v3979
    %v3984 = vand.u32 2147483647, %v3974
    %vm3985 = vcmp.eq.f32.partialorder %v3984, 8.507059e+37
    %v3986 = vand.u32 %v3974, 2147483648
    %v3987 = vor.u32 1.1754944e-38, %v3986
    %v3988 = vsel %vm3985, %v3987, %v3983
    %v3989 = vmul.f32 %v3964, %v3988
    %v3990 = vmin.f32 %v3989, 1.0
    %v3991 = vmax.f32 %v3990, -1.0
    %v3992 = vmul.f32 %v2485, %v2485
    %v3993 = vmin.f32 16.0, %v3992
    %v3994 = vmul.f32 %v3993, 2.1237322e-06
    %v3995 = vadd.f32 %v3994, 0.00028619796
    %v3996 = vmul.f32 %v3993, %v3995
    %v3997 = vadd.f32 %v3996, 0.0036580483
    %v3998 = vmul.f32 %v3993, %v3997
    %v3999 = vadd.f32 %v3998, 0.05243302
    %v4000 = vmul.f32 %v3993, %v3999
    %v4001 = vadd.f32 %v4000, 0.18741608
    %v4002 = vmul.f32 %v3993, %v4001
    %v4003 = vadd.f32 %v4002, 1.1283791
    %v4004 = vmul.f32 %v2485, %v4003
    %v4005 = vmul.f32 %v3993, 3.8918573e-05
    %v4006 = vadd.f32 %v4005, 0.001143296
    %v4007 = vmul.f32 %v3993, %v4006
    %v4008 = vadd.f32 %v4007, 0.014752088
    %v4009 = vmul.f32 %v3993, %v4008
    %v4010 = vadd.f32 %v4009, 0.112945676
    %v4011 = vmul.f32 %v3993, %v4010
    %v4012 = vadd.f32 %v4011, 0.4994258
    %v4013 = vmul.f32 %v3993, %v4012
    %v4014 = vadd.f32 %v4013, 1.0
    %v4015 = vrcp.pop %v4014
    %v4016 = vmul.f32 %v4014, %v4015
    %v4017 = vsub.f32 1.0, %v4016
    %v4018 = vmul.f32 %v4015, %v4017
    %v4019 = vadd.f32 %v4015, %v4018
    %vm4020 = vweird.f32 %v4014
    %vm4021 = vweird.f32 %v4015
    %vm4022 = vmor %vm4020, %vm4021
    %v4023 = vsel %vm4022, %v4015, %v4019
    %v4024 = vand.u32 2147483647, %v4014
    %vm4025 = vcmp.eq.f32.partialorder %v4024, 8.507059e+37
    %v4026 = vand.u32 %v4014, 2147483648
    %v4027 = vor.u32 1.1754944e-38, %v4026
    %v4028 = vsel %vm4025, %v4027, %v4023
    %v4029 = vmul.f32 %v4004, %v4028
    %v4030 = vmin.f32 %v4029, 1.0
    %v4031 = vmax.f32 %v4030, -1.0
    %v4032 = vmul.f32 %v2486, %v2486
    %v4033 = vmin.f32 16.0, %v4032
    %v4034 = vmul.f32 %v4033, 2.1237322e-06
    %v4035 = vadd.f32 %v4034, 0.00028619796
    %v4036 = vmul.f32 %v4033, %v4035
    %v4037 = vadd.f32 %v4036, 0.0036580483
    %v4038 = vmul.f32 %v4033, %v4037
    %v4039 = vadd.f32 %v4038, 0.05243302
    %v4040 = vmul.f32 %v4033, %v4039
    %v4041 = vadd.f32 %v4040, 0.18741608
    %v4042 = vmul.f32 %v4033, %v4041
    %v4043 = vadd.f32 %v4042, 1.1283791
    %v4044 = vmul.f32 %v2486, %v4043
    %v4045 = vmul.f32 %v4033, 3.8918573e-05
    %v4046 = vadd.f32 %v4045, 0.001143296
    %v4047 = vmul.f32 %v4033, %v4046
    %v4048 = vadd.f32 %v4047, 0.014752088
    %v4049 = vmul.f32 %v4033, %v4048
    %v4050 = vadd.f32 %v4049, 0.112945676
    %v4051 = vmul.f32 %v4033, %v4050
    %v4052 = vadd.f32 %v4051, 0.4994258
    %v4053 = vmul.f32 %v4033, %v4052
    %v4054 = vadd.f32 %v4053, 1.0
    %v4055 = vrcp.pop %v4054
    %v4056 = vmul.f32 %v4054, %v4055
    %v4057 = vsub.f32 1.0, %v4056
    %v4058 = vmul.f32 %v4055, %v4057
    %v4059 = vadd.f32 %v4055, %v4058
    %vm4060 = vweird.f32 %v4054
    %vm4061 = vweird.f32 %v4055
    %vm4062 = vmor %vm4060, %vm4061
    %v4063 = vsel %vm4062, %v4055, %v4059
    %v4064 = vand.u32 2147483647, %v4054
    %vm4065 = vcmp.eq.f32.partialorder %v4064, 8.507059e+37
    %v4066 = vand.u32 %v4054, 2147483648
    %v4067 = vor.u32 1.1754944e-38, %v4066
    %v4068 = vsel %vm4065, %v4067, %v4063
    %v4069 = vmul.f32 %v4044, %v4068
    %v4070 = vmin.f32 %v4069, 1.0
    %v4071 = vmax.f32 %v4070, -1.0
    %v4072 = vmul.f32 %v2487, %v2487
    %v4073 = vmin.f32 16.0, %v4072
    %v4074 = vmul.f32 %v4073, 2.1237322e-06
    %v4075 = vadd.f32 %v4074, 0.00028619796
    %v4076 = vmul.f32 %v4073, %v4075
    %v4077 = vadd.f32 %v4076, 0.0036580483
    %v4078 = vmul.f32 %v4073, %v4077
    %v4079 = vadd.f32 %v4078, 0.05243302
    %v4080 = vmul.f32 %v4073, %v4079
    %v4081 = vadd.f32 %v4080, 0.18741608
    %v4082 = vmul.f32 %v4073, %v4081
    %v4083 = vadd.f32 %v4082, 1.1283791
    %v4084 = vmul.f32 %v2487, %v4083
    %v4085 = vmul.f32 %v4073, 3.8918573e-05
    %v4086 = vadd.f32 %v4085, 0.001143296
    %v4087 = vmul.f32 %v4073, %v4086
    %v4088 = vadd.f32 %v4087, 0.014752088
    %v4089 = vmul.f32 %v4073, %v4088
    %v4090 = vadd.f32 %v4089, 0.112945676
    %v4091 = vmul.f32 %v4073, %v4090
    %v4092 = vadd.f32 %v4091, 0.4994258
    %v4093 = vmul.f32 %v4073, %v4092
    %v4094 = vadd.f32 %v4093, 1.0
    %v4095 = vrcp.pop %v4094
    %v4096 = vmul.f32 %v4094, %v4095
    %v4097 = vsub.f32 1.0, %v4096
    %v4098 = vmul.f32 %v4095, %v4097
    %v4099 = vadd.f32 %v4095, %v4098
    %vm4100 = vweird.f32 %v4094
    %vm4101 = vweird.f32 %v4095
    %vm4102 = vmor %vm4100, %vm4101
    %v4103 = vsel %vm4102, %v4095, %v4099
    %v4104 = vand.u32 2147483647, %v4094
    %vm4105 = vcmp.eq.f32.partialorder %v4104, 8.507059e+37
    %v4106 = vand.u32 %v4094, 2147483648
    %v4107 = vor.u32 1.1754944e-38, %v4106
    %v4108 = vsel %vm4105, %v4107, %v4103
    %v4109 = vmul.f32 %v4084, %v4108
    %v4110 = vmin.f32 %v4109, 1.0
    %v4111 = vmax.f32 %v4110, -1.0
    %v4112 = vmul.f32 %v2488, %v2488
    %v4113 = vmin.f32 16.0, %v4112
    %v4114 = vmul.f32 %v4113, 2.1237322e-06
    %v4115 = vadd.f32 %v4114, 0.00028619796
    %v4116 = vmul.f32 %v4113, %v4115
    %v4117 = vadd.f32 %v4116, 0.0036580483
    %v4118 = vmul.f32 %v4113, %v4117
    %v4119 = vadd.f32 %v4118, 0.05243302
    %v4120 = vmul.f32 %v4113, %v4119
    %v4121 = vadd.f32 %v4120, 0.18741608
    %v4122 = vmul.f32 %v4113, %v4121
    %v4123 = vadd.f32 %v4122, 1.1283791
    %v4124 = vmul.f32 %v2488, %v4123
    %v4125 = vmul.f32 %v4113, 3.8918573e-05
    %v4126 = vadd.f32 %v4125, 0.001143296
    %v4127 = vmul.f32 %v4113, %v4126
    %v4128 = vadd.f32 %v4127, 0.014752088
    %v4129 = vmul.f32 %v4113, %v4128
    %v4130 = vadd.f32 %v4129, 0.112945676
    %v4131 = vmul.f32 %v4113, %v4130
    %v4132 = vadd.f32 %v4131, 0.4994258
    %v4133 = vmul.f32 %v4113, %v4132
    %v4134 = vadd.f32 %v4133, 1.0
    %v4135 = vrcp.pop %v4134
    %v4136 = vmul.f32 %v4134, %v4135
    %v4137 = vsub.f32 1.0, %v4136
    %v4138 = vmul.f32 %v4135, %v4137
    %v4139 = vadd.f32 %v4135, %v4138
    %vm4140 = vweird.f32 %v4134
    %vm4141 = vweird.f32 %v4135
    %vm4142 = vmor %vm4140, %vm4141
    %v4143 = vsel %vm4142, %v4135, %v4139
    %v4144 = vand.u32 2147483647, %v4134
    %vm4145 = vcmp.eq.f32.partialorder %v4144, 8.507059e+37
    %v4146 = vand.u32 %v4134, 2147483648
    %v4147 = vor.u32 1.1754944e-38, %v4146
    %v4148 = vsel %vm4145, %v4147, %v4143
    %v4149 = vmul.f32 %v4124, %v4148
    %v4150 = vmin.f32 %v4149, 1.0
    %v4151 = vmax.f32 %v4150, -1.0
    %v4152 = vmul.f32 %v2489, %v2489
    %v4153 = vmin.f32 16.0, %v4152
    %v4154 = vmul.f32 %v4153, 2.1237322e-06
    %v4155 = vadd.f32 %v4154, 0.00028619796
    %v4156 = vmul.f32 %v4153, %v4155
    %v4157 = vadd.f32 %v4156, 0.0036580483
    %v4158 = vmul.f32 %v4153, %v4157
    %v4159 = vadd.f32 %v4158, 0.05243302
    %v4160 = vmul.f32 %v4153, %v4159
    %v4161 = vadd.f32 %v4160, 0.18741608
    %v4162 = vmul.f32 %v4153, %v4161
    %v4163 = vadd.f32 %v4162, 1.1283791
    %v4164 = vmul.f32 %v2489, %v4163
    %v4165 = vmul.f32 %v4153, 3.8918573e-05
    %v4166 = vadd.f32 %v4165, 0.001143296
    %v4167 = vmul.f32 %v4153, %v4166
    %v4168 = vadd.f32 %v4167, 0.014752088
    %v4169 = vmul.f32 %v4153, %v4168
    %v4170 = vadd.f32 %v4169, 0.112945676
    %v4171 = vmul.f32 %v4153, %v4170
    %v4172 = vadd.f32 %v4171, 0.4994258
    %v4173 = vmul.f32 %v4153, %v4172
    %v4174 = vadd.f32 %v4173, 1.0
    %v4175 = vrcp.pop %v4174
    %v4176 = vmul.f32 %v4174, %v4175
    %v4177 = vsub.f32 1.0, %v4176
    %v4178 = vmul.f32 %v4175, %v4177
    %v4179 = vadd.f32 %v4175, %v4178
    %vm4180 = vweird.f32 %v4174
    %vm4181 = vweird.f32 %v4175
    %vm4182 = vmor %vm4180, %vm4181
    %v4183 = vsel %vm4182, %v4175, %v4179
    %v4184 = vand.u32 2147483647, %v4174
    %vm4185 = vcmp.eq.f32.partialorder %v4184, 8.507059e+37
    %v4186 = vand.u32 %v4174, 2147483648
    %v4187 = vor.u32 1.1754944e-38, %v4186
    %v4188 = vsel %vm4185, %v4187, %v4183
    %v4189 = vmul.f32 %v4164, %v4188
    %v4190 = vmin.f32 %v4189, 1.0
    %v4191 = vmax.f32 %v4190, -1.0
    %v4192 = vmul.f32 %v2490, %v2490
    %v4193 = vmin.f32 16.0, %v4192
    %v4194 = vmul.f32 %v4193, 2.1237322e-06
    %v4195 = vadd.f32 %v4194, 0.00028619796
    %v4196 = vmul.f32 %v4193, %v4195
    %v4197 = vadd.f32 %v4196, 0.0036580483
    %v4198 = vmul.f32 %v4193, %v4197
    %v4199 = vadd.f32 %v4198, 0.05243302
    %v4200 = vmul.f32 %v4193, %v4199
    %v4201 = vadd.f32 %v4200, 0.18741608
    %v4202 = vmul.f32 %v4193, %v4201
    %v4203 = vadd.f32 %v4202, 1.1283791
    %v4204 = vmul.f32 %v2490, %v4203
    %v4205 = vmul.f32 %v4193, 3.8918573e-05
    %v4206 = vadd.f32 %v4205, 0.001143296
    %v4207 = vmul.f32 %v4193, %v4206
    %v4208 = vadd.f32 %v4207, 0.014752088
    %v4209 = vmul.f32 %v4193, %v4208
    %v4210 = vadd.f32 %v4209, 0.112945676
    %v4211 = vmul.f32 %v4193, %v4210
    %v4212 = vadd.f32 %v4211, 0.4994258
    %v4213 = vmul.f32 %v4193, %v4212
    %v4214 = vadd.f32 %v4213, 1.0
    %v4215 = vrcp.pop %v4214
    %v4216 = vmul.f32 %v4214, %v4215
    %v4217 = vsub.f32 1.0, %v4216
    %v4218 = vmul.f32 %v4215, %v4217
    %v4219 = vadd.f32 %v4215, %v4218
    %vm4220 = vweird.f32 %v4214
    %vm4221 = vweird.f32 %v4215
    %vm4222 = vmor %vm4220, %vm4221
    %v4223 = vsel %vm4222, %v4215, %v4219
    %v4224 = vand.u32 2147483647, %v4214
    %vm4225 = vcmp.eq.f32.partialorder %v4224, 8.507059e+37
    %v4226 = vand.u32 %v4214, 2147483648
    %v4227 = vor.u32 1.1754944e-38, %v4226
    %v4228 = vsel %vm4225, %v4227, %v4223
    %v4229 = vmul.f32 %v4204, %v4228
    %v4230 = vmin.f32 %v4229, 1.0
    %v4231 = vmax.f32 %v4230, -1.0
    %v4232 = vmul.f32 %v2491, %v2491
    %v4233 = vmin.f32 16.0, %v4232
    %v4234 = vmul.f32 %v4233, 2.1237322e-06
    %v4235 = vadd.f32 %v4234, 0.00028619796
    %v4236 = vmul.f32 %v4233, %v4235
    %v4237 = vadd.f32 %v4236, 0.0036580483
    %v4238 = vmul.f32 %v4233, %v4237
    %v4239 = vadd.f32 %v4238, 0.05243302
    %v4240 = vmul.f32 %v4233, %v4239
    %v4241 = vadd.f32 %v4240, 0.18741608
    %v4242 = vmul.f32 %v4233, %v4241
    %v4243 = vadd.f32 %v4242, 1.1283791
    %v4244 = vmul.f32 %v2491, %v4243
    %v4245 = vmul.f32 %v4233, 3.8918573e-05
    %v4246 = vadd.f32 %v4245, 0.001143296
    %v4247 = vmul.f32 %v4233, %v4246
    %v4248 = vadd.f32 %v4247, 0.014752088
    %v4249 = vmul.f32 %v4233, %v4248
    %v4250 = vadd.f32 %v4249, 0.112945676
    %v4251 = vmul.f32 %v4233, %v4250
    %v4252 = vadd.f32 %v4251, 0.4994258
    %v4253 = vmul.f32 %v4233, %v4252
    %v4254 = vadd.f32 %v4253, 1.0
    %v4255 = vrcp.pop %v4254
    %v4256 = vmul.f32 %v4254, %v4255
    %v4257 = vsub.f32 1.0, %v4256
    %v4258 = vmul.f32 %v4255, %v4257
    %v4259 = vadd.f32 %v4255, %v4258
    %vm4260 = vweird.f32 %v4254
    %vm4261 = vweird.f32 %v4255
    %vm4262 = vmor %vm4260, %vm4261
    %v4263 = vsel %vm4262, %v4255, %v4259
    %v4264 = vand.u32 2147483647, %v4254
    %vm4265 = vcmp.eq.f32.partialorder %v4264, 8.507059e+37
    %v4266 = vand.u32 %v4254, 2147483648
    %v4267 = vor.u32 1.1754944e-38, %v4266
    %v4268 = vsel %vm4265, %v4267, %v4263
    %v4269 = vmul.f32 %v4244, %v4268
    %v4270 = vmin.f32 %v4269, 1.0
    %v4271 = vmax.f32 %v4270, -1.0
    %v4272 = vmul.f32 %v2492, %v2492
    %v4273 = vmin.f32 16.0, %v4272
    %v4274 = vmul.f32 %v4273, 2.1237322e-06
    %v4275 = vadd.f32 %v4274, 0.00028619796
    %v4276 = vmul.f32 %v4273, %v4275
    %v4277 = vadd.f32 %v4276, 0.0036580483
    %v4278 = vmul.f32 %v4273, %v4277
    %v4279 = vadd.f32 %v4278, 0.05243302
    %v4280 = vmul.f32 %v4273, %v4279
    %v4281 = vadd.f32 %v4280, 0.18741608
    %v4282 = vmul.f32 %v4273, %v4281
    %v4283 = vadd.f32 %v4282, 1.1283791
    %v4284 = vmul.f32 %v2492, %v4283
    %v4285 = vmul.f32 %v4273, 3.8918573e-05
    %v4286 = vadd.f32 %v4285, 0.001143296
    %v4287 = vmul.f32 %v4273, %v4286
    %v4288 = vadd.f32 %v4287, 0.014752088
    %v4289 = vmul.f32 %v4273, %v4288
    %v4290 = vadd.f32 %v4289, 0.112945676
    %v4291 = vmul.f32 %v4273, %v4290
    %v4292 = vadd.f32 %v4291, 0.4994258
    %v4293 = vmul.f32 %v4273, %v4292
    %v4294 = vadd.f32 %v4293, 1.0
    %v4295 = vrcp.pop %v4294
    %v4296 = vmul.f32 %v4294, %v4295
    %v4297 = vsub.f32 1.0, %v4296
    %v4298 = vmul.f32 %v4295, %v4297
    %v4299 = vadd.f32 %v4295, %v4298
    %vm4300 = vweird.f32 %v4294
    %vm4301 = vweird.f32 %v4295
    %vm4302 = vmor %vm4300, %vm4301
    %v4303 = vsel %vm4302, %v4295, %v4299
    %v4304 = vand.u32 2147483647, %v4294
    %vm4305 = vcmp.eq.f32.partialorder %v4304, 8.507059e+37
    %v4306 = vand.u32 %v4294, 2147483648
    %v4307 = vor.u32 1.1754944e-38, %v4306
    %v4308 = vsel %vm4305, %v4307, %v4303
    %v4309 = vmul.f32 %v4284, %v4308
    %v4310 = vmin.f32 %v4309, 1.0
    %v4311 = vmax.f32 %v4310, -1.0
    %v4312 = vmul.f32 %v2493, %v2493
    %v4313 = vmin.f32 16.0, %v4312
    %v4314 = vmul.f32 %v4313, 2.1237322e-06
    %v4315 = vadd.f32 %v4314, 0.00028619796
    %v4316 = vmul.f32 %v4313, %v4315
    %v4317 = vadd.f32 %v4316, 0.0036580483
    %v4318 = vmul.f32 %v4313, %v4317
    %v4319 = vadd.f32 %v4318, 0.05243302
    %v4320 = vmul.f32 %v4313, %v4319
    %v4321 = vadd.f32 %v4320, 0.18741608
    %v4322 = vmul.f32 %v4313, %v4321
    %v4323 = vadd.f32 %v4322, 1.1283791
    %v4324 = vmul.f32 %v2493, %v4323
    %v4325 = vmul.f32 %v4313, 3.8918573e-05
    %v4326 = vadd.f32 %v4325, 0.001143296
    %v4327 = vmul.f32 %v4313, %v4326
    %v4328 = vadd.f32 %v4327, 0.014752088
    %v4329 = vmul.f32 %v4313, %v4328
    %v4330 = vadd.f32 %v4329, 0.112945676
    %v4331 = vmul.f32 %v4313, %v4330
    %v4332 = vadd.f32 %v4331, 0.4994258
    %v4333 = vmul.f32 %v4313, %v4332
    %v4334 = vadd.f32 %v4333, 1.0
    %v4335 = vrcp.pop %v4334
    %v4336 = vmul.f32 %v4334, %v4335
    %v4337 = vsub.f32 1.0, %v4336
    %v4338 = vmul.f32 %v4335, %v4337
    %v4339 = vadd.f32 %v4335, %v4338
    %vm4340 = vweird.f32 %v4334
    %vm4341 = vweird.f32 %v4335
    %vm4342 = vmor %vm4340, %vm4341
    %v4343 = vsel %vm4342, %v4335, %v4339
    %v4344 = vand.u32 2147483647, %v4334
    %vm4345 = vcmp.eq.f32.partialorder %v4344, 8.507059e+37
    %v4346 = vand.u32 %v4334, 2147483648
    %v4347 = vor.u32 1.1754944e-38, %v4346
    %v4348 = vsel %vm4345, %v4347, %v4343
    %v4349 = vmul.f32 %v4324, %v4348
    %v4350 = vmin.f32 %v4349, 1.0
    %v4351 = vmax.f32 %v4350, -1.0
    %v4352 = vmul.f32 %v2494, %v2494
    %v4353 = vmin.f32 16.0, %v4352
    %v4354 = vmul.f32 %v4353, 2.1237322e-06
    %v4355 = vadd.f32 %v4354, 0.00028619796
    %v4356 = vmul.f32 %v4353, %v4355
    %v4357 = vadd.f32 %v4356, 0.0036580483
    %v4358 = vmul.f32 %v4353, %v4357
    %v4359 = vadd.f32 %v4358, 0.05243302
    %v4360 = vmul.f32 %v4353, %v4359
    %v4361 = vadd.f32 %v4360, 0.18741608
    %v4362 = vmul.f32 %v4353, %v4361
    %v4363 = vadd.f32 %v4362, 1.1283791
    %v4364 = vmul.f32 %v2494, %v4363
    %v4365 = vmul.f32 %v4353, 3.8918573e-05
    %v4366 = vadd.f32 %v4365, 0.001143296
    %v4367 = vmul.f32 %v4353, %v4366
    %v4368 = vadd.f32 %v4367, 0.014752088
    %v4369 = vmul.f32 %v4353, %v4368
    %v4370 = vadd.f32 %v4369, 0.112945676
    %v4371 = vmul.f32 %v4353, %v4370
    %v4372 = vadd.f32 %v4371, 0.4994258
    %v4373 = vmul.f32 %v4353, %v4372
    %v4374 = vadd.f32 %v4373, 1.0
    %v4375 = vrcp.pop %v4374
    %v4376 = vmul.f32 %v4374, %v4375
    %v4377 = vsub.f32 1.0, %v4376
    %v4378 = vmul.f32 %v4375, %v4377
    %v4379 = vadd.f32 %v4375, %v4378
    %vm4380 = vweird.f32 %v4374
    %vm4381 = vweird.f32 %v4375
    %vm4382 = vmor %vm4380, %vm4381
    %v4383 = vsel %vm4382, %v4375, %v4379
    %v4384 = vand.u32 2147483647, %v4374
    %vm4385 = vcmp.eq.f32.partialorder %v4384, 8.507059e+37
    %v4386 = vand.u32 %v4374, 2147483648
    %v4387 = vor.u32 1.1754944e-38, %v4386
    %v4388 = vsel %vm4385, %v4387, %v4383
    %v4389 = vmul.f32 %v4364, %v4388
    %v4390 = vmin.f32 %v4389, 1.0
    %v4391 = vmax.f32 %v4390, -1.0
    %v4392 = vmul.f32 %v2495, %v2495
    %v4393 = vmin.f32 16.0, %v4392
    %v4394 = vmul.f32 %v4393, 2.1237322e-06
    %v4395 = vadd.f32 %v4394, 0.00028619796
    %v4396 = vmul.f32 %v4393, %v4395
    %v4397 = vadd.f32 %v4396, 0.0036580483
    %v4398 = vmul.f32 %v4393, %v4397
    %v4399 = vadd.f32 %v4398, 0.05243302
    %v4400 = vmul.f32 %v4393, %v4399
    %v4401 = vadd.f32 %v4400, 0.18741608
    %v4402 = vmul.f32 %v4393, %v4401
    %v4403 = vadd.f32 %v4402, 1.1283791
    %v4404 = vmul.f32 %v2495, %v4403
    %v4405 = vmul.f32 %v4393, 3.8918573e-05
    %v4406 = vadd.f32 %v4405, 0.001143296
    %v4407 = vmul.f32 %v4393, %v4406
    %v4408 = vadd.f32 %v4407, 0.014752088
    %v4409 = vmul.f32 %v4393, %v4408
    %v4410 = vadd.f32 %v4409, 0.112945676
    %v4411 = vmul.f32 %v4393, %v4410
    %v4412 = vadd.f32 %v4411, 0.4994258
    %v4413 = vmul.f32 %v4393, %v4412
    %v4414 = vadd.f32 %v4413, 1.0
    %v4415 = vrcp.pop %v4414
    %v4416 = vmul.f32 %v4414, %v4415
    %v4417 = vsub.f32 1.0, %v4416
    %v4418 = vmul.f32 %v4415, %v4417
    %v4419 = vadd.f32 %v4415, %v4418
    %vm4420 = vweird.f32 %v4414
    %vm4421 = vweird.f32 %v4415
    %vm4422 = vmor %vm4420, %vm4421
    %v4423 = vsel %vm4422, %v4415, %v4419
    %v4424 = vand.u32 2147483647, %v4414
    %vm4425 = vcmp.eq.f32.partialorder %v4424, 8.507059e+37
    %v4426 = vand.u32 %v4414, 2147483648
    %v4427 = vor.u32 1.1754944e-38, %v4426
    %v4428 = vsel %vm4425, %v4427, %v4423
    %v4429 = vmul.f32 %v4404, %v4428
    %v4430 = vmin.f32 %v4429, 1.0
    %v4431 = vmax.f32 %v4430, -1.0
    %v4432 = vmul.f32 %v2496, %v2496
    %v4433 = vmin.f32 16.0, %v4432
    %v4434 = vmul.f32 %v4433, 2.1237322e-06
    %v4435 = vadd.f32 %v4434, 0.00028619796
    %v4436 = vmul.f32 %v4433, %v4435
    %v4437 = vadd.f32 %v4436, 0.0036580483
    %v4438 = vmul.f32 %v4433, %v4437
    %v4439 = vadd.f32 %v4438, 0.05243302
    %v4440 = vmul.f32 %v4433, %v4439
    %v4441 = vadd.f32 %v4440, 0.18741608
    %v4442 = vmul.f32 %v4433, %v4441
    %v4443 = vadd.f32 %v4442, 1.1283791
    %v4444 = vmul.f32 %v2496, %v4443
    %v4445 = vmul.f32 %v4433, 3.8918573e-05
    %v4446 = vadd.f32 %v4445, 0.001143296
    %v4447 = vmul.f32 %v4433, %v4446
    %v4448 = vadd.f32 %v4447, 0.014752088
    %v4449 = vmul.f32 %v4433, %v4448
    %v4450 = vadd.f32 %v4449, 0.112945676
    %v4451 = vmul.f32 %v4433, %v4450
    %v4452 = vadd.f32 %v4451, 0.4994258
    %v4453 = vmul.f32 %v4433, %v4452
    %v4454 = vadd.f32 %v4453, 1.0
    %v4455 = vrcp.pop %v4454
    %v4456 = vmul.f32 %v4454, %v4455
    %v4457 = vsub.f32 1.0, %v4456
    %v4458 = vmul.f32 %v4455, %v4457
    %v4459 = vadd.f32 %v4455, %v4458
    %vm4460 = vweird.f32 %v4454
    %vm4461 = vweird.f32 %v4455
    %vm4462 = vmor %vm4460, %vm4461
    %v4463 = vsel %vm4462, %v4455, %v4459
    %v4464 = vand.u32 2147483647, %v4454
    %vm4465 = vcmp.eq.f32.partialorder %v4464, 8.507059e+37
    %v4466 = vand.u32 %v4454, 2147483648
    %v4467 = vor.u32 1.1754944e-38, %v4466
    %v4468 = vsel %vm4465, %v4467, %v4463
    %v4469 = vmul.f32 %v4444, %v4468
    %v4470 = vmin.f32 %v4469, 1.0
    %v4471 = vmax.f32 %v4470, -1.0
    %v4472 = vmul.f32 %v2497, %v2497
    %v4473 = vmin.f32 16.0, %v4472
    %v4474 = vmul.f32 %v4473, 2.1237322e-06
    %v4475 = vadd.f32 %v4474, 0.00028619796
    %v4476 = vmul.f32 %v4473, %v4475
    %v4477 = vadd.f32 %v4476, 0.0036580483
    %v4478 = vmul.f32 %v4473, %v4477
    %v4479 = vadd.f32 %v4478, 0.05243302
    %v4480 = vmul.f32 %v4473, %v4479
    %v4481 = vadd.f32 %v4480, 0.18741608
    %v4482 = vmul.f32 %v4473, %v4481
    %v4483 = vadd.f32 %v4482, 1.1283791
    %v4484 = vmul.f32 %v2497, %v4483
    %v4485 = vmul.f32 %v4473, 3.8918573e-05
    %v4486 = vadd.f32 %v4485, 0.001143296
    %v4487 = vmul.f32 %v4473, %v4486
    %v4488 = vadd.f32 %v4487, 0.014752088
    %v4489 = vmul.f32 %v4473, %v4488
    %v4490 = vadd.f32 %v4489, 0.112945676
    %v4491 = vmul.f32 %v4473, %v4490
    %v4492 = vadd.f32 %v4491, 0.4994258
    %v4493 = vmul.f32 %v4473, %v4492
    %v4494 = vadd.f32 %v4493, 1.0
    %v4495 = vrcp.pop %v4494
    %v4496 = vmul.f32 %v4494, %v4495
    %v4497 = vsub.f32 1.0, %v4496
    %v4498 = vmul.f32 %v4495, %v4497
    %v4499 = vadd.f32 %v4495, %v4498
    %vm4500 = vweird.f32 %v4494
    %vm4501 = vweird.f32 %v4495
    %vm4502 = vmor %vm4500, %vm4501
    %v4503 = vsel %vm4502, %v4495, %v4499
    %v4504 = vand.u32 2147483647, %v4494
    %vm4505 = vcmp.eq.f32.partialorder %v4504, 8.507059e+37
    %v4506 = vand.u32 %v4494, 2147483648
    %v4507 = vor.u32 1.1754944e-38, %v4506
    %v4508 = vsel %vm4505, %v4507, %v4503
    %v4509 = vmul.f32 %v4484, %v4508
    %v4510 = vmin.f32 %v4509, 1.0
    %v4511 = vmax.f32 %v4510, -1.0
    %v4512 = vmul.f32 %v2498, %v2498
    %v4513 = vmin.f32 16.0, %v4512
    %v4514 = vmul.f32 %v4513, 2.1237322e-06
    %v4515 = vadd.f32 %v4514, 0.00028619796
    %v4516 = vmul.f32 %v4513, %v4515
    %v4517 = vadd.f32 %v4516, 0.0036580483
    %v4518 = vmul.f32 %v4513, %v4517
    %v4519 = vadd.f32 %v4518, 0.05243302
    %v4520 = vmul.f32 %v4513, %v4519
    %v4521 = vadd.f32 %v4520, 0.18741608
    %v4522 = vmul.f32 %v4513, %v4521
    %v4523 = vadd.f32 %v4522, 1.1283791
    %v4524 = vmul.f32 %v2498, %v4523
    %v4525 = vmul.f32 %v4513, 3.8918573e-05
    %v4526 = vadd.f32 %v4525, 0.001143296
    %v4527 = vmul.f32 %v4513, %v4526
    %v4528 = vadd.f32 %v4527, 0.014752088
    %v4529 = vmul.f32 %v4513, %v4528
    %v4530 = vadd.f32 %v4529, 0.112945676
    %v4531 = vmul.f32 %v4513, %v4530
    %v4532 = vadd.f32 %v4531, 0.4994258
    %v4533 = vmul.f32 %v4513, %v4532
    %v4534 = vadd.f32 %v4533, 1.0
    %v4535 = vrcp.pop %v4534
    %v4536 = vmul.f32 %v4534, %v4535
    %v4537 = vsub.f32 1.0, %v4536
    %v4538 = vmul.f32 %v4535, %v4537
    %v4539 = vadd.f32 %v4535, %v4538
    %vm4540 = vweird.f32 %v4534
    %vm4541 = vweird.f32 %v4535
    %vm4542 = vmor %vm4540, %vm4541
    %v4543 = vsel %vm4542, %v4535, %v4539
    %v4544 = vand.u32 2147483647, %v4534
    %vm4545 = vcmp.eq.f32.partialorder %v4544, 8.507059e+37
    %v4546 = vand.u32 %v4534, 2147483648
    %v4547 = vor.u32 1.1754944e-38, %v4546
    %v4548 = vsel %vm4545, %v4547, %v4543
    %v4549 = vmul.f32 %v4524, %v4548
    %v4550 = vmin.f32 %v4549, 1.0
    %v4551 = vmax.f32 %v4550, -1.0
    %v4552 = vmul.f32 %v2499, %v2499
    %v4553 = vmin.f32 16.0, %v4552
    %v4554 = vmul.f32 %v4553, 2.1237322e-06
    %v4555 = vadd.f32 %v4554, 0.00028619796
    %v4556 = vmul.f32 %v4553, %v4555
    %v4557 = vadd.f32 %v4556, 0.0036580483
    %v4558 = vmul.f32 %v4553, %v4557
    %v4559 = vadd.f32 %v4558, 0.05243302
    %v4560 = vmul.f32 %v4553, %v4559
    %v4561 = vadd.f32 %v4560, 0.18741608
    %v4562 = vmul.f32 %v4553, %v4561
    %v4563 = vadd.f32 %v4562, 1.1283791
    %v4564 = vmul.f32 %v2499, %v4563
    %v4565 = vmul.f32 %v4553, 3.8918573e-05
    %v4566 = vadd.f32 %v4565, 0.001143296
    %v4567 = vmul.f32 %v4553, %v4566
    %v4568 = vadd.f32 %v4567, 0.014752088
    %v4569 = vmul.f32 %v4553, %v4568
    %v4570 = vadd.f32 %v4569, 0.112945676
    %v4571 = vmul.f32 %v4553, %v4570
    %v4572 = vadd.f32 %v4571, 0.4994258
    %v4573 = vmul.f32 %v4553, %v4572
    %v4574 = vadd.f32 %v4573, 1.0
    %v4575 = vrcp.pop %v4574
    %v4576 = vmul.f32 %v4574, %v4575
    %v4577 = vsub.f32 1.0, %v4576
    %v4578 = vmul.f32 %v4575, %v4577
    %v4579 = vadd.f32 %v4575, %v4578
    %vm4580 = vweird.f32 %v4574
    %vm4581 = vweird.f32 %v4575
    %vm4582 = vmor %vm4580, %vm4581
    %v4583 = vsel %vm4582, %v4575, %v4579
    %v4584 = vand.u32 2147483647, %v4574
    %vm4585 = vcmp.eq.f32.partialorder %v4584, 8.507059e+37
    %v4586 = vand.u32 %v4574, 2147483648
    %v4587 = vor.u32 1.1754944e-38, %v4586
    %v4588 = vsel %vm4585, %v4587, %v4583
    %v4589 = vmul.f32 %v4564, %v4588
    %v4590 = vmin.f32 %v4589, 1.0
    %v4591 = vmax.f32 %v4590, -1.0
    %v4592 = vmul.f32 %v2500, %v2500
    %v4593 = vmin.f32 16.0, %v4592
    %v4594 = vmul.f32 %v4593, 2.1237322e-06
    %v4595 = vadd.f32 %v4594, 0.00028619796
    %v4596 = vmul.f32 %v4593, %v4595
    %v4597 = vadd.f32 %v4596, 0.0036580483
    %v4598 = vmul.f32 %v4593, %v4597
    %v4599 = vadd.f32 %v4598, 0.05243302
    %v4600 = vmul.f32 %v4593, %v4599
    %v4601 = vadd.f32 %v4600, 0.18741608
    %v4602 = vmul.f32 %v4593, %v4601
    %v4603 = vadd.f32 %v4602, 1.1283791
    %v4604 = vmul.f32 %v2500, %v4603
    %v4605 = vmul.f32 %v4593, 3.8918573e-05
    %v4606 = vadd.f32 %v4605, 0.001143296
    %v4607 = vmul.f32 %v4593, %v4606
    %v4608 = vadd.f32 %v4607, 0.014752088
    %v4609 = vmul.f32 %v4593, %v4608
    %v4610 = vadd.f32 %v4609, 0.112945676
    %v4611 = vmul.f32 %v4593, %v4610
    %v4612 = vadd.f32 %v4611, 0.4994258
    %v4613 = vmul.f32 %v4593, %v4612
    %v4614 = vadd.f32 %v4613, 1.0
    %v4615 = vrcp.pop %v4614
    %v4616 = vmul.f32 %v4614, %v4615
    %v4617 = vsub.f32 1.0, %v4616
    %v4618 = vmul.f32 %v4615, %v4617
    %v4619 = vadd.f32 %v4615, %v4618
    %vm4620 = vweird.f32 %v4614
    %vm4621 = vweird.f32 %v4615
    %vm4622 = vmor %vm4620, %vm4621
    %v4623 = vsel %vm4622, %v4615, %v4619
    %v4624 = vand.u32 2147483647, %v4614
    %vm4625 = vcmp.eq.f32.partialorder %v4624, 8.507059e+37
    %v4626 = vand.u32 %v4614, 2147483648
    %v4627 = vor.u32 1.1754944e-38, %v4626
    %v4628 = vsel %vm4625, %v4627, %v4623
    %v4629 = vmul.f32 %v4604, %v4628
    %v4630 = vmin.f32 %v4629, 1.0
    %v4631 = vmax.f32 %v4630, -1.0
    %v4632 = vmul.f32 %v2501, %v2501
    %v4633 = vmin.f32 16.0, %v4632
    %v4634 = vmul.f32 %v4633, 2.1237322e-06
    %v4635 = vadd.f32 %v4634, 0.00028619796
    %v4636 = vmul.f32 %v4633, %v4635
    %v4637 = vadd.f32 %v4636, 0.0036580483
    %v4638 = vmul.f32 %v4633, %v4637
    %v4639 = vadd.f32 %v4638, 0.05243302
    %v4640 = vmul.f32 %v4633, %v4639
    %v4641 = vadd.f32 %v4640, 0.18741608
    %v4642 = vmul.f32 %v4633, %v4641
    %v4643 = vadd.f32 %v4642, 1.1283791
    %v4644 = vmul.f32 %v2501, %v4643
    %v4645 = vmul.f32 %v4633, 3.8918573e-05
    %v4646 = vadd.f32 %v4645, 0.001143296
    %v4647 = vmul.f32 %v4633, %v4646
    %v4648 = vadd.f32 %v4647, 0.014752088
    %v4649 = vmul.f32 %v4633, %v4648
    %v4650 = vadd.f32 %v4649, 0.112945676
    %v4651 = vmul.f32 %v4633, %v4650
    %v4652 = vadd.f32 %v4651, 0.4994258
    %v4653 = vmul.f32 %v4633, %v4652
    %v4654 = vadd.f32 %v4653, 1.0
    %v4655 = vrcp.pop %v4654
    %v4656 = vmul.f32 %v4654, %v4655
    %v4657 = vsub.f32 1.0, %v4656
    %v4658 = vmul.f32 %v4655, %v4657
    %v4659 = vadd.f32 %v4655, %v4658
    %vm4660 = vweird.f32 %v4654
    %vm4661 = vweird.f32 %v4655
    %vm4662 = vmor %vm4660, %vm4661
    %v4663 = vsel %vm4662, %v4655, %v4659
    %v4664 = vand.u32 2147483647, %v4654
    %vm4665 = vcmp.eq.f32.partialorder %v4664, 8.507059e+37
    %v4666 = vand.u32 %v4654, 2147483648
    %v4667 = vor.u32 1.1754944e-38, %v4666
    %v4668 = vsel %vm4665, %v4667, %v4663
    %v4669 = vmul.f32 %v4644, %v4668
    %v4670 = vmin.f32 %v4669, 1.0
    %v4671 = vmax.f32 %v4670, -1.0
    %v4672 = vmul.f32 %v2502, %v2502
    %v4673 = vmin.f32 16.0, %v4672
    %v4674 = vmul.f32 %v4673, 2.1237322e-06
    %v4675 = vadd.f32 %v4674, 0.00028619796
    %v4676 = vmul.f32 %v4673, %v4675
    %v4677 = vadd.f32 %v4676, 0.0036580483
    %v4678 = vmul.f32 %v4673, %v4677
    %v4679 = vadd.f32 %v4678, 0.05243302
    %v4680 = vmul.f32 %v4673, %v4679
    %v4681 = vadd.f32 %v4680, 0.18741608
    %v4682 = vmul.f32 %v4673, %v4681
    %v4683 = vadd.f32 %v4682, 1.1283791
    %v4684 = vmul.f32 %v2502, %v4683
    %v4685 = vmul.f32 %v4673, 3.8918573e-05
    %v4686 = vadd.f32 %v4685, 0.001143296
    %v4687 = vmul.f32 %v4673, %v4686
    %v4688 = vadd.f32 %v4687, 0.014752088
    %v4689 = vmul.f32 %v4673, %v4688
    %v4690 = vadd.f32 %v4689, 0.112945676
    %v4691 = vmul.f32 %v4673, %v4690
    %v4692 = vadd.f32 %v4691, 0.4994258
    %v4693 = vmul.f32 %v4673, %v4692
    %v4694 = vadd.f32 %v4693, 1.0
    %v4695 = vrcp.pop %v4694
    %v4696 = vmul.f32 %v4694, %v4695
    %v4697 = vsub.f32 1.0, %v4696
    %v4698 = vmul.f32 %v4695, %v4697
    %v4699 = vadd.f32 %v4695, %v4698
    %vm4700 = vweird.f32 %v4694
    %vm4701 = vweird.f32 %v4695
    %vm4702 = vmor %vm4700, %vm4701
    %v4703 = vsel %vm4702, %v4695, %v4699
    %v4704 = vand.u32 2147483647, %v4694
    %vm4705 = vcmp.eq.f32.partialorder %v4704, 8.507059e+37
    %v4706 = vand.u32 %v4694, 2147483648
    %v4707 = vor.u32 1.1754944e-38, %v4706
    %v4708 = vsel %vm4705, %v4707, %v4703
    %v4709 = vmul.f32 %v4684, %v4708
    %v4710 = vmin.f32 %v4709, 1.0
    %v4711 = vmax.f32 %v4710, -1.0
    %v4712 = vmul.f32 %v2503, %v2503
    %v4713 = vmin.f32 16.0, %v4712
    %v4714 = vmul.f32 %v4713, 2.1237322e-06
    %v4715 = vadd.f32 %v4714, 0.00028619796
    %v4716 = vmul.f32 %v4713, %v4715
    %v4717 = vadd.f32 %v4716, 0.0036580483
    %v4718 = vmul.f32 %v4713, %v4717
    %v4719 = vadd.f32 %v4718, 0.05243302
    %v4720 = vmul.f32 %v4713, %v4719
    %v4721 = vadd.f32 %v4720, 0.18741608
    %v4722 = vmul.f32 %v4713, %v4721
    %v4723 = vadd.f32 %v4722, 1.1283791
    %v4724 = vmul.f32 %v2503, %v4723
    %v4725 = vmul.f32 %v4713, 3.8918573e-05
    %v4726 = vadd.f32 %v4725, 0.001143296
    %v4727 = vmul.f32 %v4713, %v4726
    %v4728 = vadd.f32 %v4727, 0.014752088
    %v4729 = vmul.f32 %v4713, %v4728
    %v4730 = vadd.f32 %v4729, 0.112945676
    %v4731 = vmul.f32 %v4713, %v4730
    %v4732 = vadd.f32 %v4731, 0.4994258
    %v4733 = vmul.f32 %v4713, %v4732
    %v4734 = vadd.f32 %v4733, 1.0
    %v4735 = vrcp.pop %v4734
    %v4736 = vmul.f32 %v4734, %v4735
    %v4737 = vsub.f32 1.0, %v4736
    %v4738 = vmul.f32 %v4735, %v4737
    %v4739 = vadd.f32 %v4735, %v4738
    %vm4740 = vweird.f32 %v4734
    %vm4741 = vweird.f32 %v4735
    %vm4742 = vmor %vm4740, %vm4741
    %v4743 = vsel %vm4742, %v4735, %v4739
    %v4744 = vand.u32 2147483647, %v4734
    %vm4745 = vcmp.eq.f32.partialorder %v4744, 8.507059e+37
    %v4746 = vand.u32 %v4734, 2147483648
    %v4747 = vor.u32 1.1754944e-38, %v4746
    %v4748 = vsel %vm4745, %v4747, %v4743
    %v4749 = vmul.f32 %v4724, %v4748
    %v4750 = vmin.f32 %v4749, 1.0
    %v4751 = vmax.f32 %v4750, -1.0
    %v4752 = vmul.f32 %v2504, %v2504
    %v4753 = vmin.f32 16.0, %v4752
    %v4754 = vmul.f32 %v4753, 2.1237322e-06
    %v4755 = vadd.f32 %v4754, 0.00028619796
    %v4756 = vmul.f32 %v4753, %v4755
    %v4757 = vadd.f32 %v4756, 0.0036580483
    %v4758 = vmul.f32 %v4753, %v4757
    %v4759 = vadd.f32 %v4758, 0.05243302
    %v4760 = vmul.f32 %v4753, %v4759
    %v4761 = vadd.f32 %v4760, 0.18741608
    %v4762 = vmul.f32 %v4753, %v4761
    %v4763 = vadd.f32 %v4762, 1.1283791
    %v4764 = vmul.f32 %v2504, %v4763
    %v4765 = vmul.f32 %v4753, 3.8918573e-05
    %v4766 = vadd.f32 %v4765, 0.001143296
    %v4767 = vmul.f32 %v4753, %v4766
    %v4768 = vadd.f32 %v4767, 0.014752088
    %v4769 = vmul.f32 %v4753, %v4768
    %v4770 = vadd.f32 %v4769, 0.112945676
    %v4771 = vmul.f32 %v4753, %v4770
    %v4772 = vadd.f32 %v4771, 0.4994258
    %v4773 = vmul.f32 %v4753, %v4772
    %v4774 = vadd.f32 %v4773, 1.0
    %v4775 = vrcp.pop %v4774
    %v4776 = vmul.f32 %v4774, %v4775
    %v4777 = vsub.f32 1.0, %v4776
    %v4778 = vmul.f32 %v4775, %v4777
    %v4779 = vadd.f32 %v4775, %v4778
    %vm4780 = vweird.f32 %v4774
    %vm4781 = vweird.f32 %v4775
    %vm4782 = vmor %vm4780, %vm4781
    %v4783 = vsel %vm4782, %v4775, %v4779
    %v4784 = vand.u32 2147483647, %v4774
    %vm4785 = vcmp.eq.f32.partialorder %v4784, 8.507059e+37
    %v4786 = vand.u32 %v4774, 2147483648
    %v4787 = vor.u32 1.1754944e-38, %v4786
    %v4788 = vsel %vm4785, %v4787, %v4783
    %v4789 = vmul.f32 %v4764, %v4788
    %v4790 = vmin.f32 %v4789, 1.0
    %v4791 = vmax.f32 %v4790, -1.0
    %v4792 = vmul.f32 %v2505, %v2505
    %v4793 = vmin.f32 16.0, %v4792
    %v4794 = vmul.f32 %v4793, 2.1237322e-06
    %v4795 = vadd.f32 %v4794, 0.00028619796
    %v4796 = vmul.f32 %v4793, %v4795
    %v4797 = vadd.f32 %v4796, 0.0036580483
    %v4798 = vmul.f32 %v4793, %v4797
    %v4799 = vadd.f32 %v4798, 0.05243302
    %v4800 = vmul.f32 %v4793, %v4799
    %v4801 = vadd.f32 %v4800, 0.18741608
    %v4802 = vmul.f32 %v4793, %v4801
    %v4803 = vadd.f32 %v4802, 1.1283791
    %v4804 = vmul.f32 %v2505, %v4803
    %v4805 = vmul.f32 %v4793, 3.8918573e-05
    %v4806 = vadd.f32 %v4805, 0.001143296
    %v4807 = vmul.f32 %v4793, %v4806
    %v4808 = vadd.f32 %v4807, 0.014752088
    %v4809 = vmul.f32 %v4793, %v4808
    %v4810 = vadd.f32 %v4809, 0.112945676
    %v4811 = vmul.f32 %v4793, %v4810
    %v4812 = vadd.f32 %v4811, 0.4994258
    %v4813 = vmul.f32 %v4793, %v4812
    %v4814 = vadd.f32 %v4813, 1.0
    %v4815 = vrcp.pop %v4814
    %v4816 = vmul.f32 %v4814, %v4815
    %v4817 = vsub.f32 1.0, %v4816
    %v4818 = vmul.f32 %v4815, %v4817
    %v4819 = vadd.f32 %v4815, %v4818
    %vm4820 = vweird.f32 %v4814
    %vm4821 = vweird.f32 %v4815
    %vm4822 = vmor %vm4820, %vm4821
    %v4823 = vsel %vm4822, %v4815, %v4819
    %v4824 = vand.u32 2147483647, %v4814
    %vm4825 = vcmp.eq.f32.partialorder %v4824, 8.507059e+37
    %v4826 = vand.u32 %v4814, 2147483648
    %v4827 = vor.u32 1.1754944e-38, %v4826
    %v4828 = vsel %vm4825, %v4827, %v4823
    %v4829 = vmul.f32 %v4804, %v4828
    %v4830 = vmin.f32 %v4829, 1.0
    %v4831 = vmax.f32 %v4830, -1.0
    %v4832 = vmul.f32 %v2506, %v2506
    %v4833 = vmin.f32 16.0, %v4832
    %v4834 = vmul.f32 %v4833, 2.1237322e-06
    %v4835 = vadd.f32 %v4834, 0.00028619796
    %v4836 = vmul.f32 %v4833, %v4835
    %v4837 = vadd.f32 %v4836, 0.0036580483
    %v4838 = vmul.f32 %v4833, %v4837
    %v4839 = vadd.f32 %v4838, 0.05243302
    %v4840 = vmul.f32 %v4833, %v4839
    %v4841 = vadd.f32 %v4840, 0.18741608
    %v4842 = vmul.f32 %v4833, %v4841
    %v4843 = vadd.f32 %v4842, 1.1283791
    %v4844 = vmul.f32 %v2506, %v4843
    %v4845 = vmul.f32 %v4833, 3.8918573e-05
    %v4846 = vadd.f32 %v4845, 0.001143296
    %v4847 = vmul.f32 %v4833, %v4846
    %v4848 = vadd.f32 %v4847, 0.014752088
    %v4849 = vmul.f32 %v4833, %v4848
    %v4850 = vadd.f32 %v4849, 0.112945676
    %v4851 = vmul.f32 %v4833, %v4850
    %v4852 = vadd.f32 %v4851, 0.4994258
    %v4853 = vmul.f32 %v4833, %v4852
    %v4854 = vadd.f32 %v4853, 1.0
    %v4855 = vrcp.pop %v4854
    %v4856 = vmul.f32 %v4854, %v4855
    %v4857 = vsub.f32 1.0, %v4856
    %v4858 = vmul.f32 %v4855, %v4857
    %v4859 = vadd.f32 %v4855, %v4858
    %vm4860 = vweird.f32 %v4854
    %vm4861 = vweird.f32 %v4855
    %vm4862 = vmor %vm4860, %vm4861
    %v4863 = vsel %vm4862, %v4855, %v4859
    %v4864 = vand.u32 2147483647, %v4854
    %vm4865 = vcmp.eq.f32.partialorder %v4864, 8.507059e+37
    %v4866 = vand.u32 %v4854, 2147483648
    %v4867 = vor.u32 1.1754944e-38, %v4866
    %v4868 = vsel %vm4865, %v4867, %v4863
    %v4869 = vmul.f32 %v4844, %v4868
    %v4870 = vmin.f32 %v4869, 1.0
    %v4871 = vmax.f32 %v4870, -1.0
    %v4872 = vmul.f32 %v2507, %v2507
    %v4873 = vmin.f32 16.0, %v4872
    %v4874 = vmul.f32 %v4873, 2.1237322e-06
    %v4875 = vadd.f32 %v4874, 0.00028619796
    %v4876 = vmul.f32 %v4873, %v4875
    %v4877 = vadd.f32 %v4876, 0.0036580483
    %v4878 = vmul.f32 %v4873, %v4877
    %v4879 = vadd.f32 %v4878, 0.05243302
    %v4880 = vmul.f32 %v4873, %v4879
    %v4881 = vadd.f32 %v4880, 0.18741608
    %v4882 = vmul.f32 %v4873, %v4881
    %v4883 = vadd.f32 %v4882, 1.1283791
    %v4884 = vmul.f32 %v2507, %v4883
    %v4885 = vmul.f32 %v4873, 3.8918573e-05
    %v4886 = vadd.f32 %v4885, 0.001143296
    %v4887 = vmul.f32 %v4873, %v4886
    %v4888 = vadd.f32 %v4887, 0.014752088
    %v4889 = vmul.f32 %v4873, %v4888
    %v4890 = vadd.f32 %v4889, 0.112945676
    %v4891 = vmul.f32 %v4873, %v4890
    %v4892 = vadd.f32 %v4891, 0.4994258
    %v4893 = vmul.f32 %v4873, %v4892
    %v4894 = vadd.f32 %v4893, 1.0
    %v4895 = vrcp.pop %v4894
    %v4896 = vmul.f32 %v4894, %v4895
    %v4897 = vsub.f32 1.0, %v4896
    %v4898 = vmul.f32 %v4895, %v4897
    %v4899 = vadd.f32 %v4895, %v4898
    %vm4900 = vweird.f32 %v4894
    %vm4901 = vweird.f32 %v4895
    %vm4902 = vmor %vm4900, %vm4901
    %v4903 = vsel %vm4902, %v4895, %v4899
    %v4904 = vand.u32 2147483647, %v4894
    %vm4905 = vcmp.eq.f32.partialorder %v4904, 8.507059e+37
    %v4906 = vand.u32 %v4894, 2147483648
    %v4907 = vor.u32 1.1754944e-38, %v4906
    %v4908 = vsel %vm4905, %v4907, %v4903
    %v4909 = vmul.f32 %v4884, %v4908
    %v4910 = vmin.f32 %v4909, 1.0
    %v4911 = vmax.f32 %v4910, -1.0
    %v4912 = vmul.f32 %v2508, %v2508
    %v4913 = vmin.f32 16.0, %v4912
    %v4914 = vmul.f32 %v4913, 2.1237322e-06
    %v4915 = vadd.f32 %v4914, 0.00028619796
    %v4916 = vmul.f32 %v4913, %v4915
    %v4917 = vadd.f32 %v4916, 0.0036580483
    %v4918 = vmul.f32 %v4913, %v4917
    %v4919 = vadd.f32 %v4918, 0.05243302
    %v4920 = vmul.f32 %v4913, %v4919
    %v4921 = vadd.f32 %v4920, 0.18741608
    %v4922 = vmul.f32 %v4913, %v4921
    %v4923 = vadd.f32 %v4922, 1.1283791
    %v4924 = vmul.f32 %v2508, %v4923
    %v4925 = vmul.f32 %v4913, 3.8918573e-05
    %v4926 = vadd.f32 %v4925, 0.001143296
    %v4927 = vmul.f32 %v4913, %v4926
    %v4928 = vadd.f32 %v4927, 0.014752088
    %v4929 = vmul.f32 %v4913, %v4928
    %v4930 = vadd.f32 %v4929, 0.112945676
    %v4931 = vmul.f32 %v4913, %v4930
    %v4932 = vadd.f32 %v4931, 0.4994258
    %v4933 = vmul.f32 %v4913, %v4932
    %v4934 = vadd.f32 %v4933, 1.0
    %v4935 = vrcp.pop %v4934
    %v4936 = vmul.f32 %v4934, %v4935
    %v4937 = vsub.f32 1.0, %v4936
    %v4938 = vmul.f32 %v4935, %v4937
    %v4939 = vadd.f32 %v4935, %v4938
    %vm4940 = vweird.f32 %v4934
    %vm4941 = vweird.f32 %v4935
    %vm4942 = vmor %vm4940, %vm4941
    %v4943 = vsel %vm4942, %v4935, %v4939
    %v4944 = vand.u32 2147483647, %v4934
    %vm4945 = vcmp.eq.f32.partialorder %v4944, 8.507059e+37
    %v4946 = vand.u32 %v4934, 2147483648
    %v4947 = vor.u32 1.1754944e-38, %v4946
    %v4948 = vsel %vm4945, %v4947, %v4943
    %v4949 = vmul.f32 %v4924, %v4948
    %v4950 = vmin.f32 %v4949, 1.0
    %v4951 = vmax.f32 %v4950, -1.0
    %v4952 = vmul.f32 %v2509, %v2509
    %v4953 = vmin.f32 16.0, %v4952
    %v4954 = vmul.f32 %v4953, 2.1237322e-06
    %v4955 = vadd.f32 %v4954, 0.00028619796
    %v4956 = vmul.f32 %v4953, %v4955
    %v4957 = vadd.f32 %v4956, 0.0036580483
    %v4958 = vmul.f32 %v4953, %v4957
    %v4959 = vadd.f32 %v4958, 0.05243302
    %v4960 = vmul.f32 %v4953, %v4959
    %v4961 = vadd.f32 %v4960, 0.18741608
    %v4962 = vmul.f32 %v4953, %v4961
    %v4963 = vadd.f32 %v4962, 1.1283791
    %v4964 = vmul.f32 %v2509, %v4963
    %v4965 = vmul.f32 %v4953, 3.8918573e-05
    %v4966 = vadd.f32 %v4965, 0.001143296
    %v4967 = vmul.f32 %v4953, %v4966
    %v4968 = vadd.f32 %v4967, 0.014752088
    %v4969 = vmul.f32 %v4953, %v4968
    %v4970 = vadd.f32 %v4969, 0.112945676
    %v4971 = vmul.f32 %v4953, %v4970
    %v4972 = vadd.f32 %v4971, 0.4994258
    %v4973 = vmul.f32 %v4953, %v4972
    %v4974 = vadd.f32 %v4973, 1.0
    %v4975 = vrcp.pop %v4974
    %v4976 = vmul.f32 %v4974, %v4975
    %v4977 = vsub.f32 1.0, %v4976
    %v4978 = vmul.f32 %v4975, %v4977
    %v4979 = vadd.f32 %v4975, %v4978
    %vm4980 = vweird.f32 %v4974
    %vm4981 = vweird.f32 %v4975
    %vm4982 = vmor %vm4980, %vm4981
    %v4983 = vsel %vm4982, %v4975, %v4979
    %v4984 = vand.u32 2147483647, %v4974
    %vm4985 = vcmp.eq.f32.partialorder %v4984, 8.507059e+37
    %v4986 = vand.u32 %v4974, 2147483648
    %v4987 = vor.u32 1.1754944e-38, %v4986
    %v4988 = vsel %vm4985, %v4987, %v4983
    %v4989 = vmul.f32 %v4964, %v4988
    %v4990 = vmin.f32 %v4989, 1.0
    %v4991 = vmax.f32 %v4990, -1.0
    %v4992 = vmul.f32 %v2510, %v2510
    %v4993 = vmin.f32 16.0, %v4992
    %v4994 = vmul.f32 %v4993, 2.1237322e-06
    %v4995 = vadd.f32 %v4994, 0.00028619796
    %v4996 = vmul.f32 %v4993, %v4995
    %v4997 = vadd.f32 %v4996, 0.0036580483
    %v4998 = vmul.f32 %v4993, %v4997
    %v4999 = vadd.f32 %v4998, 0.05243302
    %v5000 = vmul.f32 %v4993, %v4999
    %v5001 = vadd.f32 %v5000, 0.18741608
    %v5002 = vmul.f32 %v4993, %v5001
    %v5003 = vadd.f32 %v5002, 1.1283791
    %v5004 = vmul.f32 %v2510, %v5003
    %v5005 = vmul.f32 %v4993, 3.8918573e-05
    %v5006 = vadd.f32 %v5005, 0.001143296
    %v5007 = vmul.f32 %v4993, %v5006
    %v5008 = vadd.f32 %v5007, 0.014752088
    %v5009 = vmul.f32 %v4993, %v5008
    %v5010 = vadd.f32 %v5009, 0.112945676
    %v5011 = vmul.f32 %v4993, %v5010
    %v5012 = vadd.f32 %v5011, 0.4994258
    %v5013 = vmul.f32 %v4993, %v5012
    %v5014 = vadd.f32 %v5013, 1.0
    %v5015 = vrcp.pop %v5014
    %v5016 = vmul.f32 %v5014, %v5015
    %v5017 = vsub.f32 1.0, %v5016
    %v5018 = vmul.f32 %v5015, %v5017
    %v5019 = vadd.f32 %v5015, %v5018
    %vm5020 = vweird.f32 %v5014
    %vm5021 = vweird.f32 %v5015
    %vm5022 = vmor %vm5020, %vm5021
    %v5023 = vsel %vm5022, %v5015, %v5019
    %v5024 = vand.u32 2147483647, %v5014
    %vm5025 = vcmp.eq.f32.partialorder %v5024, 8.507059e+37
    %v5026 = vand.u32 %v5014, 2147483648
    %v5027 = vor.u32 1.1754944e-38, %v5026
    %v5028 = vsel %vm5025, %v5027, %v5023
    %v5029 = vmul.f32 %v5004, %v5028
    %v5030 = vmin.f32 %v5029, 1.0
    %v5031 = vmax.f32 %v5030, -1.0
    %v5032 = vmul.f32 %v2511, %v2511
    %v5033 = vmin.f32 16.0, %v5032
    %v5034 = vmul.f32 %v5033, 2.1237322e-06
    %v5035 = vadd.f32 %v5034, 0.00028619796
    %v5036 = vmul.f32 %v5033, %v5035
    %v5037 = vadd.f32 %v5036, 0.0036580483
    %v5038 = vmul.f32 %v5033, %v5037
    %v5039 = vadd.f32 %v5038, 0.05243302
    %v5040 = vmul.f32 %v5033, %v5039
    %v5041 = vadd.f32 %v5040, 0.18741608
    %v5042 = vmul.f32 %v5033, %v5041
    %v5043 = vadd.f32 %v5042, 1.1283791
    %v5044 = vmul.f32 %v2511, %v5043
    %v5045 = vmul.f32 %v5033, 3.8918573e-05
    %v5046 = vadd.f32 %v5045, 0.001143296
    %v5047 = vmul.f32 %v5033, %v5046
    %v5048 = vadd.f32 %v5047, 0.014752088
    %v5049 = vmul.f32 %v5033, %v5048
    %v5050 = vadd.f32 %v5049, 0.112945676
    %v5051 = vmul.f32 %v5033, %v5050
    %v5052 = vadd.f32 %v5051, 0.4994258
    %v5053 = vmul.f32 %v5033, %v5052
    %v5054 = vadd.f32 %v5053, 1.0
    %v5055 = vrcp.pop %v5054
    %v5056 = vmul.f32 %v5054, %v5055
    %v5057 = vsub.f32 1.0, %v5056
    %v5058 = vmul.f32 %v5055, %v5057
    %v5059 = vadd.f32 %v5055, %v5058
    %vm5060 = vweird.f32 %v5054
    %vm5061 = vweird.f32 %v5055
    %vm5062 = vmor %vm5060, %vm5061
    %v5063 = vsel %vm5062, %v5055, %v5059
    %v5064 = vand.u32 2147483647, %v5054
    %vm5065 = vcmp.eq.f32.partialorder %v5064, 8.507059e+37
    %v5066 = vand.u32 %v5054, 2147483648
    %v5067 = vor.u32 1.1754944e-38, %v5066
    %v5068 = vsel %vm5065, %v5067, %v5063
    %v5069 = vmul.f32 %v5044, %v5068
    %v5070 = vmin.f32 %v5069, 1.0
    %v5071 = vmax.f32 %v5070, -1.0
    %v5072 = vadd.f32 %v2551, 1.0
    %v5073 = vadd.f32 %v2591, 1.0
    %v5074 = vadd.f32 %v2631, 1.0
    %v5075 = vadd.f32 %v2671, 1.0
    %v5076 = vadd.f32 %v2711, 1.0
    %v5077 = vadd.f32 %v2751, 1.0
    %v5078 = vadd.f32 %v2791, 1.0
    %v5079 = vadd.f32 %v2831, 1.0
    %v5080 = vadd.f32 %v2871, 1.0
    %v5081 = vadd.f32 %v2911, 1.0
    %v5082 = vadd.f32 %v2951, 1.0
    %v5083 = vadd.f32 %v2991, 1.0
    %v5084 = vadd.f32 %v3031, 1.0
    %v5085 = vadd.f32 %v3071, 1.0
    %v5086 = vadd.f32 %v3111, 1.0
    %v5087 = vadd.f32 %v3151, 1.0
    %v5088 = vadd.f32 %v3191, 1.0
    %v5089 = vadd.f32 %v3231, 1.0
    %v5090 = vadd.f32 %v3271, 1.0
    %v5091 = vadd.f32 %v3311, 1.0
    %v5092 = vadd.f32 %v3351, 1.0
    %v5093 = vadd.f32 %v3391, 1.0
    %v5094 = vadd.f32 %v3431, 1.0
    %v5095 = vadd.f32 %v3471, 1.0
    %v5096 = vadd.f32 %v3511, 1.0
    %v5097 = vadd.f32 %v3551, 1.0
    %v5098 = vadd.f32 %v3591, 1.0
    %v5099 = vadd.f32 %v3631, 1.0
    %v5100 = vadd.f32 %v3671, 1.0
    %v5101 = vadd.f32 %v3711, 1.0
    %v5102 = vadd.f32 %v3751, 1.0
    %v5103 = vadd.f32 %v3791, 1.0
    %v5104 = vadd.f32 %v3831, 1.0
    %v5105 = vadd.f32 %v3871, 1.0
    %v5106 = vadd.f32 %v3911, 1.0
    %v5107 = vadd.f32 %v3951, 1.0
    %v5108 = vadd.f32 %v3991, 1.0
    %v5109 = vadd.f32 %v4031, 1.0
    %v5110 = vadd.f32 %v4071, 1.0
    %v5111 = vadd.f32 %v4111, 1.0
    %v5112 = vadd.f32 %v4151, 1.0
    %v5113 = vadd.f32 %v4191, 1.0
    %v5114 = vadd.f32 %v4231, 1.0
    %v5115 = vadd.f32 %v4271, 1.0
    %v5116 = vadd.f32 %v4311, 1.0
    %v5117 = vadd.f32 %v4351, 1.0
    %v5118 = vadd.f32 %v4391, 1.0
    %v5119 = vadd.f32 %v4431, 1.0
    %v5120 = vadd.f32 %v4471, 1.0
    %v5121 = vadd.f32 %v4511, 1.0
    %v5122 = vadd.f32 %v4551, 1.0
    %v5123 = vadd.f32 %v4591, 1.0
    %v5124 = vadd.f32 %v4631, 1.0
    %v5125 = vadd.f32 %v4671, 1.0
    %v5126 = vadd.f32 %v4711, 1.0
    %v5127 = vadd.f32 %v4751, 1.0
    %v5128 = vadd.f32 %v4791, 1.0
    %v5129 = vadd.f32 %v4831, 1.0
    %v5130 = vadd.f32 %v4871, 1.0
    %v5131 = vadd.f32 %v4911, 1.0
    %v5132 = vadd.f32 %v4951, 1.0
    %v5133 = vadd.f32 %v4991, 1.0
    %v5134 = vadd.f32 %v5031, 1.0
    %v5135 = vadd.f32 %v5071, 1.0
    %v5136 = vmul.f32 %v2384, %v5072
    %v5137 = vmul.f32 %v2385, %v5073
    %v5138 = vmul.f32 %v2386, %v5074
    %v5139 = vmul.f32 %v2387, %v5075
    %v5140 = vmul.f32 %v2388, %v5076
    %v5141 = vmul.f32 %v2389, %v5077
    %v5142 = vmul.f32 %v2390, %v5078
    %v5143 = vmul.f32 %v2391, %v5079
    %v5144 = vmul.f32 %v2392, %v5080
    %v5145 = vmul.f32 %v2393, %v5081
    %v5146 = vmul.f32 %v2394, %v5082
    %v5147 = vmul.f32 %v2395, %v5083
    %v5148 = vmul.f32 %v2396, %v5084
    %v5149 = vmul.f32 %v2397, %v5085
    %v5150 = vmul.f32 %v2398, %v5086
    %v5151 = vmul.f32 %v2399, %v5087
    %v5152 = vmul.f32 %v2400, %v5088
    %v5153 = vmul.f32 %v2401, %v5089
    %v5154 = vmul.f32 %v2402, %v5090
    %v5155 = vmul.f32 %v2403, %v5091
    %v5156 = vmul.f32 %v2404, %v5092
    %v5157 = vmul.f32 %v2405, %v5093
    %v5158 = vmul.f32 %v2406, %v5094
    %v5159 = vmul.f32 %v2407, %v5095
    %v5160 = vmul.f32 %v2408, %v5096
    %v5161 = vmul.f32 %v2409, %v5097
    %v5162 = vmul.f32 %v2410, %v5098
    %v5163 = vmul.f32 %v2411, %v5099
    %v5164 = vmul.f32 %v2412, %v5100
    %v5165 = vmul.f32 %v2413, %v5101
    %v5166 = vmul.f32 %v2414, %v5102
    %v5167 = vmul.f32 %v2415, %v5103
    %v5168 = vmul.f32 %v2416, %v5104
    %v5169 = vmul.f32 %v2417, %v5105
    %v5170 = vmul.f32 %v2418, %v5106
    %v5171 = vmul.f32 %v2419, %v5107
    %v5172 = vmul.f32 %v2420, %v5108
    %v5173 = vmul.f32 %v2421, %v5109
    %v5174 = vmul.f32 %v2422, %v5110
    %v5175 = vmul.f32 %v2423, %v5111
    %v5176 = vmul.f32 %v2424, %v5112
    %v5177 = vmul.f32 %v2425, %v5113
    %v5178 = vmul.f32 %v2426, %v5114
    %v5179 = vmul.f32 %v2427, %v5115
    %v5180 = vmul.f32 %v2428, %v5116
    %v5181 = vmul.f32 %v2429, %v5117
    %v5182 = vmul.f32 %v2430, %v5118
    %v5183 = vmul.f32 %v2431, %v5119
    %v5184 = vmul.f32 %v2432, %v5120
    %v5185 = vmul.f32 %v2433, %v5121
    %v5186 = vmul.f32 %v2434, %v5122
    %v5187 = vmul.f32 %v2435, %v5123
    %v5188 = vmul.f32 %v2436, %v5124
    %v5189 = vmul.f32 %v2437, %v5125
    %v5190 = vmul.f32 %v2438, %v5126
    %v5191 = vmul.f32 %v2439, %v5127
    %v5192 = vmul.f32 %v2440, %v5128
    %v5193 = vmul.f32 %v2441, %v5129
    %v5194 = vmul.f32 %v2442, %v5130
    %v5195 = vmul.f32 %v2443, %v5131
    %v5196 = vmul.f32 %v2444, %v5132
    %v5197 = vmul.f32 %v2445, %v5133
    %v5198 = vmul.f32 %v2446, %v5134
    %v5199 = vmul.f32 %v2447, %v5135
    %v5200 = vpack.c.bf16 %v5140, %v5136
    %v5201 = vpack.c.bf16 %v5141, %v5137
    %v5202 = vpack.c.bf16 %v5142, %v5138
    %v5203 = vpack.c.bf16 %v5143, %v5139
    %v5204 = vpack.c.bf16 %v5148, %v5144
    %v5205 = vpack.c.bf16 %v5149, %v5145
    %v5206 = vpack.c.bf16 %v5150, %v5146
    %v5207 = vpack.c.bf16 %v5151, %v5147
    %v5208 = vpack.c.bf16 %v5156, %v5152
    %v5209 = vpack.c.bf16 %v5157, %v5153
    %v5210 = vpack.c.bf16 %v5158, %v5154
    %v5211 = vpack.c.bf16 %v5159, %v5155
    %v5212 = vpack.c.bf16 %v5164, %v5160
    %v5213 = vpack.c.bf16 %v5165, %v5161
    %v5214 = vpack.c.bf16 %v5166, %v5162
    %v5215 = vpack.c.bf16 %v5167, %v5163
    %v5216 = vpack.c.bf16 %v5172, %v5168
    %v5217 = vpack.c.bf16 %v5173, %v5169
    %v5218 = vpack.c.bf16 %v5174, %v5170
    %v5219 = vpack.c.bf16 %v5175, %v5171
    %v5220 = vpack.c.bf16 %v5180, %v5176
    %v5221 = vpack.c.bf16 %v5181, %v5177
    %v5222 = vpack.c.bf16 %v5182, %v5178
    %v5223 = vpack.c.bf16 %v5183, %v5179
    %v5224 = vpack.c.bf16 %v5188, %v5184
    %v5225 = vpack.c.bf16 %v5189, %v5185
    %v5226 = vpack.c.bf16 %v5190, %v5186
    %v5227 = vpack.c.bf16 %v5191, %v5187
    %v5228 = vpack.c.bf16 %v5196, %v5192
    %v5229 = vpack.c.bf16 %v5197, %v5193
    %v5230 = vpack.c.bf16 %v5198, %v5194
    %v5231 = vpack.c.bf16 %v5199, %v5195
    %v5232 = vld [vmem:[%s10] sm:$0xf]
    %v5233 = vld [vmem:[%s10 + $0x4] sm:$0xf]
    %v5234 = vld [vmem:[%s10 + $0x8] sm:$0xf]
    %v5235 = vld [vmem:[%s10 + $0xc] sm:$0xf]
    %v5236 = vld [vmem:[%s10 + $0x10] sm:$0xf]
    %v5237 = vld [vmem:[%s10 + $0x14] sm:$0xf]
    %v5238 = vld [vmem:[%s10 + $0x18] sm:$0xf]
    %v5239 = vld [vmem:[%s10 + $0x1c] sm:$0xf]
    %v5240 = vld [vmem:[%s10 + $0x20] sm:$0xf]
    %v5241 = vld [vmem:[%s10 + $0x24] sm:$0xf]
    %v5242 = vld [vmem:[%s10 + $0x28] sm:$0xf]
    %v5243 = vld [vmem:[%s10 + $0x2c] sm:$0xf]
    %v5244 = vld [vmem:[%s10 + $0x30] sm:$0xf]
    %v5245 = vld [vmem:[%s10 + $0x34] sm:$0xf]
    %v5246 = vld [vmem:[%s10 + $0x38] sm:$0xf]
    %v5247 = vld [vmem:[%s10 + $0x3c] sm:$0xf]
    %v5248 = vld [vmem:[%s10 + $0x40] sm:$0xf]
    %v5249 = vld [vmem:[%s10 + $0x44] sm:$0xf]
    %v5250 = vld [vmem:[%s10 + $0x48] sm:$0xf]
    %v5251 = vld [vmem:[%s10 + $0x4c] sm:$0xf]
    %v5252 = vld [vmem:[%s10 + $0x50] sm:$0xf]
    %v5253 = vld [vmem:[%s10 + $0x54] sm:$0xf]
    %v5254 = vld [vmem:[%s10 + $0x58] sm:$0xf]
    %v5255 = vld [vmem:[%s10 + $0x5c] sm:$0xf]
    %v5256 = vld [vmem:[%s10 + $0x60] sm:$0xf]
    %v5257 = vld [vmem:[%s10 + $0x64] sm:$0xf]
    %v5258 = vld [vmem:[%s10 + $0x68] sm:$0xf]
    %v5259 = vld [vmem:[%s10 + $0x6c] sm:$0xf]
    %v5260 = vld [vmem:[%s10 + $0x70] sm:$0xf]
    %v5261 = vld [vmem:[%s10 + $0x74] sm:$0xf]
    %v5262 = vld [vmem:[%s10 + $0x78] sm:$0xf]
    %v5263 = vld [vmem:[%s10 + $0x7c] sm:$0xf]
    %v5264 = vld [vmem:[%s10 + $0x80] sm:$0xf]
    %v5265 = vld [vmem:[%s10 + $0x84] sm:$0xf]
    %v5266 = vld [vmem:[%s10 + $0x88] sm:$0xf]
    %v5267 = vld [vmem:[%s10 + $0x8c] sm:$0xf]
    %v5268 = vld [vmem:[%s10 + $0x90] sm:$0xf]
    %v5269 = vld [vmem:[%s10 + $0x94] sm:$0xf]
    %v5270 = vld [vmem:[%s10 + $0x98] sm:$0xf]
    %v5271 = vld [vmem:[%s10 + $0x9c] sm:$0xf]
    %v5272 = vld [vmem:[%s10 + $0xa0] sm:$0xf]
    %v5273 = vld [vmem:[%s10 + $0xa4] sm:$0xf]
    %v5274 = vld [vmem:[%s10 + $0xa8] sm:$0xf]
    %v5275 = vld [vmem:[%s10 + $0xac] sm:$0xf]
    %v5276 = vld [vmem:[%s10 + $0xb0] sm:$0xf]
    %v5277 = vld [vmem:[%s10 + $0xb4] sm:$0xf]
    %v5278 = vld [vmem:[%s10 + $0xb8] sm:$0xf]
    %v5279 = vld [vmem:[%s10 + $0xbc] sm:$0xf]
    %v5280 = vld [vmem:[%s10 + $0xc0] sm:$0xf]
    %v5281 = vld [vmem:[%s10 + $0xc4] sm:$0xf]
    %v5282 = vld [vmem:[%s10 + $0xc8] sm:$0xf]
    %v5283 = vld [vmem:[%s10 + $0xcc] sm:$0xf]
    %v5284 = vld [vmem:[%s10 + $0xd0] sm:$0xf]
    %v5285 = vld [vmem:[%s10 + $0xd4] sm:$0xf]
    %v5286 = vld [vmem:[%s10 + $0xd8] sm:$0xf]
    %v5287 = vld [vmem:[%s10 + $0xdc] sm:$0xf]
    %v5288 = vld [vmem:[%s10 + $0xe0] sm:$0xf]
    %v5289 = vld [vmem:[%s10 + $0xe4] sm:$0xf]
    %v5290 = vld [vmem:[%s10 + $0xe8] sm:$0xf]
    %v5291 = vld [vmem:[%s10 + $0xec] sm:$0xf]
    %v5292 = vld [vmem:[%s10 + $0xf0] sm:$0xf]
    %v5293 = vld [vmem:[%s10 + $0xf4] sm:$0xf]
    %v5294 = vld [vmem:[%s10 + $0xf8] sm:$0xf]
    %v5295 = vld [vmem:[%s10 + $0xfc] sm:$0xf]
    %v5296 = vperm.slane %v40, 3
    %v5361 = vunpack.c.l.b16 %v5232
    %v5362 = vunpack.c.l.b16 %v5233
    %v5363 = vunpack.c.l.b16 %v5234
    %v5364 = vunpack.c.l.b16 %v5235
    %v5365 = vunpack.c.l.b16 %v5236
    %v5366 = vunpack.c.l.b16 %v5237
    %v5367 = vunpack.c.l.b16 %v5238
    %v5368 = vunpack.c.l.b16 %v5239
    %v5369 = vunpack.c.l.b16 %v5240
    %v5370 = vunpack.c.l.b16 %v5241
    %v5371 = vunpack.c.l.b16 %v5242
    %v5372 = vunpack.c.l.b16 %v5243
    %v5373 = vunpack.c.l.b16 %v5244
    %v5374 = vunpack.c.l.b16 %v5245
    %v5375 = vunpack.c.l.b16 %v5246
    %v5376 = vunpack.c.l.b16 %v5247
    %v5377 = vunpack.c.l.b16 %v5248
    %v5378 = vunpack.c.l.b16 %v5249
    %v5379 = vunpack.c.l.b16 %v5250
    %v5380 = vunpack.c.l.b16 %v5251
    %v5381 = vunpack.c.l.b16 %v5252
    %v5382 = vunpack.c.l.b16 %v5253
    %v5383 = vunpack.c.l.b16 %v5254
    %v5384 = vunpack.c.l.b16 %v5255
    %v5385 = vunpack.c.l.b16 %v5256
    %v5386 = vunpack.c.l.b16 %v5257
    %v5387 = vunpack.c.l.b16 %v5258
    %v5388 = vunpack.c.l.b16 %v5259
    %v5389 = vunpack.c.l.b16 %v5260
    %v5390 = vunpack.c.l.b16 %v5261
    %v5391 = vunpack.c.l.b16 %v5262
    %v5392 = vunpack.c.l.b16 %v5263
    %v5393 = vunpack.c.l.b16 %v5264
    %v5394 = vunpack.c.l.b16 %v5265
    %v5395 = vunpack.c.l.b16 %v5266
    %v5396 = vunpack.c.l.b16 %v5267
    %v5397 = vunpack.c.l.b16 %v5268
    %v5398 = vunpack.c.l.b16 %v5269
    %v5399 = vunpack.c.l.b16 %v5270
    %v5400 = vunpack.c.l.b16 %v5271
    %v5401 = vunpack.c.l.b16 %v5272
    %v5402 = vunpack.c.l.b16 %v5273
    %v5403 = vunpack.c.l.b16 %v5274
    %v5404 = vunpack.c.l.b16 %v5275
    %v5405 = vunpack.c.l.b16 %v5276
    %v5406 = vunpack.c.l.b16 %v5277
    %v5407 = vunpack.c.l.b16 %v5278
    %v5408 = vunpack.c.l.b16 %v5279
    %v5409 = vunpack.c.l.b16 %v5280
    %v5410 = vunpack.c.l.b16 %v5281
    %v5411 = vunpack.c.l.b16 %v5282
    %v5412 = vunpack.c.l.b16 %v5283
    %v5413 = vunpack.c.l.b16 %v5284
    %v5414 = vunpack.c.l.b16 %v5285
    %v5415 = vunpack.c.l.b16 %v5286
    %v5416 = vunpack.c.l.b16 %v5287
    %v5417 = vunpack.c.l.b16 %v5288
    %v5418 = vunpack.c.l.b16 %v5289
    %v5419 = vunpack.c.l.b16 %v5290
    %v5420 = vunpack.c.l.b16 %v5291
    %v5421 = vunpack.c.l.b16 %v5292
    %v5422 = vunpack.c.l.b16 %v5293
    %v5423 = vunpack.c.l.b16 %v5294
    %v5424 = vunpack.c.l.b16 %v5295
    %v5425 = vpack.c.b16 %v5362, %v5361
    %v5426 = vpack.c.b16 %v5364, %v5363
    %v5427 = vpack.c.b16 %v5366, %v5365
    %v5428 = vpack.c.b16 %v5368, %v5367
    %v5429 = vpack.c.b16 %v5370, %v5369
    %v5430 = vpack.c.b16 %v5372, %v5371
    %v5431 = vpack.c.b16 %v5374, %v5373
    %v5432 = vpack.c.b16 %v5376, %v5375
    %v5433 = vpack.c.b16 %v5378, %v5377
    %v5434 = vpack.c.b16 %v5380, %v5379
    %v5435 = vpack.c.b16 %v5382, %v5381
    %v5436 = vpack.c.b16 %v5384, %v5383
    %v5437 = vpack.c.b16 %v5386, %v5385
    %v5438 = vpack.c.b16 %v5388, %v5387
    %v5439 = vpack.c.b16 %v5390, %v5389
    %v5440 = vpack.c.b16 %v5392, %v5391
    %v5441 = vpack.c.b16 %v5394, %v5393
    %v5442 = vpack.c.b16 %v5396, %v5395
    %v5443 = vpack.c.b16 %v5398, %v5397
    %v5444 = vpack.c.b16 %v5400, %v5399
    %v5445 = vpack.c.b16 %v5402, %v5401
    %v5446 = vpack.c.b16 %v5404, %v5403
    %v5447 = vpack.c.b16 %v5406, %v5405
    %v5448 = vpack.c.b16 %v5408, %v5407
    %v5449 = vpack.c.b16 %v5410, %v5409
    %v5450 = vpack.c.b16 %v5412, %v5411
    %v5451 = vpack.c.b16 %v5414, %v5413
    %v5452 = vpack.c.b16 %v5416, %v5415
    %v5453 = vpack.c.b16 %v5418, %v5417
    %v5454 = vpack.c.b16 %v5420, %v5419
    %v5455 = vpack.c.b16 %v5422, %v5421
    %v5456 = vpack.c.b16 %v5424, %v5423
    %5489 = vmatpush.bf16.msra.mxu0 %v5432
    %5490 = vmatpush.bf16.msra.mxu0 %v5431
    %5491 = vmatpush.bf16.msra.mxu0 %v5430
    %5492 = vmatpush.bf16.msra.mxu0 %v5429
    %5493 = vmatpush.bf16.msra.mxu0 %v5428
    %5494 = vmatpush.bf16.msra.mxu0 %v5427
    %5495 = vmatpush.bf16.msra.mxu0 %v5426
    %5496 = vmatpush.bf16.msra.mxu0 %v5425
    %5497 = vmatmul.bf16.gmra.mxu0 %v5200
    %v5498 = vpop.f32.mrf.mxu0
    %v5499 = vadd.f32 %v5296, %v5498
    %v5500 = vpop.f32.mrf.mxu0
    %v5501 = vadd.f32 %v5296, %v5500
    %5502 = vmatmul.bf16.gmra.mxu0 %v5204
    %v5503 = vpop.f32.mrf.mxu0
    %v5504 = vadd.f32 %v5296, %v5503
    %v5505 = vpop.f32.mrf.mxu0
    %v5506 = vadd.f32 %v5296, %v5505
    %5507 = vmatmul.bf16.gmra.mxu0 %v5208
    %v5508 = vpop.f32.mrf.mxu0
    %v5509 = vadd.f32 %v5296, %v5508
    %v5510 = vpop.f32.mrf.mxu0
    %v5511 = vadd.f32 %v5296, %v5510
    %5512 = vmatmul.bf16.gmra.mxu0 %v5212
    %v5513 = vpop.f32.mrf.mxu0
    %v5514 = vadd.f32 %v5296, %v5513
    %v5515 = vpop.f32.mrf.mxu0
    %v5516 = vadd.f32 %v5296, %v5515
    %5517 = vmatmul.bf16.gmra.mxu0 %v5216
    %v5518 = vpop.f32.mrf.mxu0
    %v5519 = vadd.f32 %v5296, %v5518
    %v5520 = vpop.f32.mrf.mxu0
    %v5521 = vadd.f32 %v5296, %v5520
    %5522 = vmatmul.bf16.gmra.mxu0 %v5220
    %v5523 = vpop.f32.mrf.mxu0
    %v5524 = vadd.f32 %v5296, %v5523
    %v5525 = vpop.f32.mrf.mxu0
    %v5526 = vadd.f32 %v5296, %v5525
    %5527 = vmatmul.bf16.gmra.mxu0 %v5224
    %v5528 = vpop.f32.mrf.mxu0
    %v5529 = vadd.f32 %v5296, %v5528
    %v5530 = vpop.f32.mrf.mxu0
    %v5531 = vadd.f32 %v5296, %v5530
    %5532 = vmatmul.bf16.gmra.mxu0 %v5228
    %v5533 = vpop.f32.mrf.mxu0
    %v5534 = vadd.f32 %v5296, %v5533
    %v5535 = vpop.f32.mrf.mxu0
    %v5536 = vadd.f32 %v5296, %v5535
    %5537 = vdwg.mxu0
    %5538 = vmatpush.bf16.msra.mxu0 %v5440
    %5539 = vmatpush.bf16.msra.mxu0 %v5439
    %5540 = vmatpush.bf16.msra.mxu0 %v5438
    %5541 = vmatpush.bf16.msra.mxu0 %v5437
    %5542 = vmatpush.bf16.msra.mxu0 %v5436
    %5543 = vmatpush.bf16.msra.mxu0 %v5435
    %5544 = vmatpush.bf16.msra.mxu0 %v5434
    %5545 = vmatpush.bf16.msra.mxu0 %v5433
    %5546 = vmatmul.bf16.gmra.mxu0 %v5201
    %v5547 = vpop.f32.mrf.mxu0
    %v5548 = vadd.f32 %v5499, %v5547
    %v5549 = vpop.f32.mrf.mxu0
    %v5550 = vadd.f32 %v5501, %v5549
    %5551 = vmatmul.bf16.gmra.mxu0 %v5205
    %v5552 = vpop.f32.mrf.mxu0
    %v5553 = vadd.f32 %v5504, %v5552
    %v5554 = vpop.f32.mrf.mxu0
    %v5555 = vadd.f32 %v5506, %v5554
    %5556 = vmatmul.bf16.gmra.mxu0 %v5209
    %v5557 = vpop.f32.mrf.mxu0
    %v5558 = vadd.f32 %v5509, %v5557
    %v5559 = vpop.f32.mrf.mxu0
    %v5560 = vadd.f32 %v5511, %v5559
    %5561 = vmatmul.bf16.gmra.mxu0 %v5213
    %v5562 = vpop.f32.mrf.mxu0
    %v5563 = vadd.f32 %v5514, %v5562
    %v5564 = vpop.f32.mrf.mxu0
    %v5565 = vadd.f32 %v5516, %v5564
    %5566 = vmatmul.bf16.gmra.mxu0 %v5217
    %v5567 = vpop.f32.mrf.mxu0
    %v5568 = vadd.f32 %v5519, %v5567
    %v5569 = vpop.f32.mrf.mxu0
    %v5570 = vadd.f32 %v5521, %v5569
    %5571 = vmatmul.bf16.gmra.mxu0 %v5221
    %v5572 = vpop.f32.mrf.mxu0
    %v5573 = vadd.f32 %v5524, %v5572
    %v5574 = vpop.f32.mrf.mxu0
    %v5575 = vadd.f32 %v5526, %v5574
    %5576 = vmatmul.bf16.gmra.mxu0 %v5225
    %v5577 = vpop.f32.mrf.mxu0
    %v5578 = vadd.f32 %v5529, %v5577
    %v5579 = vpop.f32.mrf.mxu0
    %v5580 = vadd.f32 %v5531, %v5579
    %5581 = vmatmul.bf16.gmra.mxu0 %v5229
    %v5582 = vpop.f32.mrf.mxu0
    %v5583 = vadd.f32 %v5534, %v5582
    %v5584 = vpop.f32.mrf.mxu0
    %v5585 = vadd.f32 %v5536, %v5584
    %5586 = vdwg.mxu0
    %5587 = vmatpush.bf16.msra.mxu0 %v5448
    %5588 = vmatpush.bf16.msra.mxu0 %v5447
    %5589 = vmatpush.bf16.msra.mxu0 %v5446
    %5590 = vmatpush.bf16.msra.mxu0 %v5445
    %5591 = vmatpush.bf16.msra.mxu0 %v5444
    %5592 = vmatpush.bf16.msra.mxu0 %v5443
    %5593 = vmatpush.bf16.msra.mxu0 %v5442
    %5594 = vmatpush.bf16.msra.mxu0 %v5441
    %5595 = vmatmul.bf16.gmra.mxu0 %v5202
    %v5596 = vpop.f32.mrf.mxu0
    %v5597 = vadd.f32 %v5548, %v5596
    %v5598 = vpop.f32.mrf.mxu0
    %v5599 = vadd.f32 %v5550, %v5598
    %5600 = vmatmul.bf16.gmra.mxu0 %v5206
    %v5601 = vpop.f32.mrf.mxu0
    %v5602 = vadd.f32 %v5553, %v5601
    %v5603 = vpop.f32.mrf.mxu0
    %v5604 = vadd.f32 %v5555, %v5603
    %5605 = vmatmul.bf16.gmra.mxu0 %v5210
    %v5606 = vpop.f32.mrf.mxu0
    %v5607 = vadd.f32 %v5558, %v5606
    %v5608 = vpop.f32.mrf.mxu0
    %v5609 = vadd.f32 %v5560, %v5608
    %5610 = vmatmul.bf16.gmra.mxu0 %v5214
    %v5611 = vpop.f32.mrf.mxu0
    %v5612 = vadd.f32 %v5563, %v5611
    %v5613 = vpop.f32.mrf.mxu0
    %v5614 = vadd.f32 %v5565, %v5613
    %5615 = vmatmul.bf16.gmra.mxu0 %v5218
    %v5616 = vpop.f32.mrf.mxu0
    %v5617 = vadd.f32 %v5568, %v5616
    %v5618 = vpop.f32.mrf.mxu0
    %v5619 = vadd.f32 %v5570, %v5618
    %5620 = vmatmul.bf16.gmra.mxu0 %v5222
    %v5621 = vpop.f32.mrf.mxu0
    %v5622 = vadd.f32 %v5573, %v5621
    %v5623 = vpop.f32.mrf.mxu0
    %v5624 = vadd.f32 %v5575, %v5623
    %5625 = vmatmul.bf16.gmra.mxu0 %v5226
    %v5626 = vpop.f32.mrf.mxu0
    %v5627 = vadd.f32 %v5578, %v5626
    %v5628 = vpop.f32.mrf.mxu0
    %v5629 = vadd.f32 %v5580, %v5628
    %5630 = vmatmul.bf16.gmra.mxu0 %v5230
    %v5631 = vpop.f32.mrf.mxu0
    %v5632 = vadd.f32 %v5583, %v5631
    %v5633 = vpop.f32.mrf.mxu0
    %v5634 = vadd.f32 %v5585, %v5633
    %5635 = vdwg.mxu0
    %5636 = vmatpush.bf16.msra.mxu0 %v5456
    %5637 = vmatpush.bf16.msra.mxu0 %v5455
    %5638 = vmatpush.bf16.msra.mxu0 %v5454
    %5639 = vmatpush.bf16.msra.mxu0 %v5453
    %5640 = vmatpush.bf16.msra.mxu0 %v5452
    %5641 = vmatpush.bf16.msra.mxu0 %v5451
    %5642 = vmatpush.bf16.msra.mxu0 %v5450
    %5643 = vmatpush.bf16.msra.mxu0 %v5449
    %5644 = vmatmul.bf16.gmra.mxu0 %v5203
    %v5645 = vpop.f32.mrf.mxu0
    %v5646 = vadd.f32 %v5597, %v5645
    %v5647 = vpop.f32.mrf.mxu0
    %v5648 = vadd.f32 %v5599, %v5647
    %5649 = vmatmul.bf16.gmra.mxu0 %v5207
    %v5650 = vpop.f32.mrf.mxu0
    %v5651 = vadd.f32 %v5602, %v5650
    %v5652 = vpop.f32.mrf.mxu0
    %v5653 = vadd.f32 %v5604, %v5652
    %5654 = vmatmul.bf16.gmra.mxu0 %v5211
    %v5655 = vpop.f32.mrf.mxu0
    %v5656 = vadd.f32 %v5607, %v5655
    %v5657 = vpop.f32.mrf.mxu0
    %v5658 = vadd.f32 %v5609, %v5657
    %5659 = vmatmul.bf16.gmra.mxu0 %v5215
    %v5660 = vpop.f32.mrf.mxu0
    %v5661 = vadd.f32 %v5612, %v5660
    %v5662 = vpop.f32.mrf.mxu0
    %v5663 = vadd.f32 %v5614, %v5662
    %5664 = vmatmul.bf16.gmra.mxu0 %v5219
    %v5665 = vpop.f32.mrf.mxu0
    %v5666 = vadd.f32 %v5617, %v5665
    %v5667 = vpop.f32.mrf.mxu0
    %v5668 = vadd.f32 %v5619, %v5667
    %5669 = vmatmul.bf16.gmra.mxu0 %v5223
    %v5670 = vpop.f32.mrf.mxu0
    %v5671 = vadd.f32 %v5622, %v5670
    %v5672 = vpop.f32.mrf.mxu0
    %v5673 = vadd.f32 %v5624, %v5672
    %5674 = vmatmul.bf16.gmra.mxu0 %v5227
    %v5675 = vpop.f32.mrf.mxu0
    %v5676 = vadd.f32 %v5627, %v5675
    %v5677 = vpop.f32.mrf.mxu0
    %v5678 = vadd.f32 %v5629, %v5677
    %5679 = vmatmul.bf16.gmra.mxu0 %v5231
    %v5680 = vpop.f32.mrf.mxu0
    %v5681 = vadd.f32 %v5632, %v5680
    %v5682 = vpop.f32.mrf.mxu0
    %v5683 = vadd.f32 %v5634, %v5682
    %5684 = vdwg.mxu0
    %5685 = vadd.xlane.f32.xlu0 %v5646
    %v5686 = vpop.xlane.xlu0 %5685
    %5687 = vadd.xlane.f32.xlu0 %v5648
    %v5688 = vpop.xlane.xlu0 %5687
    %5689 = vadd.xlane.f32.xlu0 %v5651
    %v5690 = vpop.xlane.xlu0 %5689
    %5691 = vadd.xlane.f32.xlu0 %v5653
    %v5692 = vpop.xlane.xlu0 %5691
    %5693 = vadd.xlane.f32.xlu0 %v5656
    %v5694 = vpop.xlane.xlu0 %5693
    %5695 = vadd.xlane.f32.xlu0 %v5658
    %v5696 = vpop.xlane.xlu0 %5695
    %5697 = vadd.xlane.f32.xlu0 %v5661
    %v5698 = vpop.xlane.xlu0 %5697
    %5699 = vadd.xlane.f32.xlu0 %v5663
    %v5700 = vpop.xlane.xlu0 %5699
    %5701 = vadd.xlane.f32.xlu0 %v5666
    %v5702 = vpop.xlane.xlu0 %5701
    %5703 = vadd.xlane.f32.xlu0 %v5668
    %v5704 = vpop.xlane.xlu0 %5703
    %5705 = vadd.xlane.f32.xlu0 %v5671
    %v5706 = vpop.xlane.xlu0 %5705
    %5707 = vadd.xlane.f32.xlu0 %v5673
    %v5708 = vpop.xlane.xlu0 %5707
    %5709 = vadd.xlane.f32.xlu0 %v5676
    %v5710 = vpop.xlane.xlu0 %5709
    %5711 = vadd.xlane.f32.xlu0 %v5678
    %v5712 = vpop.xlane.xlu0 %5711
    %5713 = vadd.xlane.f32.xlu0 %v5681
    %v5714 = vpop.xlane.xlu0 %5713
    %5715 = vadd.xlane.f32.xlu0 %v5683
    %v5716 = vpop.xlane.xlu0 %5715
    %v5717 = vmul.f32 %v5686, %v827
    %v5718 = vmul.f32 %v5688, %v827
    %v5719 = vmul.f32 %v5690, %v827
    %v5720 = vmul.f32 %v5692, %v827
    %v5721 = vmul.f32 %v5694, %v827
    %v5722 = vmul.f32 %v5696, %v827
    %v5723 = vmul.f32 %v5698, %v827
    %v5724 = vmul.f32 %v5700, %v827
    %v5725 = vmul.f32 %v5702, %v827
    %v5726 = vmul.f32 %v5704, %v827
    %v5727 = vmul.f32 %v5706, %v827
    %v5728 = vmul.f32 %v5708, %v827
    %v5729 = vmul.f32 %v5710, %v827
    %v5730 = vmul.f32 %v5712, %v827
    %v5731 = vmul.f32 %v5714, %v827
    %v5732 = vmul.f32 %v5716, %v827
    %v5733 = vsub.f32 %v5646, %v5717
    %v5734 = vsub.f32 %v5648, %v5718
    %v5735 = vsub.f32 %v5651, %v5719
    %v5736 = vsub.f32 %v5653, %v5720
    %v5737 = vsub.f32 %v5656, %v5721
    %v5738 = vsub.f32 %v5658, %v5722
    %v5739 = vsub.f32 %v5661, %v5723
    %v5740 = vsub.f32 %v5663, %v5724
    %v5741 = vsub.f32 %v5666, %v5725
    %v5742 = vsub.f32 %v5668, %v5726
    %v5743 = vsub.f32 %v5671, %v5727
    %v5744 = vsub.f32 %v5673, %v5728
    %v5745 = vsub.f32 %v5676, %v5729
    %v5746 = vsub.f32 %v5678, %v5730
    %v5747 = vsub.f32 %v5681, %v5731
    %v5748 = vsub.f32 %v5683, %v5732
    %v5749 = vmul.f32 %v5733, %v5733
    %v5750 = vmul.f32 %v5734, %v5734
    %v5751 = vmul.f32 %v5735, %v5735
    %v5752 = vmul.f32 %v5736, %v5736
    %v5753 = vmul.f32 %v5737, %v5737
    %v5754 = vmul.f32 %v5738, %v5738
    %v5755 = vmul.f32 %v5739, %v5739
    %v5756 = vmul.f32 %v5740, %v5740
    %v5757 = vmul.f32 %v5741, %v5741
    %v5758 = vmul.f32 %v5742, %v5742
    %v5759 = vmul.f32 %v5743, %v5743
    %v5760 = vmul.f32 %v5744, %v5744
    %v5761 = vmul.f32 %v5745, %v5745
    %v5762 = vmul.f32 %v5746, %v5746
    %v5763 = vmul.f32 %v5747, %v5747
    %v5764 = vmul.f32 %v5748, %v5748
    %5765 = vadd.xlane.f32.xlu0 %v5749
    %v5766 = vpop.xlane.xlu0 %5765
    %5767 = vadd.xlane.f32.xlu0 %v5750
    %v5768 = vpop.xlane.xlu0 %5767
    %5769 = vadd.xlane.f32.xlu0 %v5751
    %v5770 = vpop.xlane.xlu0 %5769
    %5771 = vadd.xlane.f32.xlu0 %v5752
    %v5772 = vpop.xlane.xlu0 %5771
    %5773 = vadd.xlane.f32.xlu0 %v5753
    %v5774 = vpop.xlane.xlu0 %5773
    %5775 = vadd.xlane.f32.xlu0 %v5754
    %v5776 = vpop.xlane.xlu0 %5775
    %5777 = vadd.xlane.f32.xlu0 %v5755
    %v5778 = vpop.xlane.xlu0 %5777
    %5779 = vadd.xlane.f32.xlu0 %v5756
    %v5780 = vpop.xlane.xlu0 %5779
    %5781 = vadd.xlane.f32.xlu0 %v5757
    %v5782 = vpop.xlane.xlu0 %5781
    %5783 = vadd.xlane.f32.xlu0 %v5758
    %v5784 = vpop.xlane.xlu0 %5783
    %5785 = vadd.xlane.f32.xlu0 %v5759
    %v5786 = vpop.xlane.xlu0 %5785
    %5787 = vadd.xlane.f32.xlu0 %v5760
    %v5788 = vpop.xlane.xlu0 %5787
    %5789 = vadd.xlane.f32.xlu0 %v5761
    %v5790 = vpop.xlane.xlu0 %5789
    %5791 = vadd.xlane.f32.xlu0 %v5762
    %v5792 = vpop.xlane.xlu0 %5791
    %5793 = vadd.xlane.f32.xlu0 %v5763
    %v5794 = vpop.xlane.xlu0 %5793
    %5795 = vadd.xlane.f32.xlu0 %v5764
    %v5796 = vpop.xlane.xlu0 %5795
    %v5797 = vmul.f32 %v5766, %v827
    %v5798 = vmul.f32 %v5768, %v827
    %v5799 = vmul.f32 %v5770, %v827
    %v5800 = vmul.f32 %v5772, %v827
    %v5801 = vmul.f32 %v5774, %v827
    %v5802 = vmul.f32 %v5776, %v827
    %v5803 = vmul.f32 %v5778, %v827
    %v5804 = vmul.f32 %v5780, %v827
    %v5805 = vmul.f32 %v5782, %v827
    %v5806 = vmul.f32 %v5784, %v827
    %v5807 = vmul.f32 %v5786, %v827
    %v5808 = vmul.f32 %v5788, %v827
    %v5809 = vmul.f32 %v5790, %v827
    %v5810 = vmul.f32 %v5792, %v827
    %v5811 = vmul.f32 %v5794, %v827
    %v5812 = vmul.f32 %v5796, %v827
    %v5813 = vadd.f32 %v5797, 1e-06
    %v5814 = vadd.f32 %v5798, 1e-06
    %v5815 = vadd.f32 %v5799, 1e-06
    %v5816 = vadd.f32 %v5800, 1e-06
    %v5817 = vadd.f32 %v5801, 1e-06
    %v5818 = vadd.f32 %v5802, 1e-06
    %v5819 = vadd.f32 %v5803, 1e-06
    %v5820 = vadd.f32 %v5804, 1e-06
    %v5821 = vadd.f32 %v5805, 1e-06
    %v5822 = vadd.f32 %v5806, 1e-06
    %v5823 = vadd.f32 %v5807, 1e-06
    %v5824 = vadd.f32 %v5808, 1e-06
    %v5825 = vadd.f32 %v5809, 1e-06
    %v5826 = vadd.f32 %v5810, 1e-06
    %v5827 = vadd.f32 %v5811, 1e-06
    %v5828 = vadd.f32 %v5812, 1e-06
    %v5829 = vrsqrt.pop %v5813
    %v5830 = vmul.f32 %v5829, %v5813
    %v5831 = vmul.f32 %v5830, %v5829
    %v5832 = vmul.f32 0.5, %v5831
    %v5833 = vsub.f32 1.5, %v5832
    %v5834 = vmul.f32 %v5829, %v5833
    %vm5835 = vweird.f32 %v5813
    %vm5836 = vweird.f32 %v5829
    %vm5837 = vmor %vm5835, %vm5836
    %v5838 = vsel %vm5837, %v5829, %v5834
    %v5839 = vrsqrt.pop %v5814
    %v5840 = vmul.f32 %v5839, %v5814
    %v5841 = vmul.f32 %v5840, %v5839
    %v5842 = vmul.f32 0.5, %v5841
    %v5843 = vsub.f32 1.5, %v5842
    %v5844 = vmul.f32 %v5839, %v5843
    %vm5845 = vweird.f32 %v5814
    %vm5846 = vweird.f32 %v5839
    %vm5847 = vmor %vm5845, %vm5846
    %v5848 = vsel %vm5847, %v5839, %v5844
    %v5849 = vrsqrt.pop %v5815
    %v5850 = vmul.f32 %v5849, %v5815
    %v5851 = vmul.f32 %v5850, %v5849
    %v5852 = vmul.f32 0.5, %v5851
    %v5853 = vsub.f32 1.5, %v5852
    %v5854 = vmul.f32 %v5849, %v5853
    %vm5855 = vweird.f32 %v5815
    %vm5856 = vweird.f32 %v5849
    %vm5857 = vmor %vm5855, %vm5856
    %v5858 = vsel %vm5857, %v5849, %v5854
    %v5859 = vrsqrt.pop %v5816
    %v5860 = vmul.f32 %v5859, %v5816
    %v5861 = vmul.f32 %v5860, %v5859
    %v5862 = vmul.f32 0.5, %v5861
    %v5863 = vsub.f32 1.5, %v5862
    %v5864 = vmul.f32 %v5859, %v5863
    %vm5865 = vweird.f32 %v5816
    %vm5866 = vweird.f32 %v5859
    %vm5867 = vmor %vm5865, %vm5866
    %v5868 = vsel %vm5867, %v5859, %v5864
    %v5869 = vrsqrt.pop %v5817
    %v5870 = vmul.f32 %v5869, %v5817
    %v5871 = vmul.f32 %v5870, %v5869
    %v5872 = vmul.f32 0.5, %v5871
    %v5873 = vsub.f32 1.5, %v5872
    %v5874 = vmul.f32 %v5869, %v5873
    %vm5875 = vweird.f32 %v5817
    %vm5876 = vweird.f32 %v5869
    %vm5877 = vmor %vm5875, %vm5876
    %v5878 = vsel %vm5877, %v5869, %v5874
    %v5879 = vrsqrt.pop %v5818
    %v5880 = vmul.f32 %v5879, %v5818
    %v5881 = vmul.f32 %v5880, %v5879
    %v5882 = vmul.f32 0.5, %v5881
    %v5883 = vsub.f32 1.5, %v5882
    %v5884 = vmul.f32 %v5879, %v5883
    %vm5885 = vweird.f32 %v5818
    %vm5886 = vweird.f32 %v5879
    %vm5887 = vmor %vm5885, %vm5886
    %v5888 = vsel %vm5887, %v5879, %v5884
    %v5889 = vrsqrt.pop %v5819
    %v5890 = vmul.f32 %v5889, %v5819
    %v5891 = vmul.f32 %v5890, %v5889
    %v5892 = vmul.f32 0.5, %v5891
    %v5893 = vsub.f32 1.5, %v5892
    %v5894 = vmul.f32 %v5889, %v5893
    %vm5895 = vweird.f32 %v5819
    %vm5896 = vweird.f32 %v5889
    %vm5897 = vmor %vm5895, %vm5896
    %v5898 = vsel %vm5897, %v5889, %v5894
    %v5899 = vrsqrt.pop %v5820
    %v5900 = vmul.f32 %v5899, %v5820
    %v5901 = vmul.f32 %v5900, %v5899
    %v5902 = vmul.f32 0.5, %v5901
    %v5903 = vsub.f32 1.5, %v5902
    %v5904 = vmul.f32 %v5899, %v5903
    %vm5905 = vweird.f32 %v5820
    %vm5906 = vweird.f32 %v5899
    %vm5907 = vmor %vm5905, %vm5906
    %v5908 = vsel %vm5907, %v5899, %v5904
    %v5909 = vrsqrt.pop %v5821
    %v5910 = vmul.f32 %v5909, %v5821
    %v5911 = vmul.f32 %v5910, %v5909
    %v5912 = vmul.f32 0.5, %v5911
    %v5913 = vsub.f32 1.5, %v5912
    %v5914 = vmul.f32 %v5909, %v5913
    %vm5915 = vweird.f32 %v5821
    %vm5916 = vweird.f32 %v5909
    %vm5917 = vmor %vm5915, %vm5916
    %v5918 = vsel %vm5917, %v5909, %v5914
    %v5919 = vrsqrt.pop %v5822
    %v5920 = vmul.f32 %v5919, %v5822
    %v5921 = vmul.f32 %v5920, %v5919
    %v5922 = vmul.f32 0.5, %v5921
    %v5923 = vsub.f32 1.5, %v5922
    %v5924 = vmul.f32 %v5919, %v5923
    %vm5925 = vweird.f32 %v5822
    %vm5926 = vweird.f32 %v5919
    %vm5927 = vmor %vm5925, %vm5926
    %v5928 = vsel %vm5927, %v5919, %v5924
    %v5929 = vrsqrt.pop %v5823
    %v5930 = vmul.f32 %v5929, %v5823
    %v5931 = vmul.f32 %v5930, %v5929
    %v5932 = vmul.f32 0.5, %v5931
    %v5933 = vsub.f32 1.5, %v5932
    %v5934 = vmul.f32 %v5929, %v5933
    %vm5935 = vweird.f32 %v5823
    %vm5936 = vweird.f32 %v5929
    %vm5937 = vmor %vm5935, %vm5936
    %v5938 = vsel %vm5937, %v5929, %v5934
    %v5939 = vrsqrt.pop %v5824
    %v5940 = vmul.f32 %v5939, %v5824
    %v5941 = vmul.f32 %v5940, %v5939
    %v5942 = vmul.f32 0.5, %v5941
    %v5943 = vsub.f32 1.5, %v5942
    %v5944 = vmul.f32 %v5939, %v5943
    %vm5945 = vweird.f32 %v5824
    %vm5946 = vweird.f32 %v5939
    %vm5947 = vmor %vm5945, %vm5946
    %v5948 = vsel %vm5947, %v5939, %v5944
    %v5949 = vrsqrt.pop %v5825
    %v5950 = vmul.f32 %v5949, %v5825
    %v5951 = vmul.f32 %v5950, %v5949
    %v5952 = vmul.f32 0.5, %v5951
    %v5953 = vsub.f32 1.5, %v5952
    %v5954 = vmul.f32 %v5949, %v5953
    %vm5955 = vweird.f32 %v5825
    %vm5956 = vweird.f32 %v5949
    %vm5957 = vmor %vm5955, %vm5956
    %v5958 = vsel %vm5957, %v5949, %v5954
    %v5959 = vrsqrt.pop %v5826
    %v5960 = vmul.f32 %v5959, %v5826
    %v5961 = vmul.f32 %v5960, %v5959
    %v5962 = vmul.f32 0.5, %v5961
    %v5963 = vsub.f32 1.5, %v5962
    %v5964 = vmul.f32 %v5959, %v5963
    %vm5965 = vweird.f32 %v5826
    %vm5966 = vweird.f32 %v5959
    %vm5967 = vmor %vm5965, %vm5966
    %v5968 = vsel %vm5967, %v5959, %v5964
    %v5969 = vrsqrt.pop %v5827
    %v5970 = vmul.f32 %v5969, %v5827
    %v5971 = vmul.f32 %v5970, %v5969
    %v5972 = vmul.f32 0.5, %v5971
    %v5973 = vsub.f32 1.5, %v5972
    %v5974 = vmul.f32 %v5969, %v5973
    %vm5975 = vweird.f32 %v5827
    %vm5976 = vweird.f32 %v5969
    %vm5977 = vmor %vm5975, %vm5976
    %v5978 = vsel %vm5977, %v5969, %v5974
    %v5979 = vrsqrt.pop %v5828
    %v5980 = vmul.f32 %v5979, %v5828
    %v5981 = vmul.f32 %v5980, %v5979
    %v5982 = vmul.f32 0.5, %v5981
    %v5983 = vsub.f32 1.5, %v5982
    %v5984 = vmul.f32 %v5979, %v5983
    %vm5985 = vweird.f32 %v5828
    %vm5986 = vweird.f32 %v5979
    %vm5987 = vmor %vm5985, %vm5986
    %v5988 = vsel %vm5987, %v5979, %v5984
    %v5989 = vmul.f32 %v5733, %v5838
    %v5990 = vmul.f32 %v5734, %v5848
    %v5991 = vmul.f32 %v5735, %v5858
    %v5992 = vmul.f32 %v5736, %v5868
    %v5993 = vmul.f32 %v5737, %v5878
    %v5994 = vmul.f32 %v5738, %v5888
    %v5995 = vmul.f32 %v5739, %v5898
    %v5996 = vmul.f32 %v5740, %v5908
    %v5997 = vmul.f32 %v5741, %v5918
    %v5998 = vmul.f32 %v5742, %v5928
    %v5999 = vmul.f32 %v5743, %v5938
    %v6000 = vmul.f32 %v5744, %v5948
    %v6001 = vmul.f32 %v5745, %v5958
    %v6002 = vmul.f32 %v5746, %v5968
    %v6003 = vmul.f32 %v5747, %v5978
    %v6004 = vmul.f32 %v5748, %v5988
    %v6005 = vperm.slane %v40, 4
    %v6006 = vmul.f32 %v5989, %v6005
    %v6007 = vmul.f32 %v5990, %v6005
    %v6008 = vmul.f32 %v5991, %v6005
    %v6009 = vmul.f32 %v5992, %v6005
    %v6010 = vmul.f32 %v5993, %v6005
    %v6011 = vmul.f32 %v5994, %v6005
    %v6012 = vmul.f32 %v5995, %v6005
    %v6013 = vmul.f32 %v5996, %v6005
    %v6014 = vmul.f32 %v5997, %v6005
    %v6015 = vmul.f32 %v5998, %v6005
    %v6016 = vmul.f32 %v5999, %v6005
    %v6017 = vmul.f32 %v6000, %v6005
    %v6018 = vmul.f32 %v6001, %v6005
    %v6019 = vmul.f32 %v6002, %v6005
    %v6020 = vmul.f32 %v6003, %v6005
    %v6021 = vmul.f32 %v6004, %v6005
    %v6022 = vperm.slane %v40, 5
    %v6023 = vadd.f32 %v6006, %v6022
    %v6024 = vadd.f32 %v6007, %v6022
    %v6025 = vadd.f32 %v6008, %v6022
    %v6026 = vadd.f32 %v6009, %v6022
    %v6027 = vadd.f32 %v6010, %v6022
    %v6028 = vadd.f32 %v6011, %v6022
    %v6029 = vadd.f32 %v6012, %v6022
    %v6030 = vadd.f32 %v6013, %v6022
    %v6031 = vadd.f32 %v6014, %v6022
    %v6032 = vadd.f32 %v6015, %v6022
    %v6033 = vadd.f32 %v6016, %v6022
    %v6034 = vadd.f32 %v6017, %v6022
    %v6035 = vadd.f32 %v6018, %v6022
    %v6036 = vadd.f32 %v6019, %v6022
    %v6037 = vadd.f32 %v6020, %v6022
    %v6038 = vadd.f32 %v6021, %v6022
    %v6039 = vadd.f32 %v1962, %v6023
    %v6040 = vadd.f32 %v1963, %v6024
    %v6041 = vadd.f32 %v1964, %v6025
    %v6042 = vadd.f32 %v1965, %v6026
    %v6043 = vadd.f32 %v1966, %v6027
    %v6044 = vadd.f32 %v1967, %v6028
    %v6045 = vadd.f32 %v1968, %v6029
    %v6046 = vadd.f32 %v1969, %v6030
    %v6047 = vadd.f32 %v1970, %v6031
    %v6048 = vadd.f32 %v1971, %v6032
    %v6049 = vadd.f32 %v1972, %v6033
    %v6050 = vadd.f32 %v1973, %v6034
    %v6051 = vadd.f32 %v1974, %v6035
    %v6052 = vadd.f32 %v1975, %v6036
    %v6053 = vadd.f32 %v1976, %v6037
    %v6054 = vadd.f32 %v1977, %v6038
    %6055 = vst [vmem:[#allocation2] sm:$0xff] %v6039
    %6056 = vst [vmem:[#allocation2 + $0x8] sm:$0xff] %v6040
    %6057 = vst [vmem:[#allocation2 + $0x10] sm:$0xff] %v6041
    %6058 = vst [vmem:[#allocation2 + $0x18] sm:$0xff] %v6042
    %6059 = vst [vmem:[#allocation2 + $0x20] sm:$0xff] %v6043
    %6060 = vst [vmem:[#allocation2 + $0x28] sm:$0xff] %v6044
    %6061 = vst [vmem:[#allocation2 + $0x30] sm:$0xff] %v6045
    %6062 = vst [vmem:[#allocation2 + $0x38] sm:$0xff] %v6046
    %6063 = vst [vmem:[#allocation2 + $0x40] sm:$0xff] %v6047
    %6064 = vst [vmem:[#allocation2 + $0x48] sm:$0xff] %v6048
    %6065 = vst [vmem:[#allocation2 + $0x50] sm:$0xff] %v6049
    %6066 = vst [vmem:[#allocation2 + $0x58] sm:$0xff] %v6050
    %6067 = vst [vmem:[#allocation2 + $0x60] sm:$0xff] %v6051
    %6068 = vst [vmem:[#allocation2 + $0x68] sm:$0xff] %v6052
    %6069 = vst [vmem:[#allocation2 + $0x70] sm:$0xff] %v6053
    %6070 = vst [vmem:[#allocation2 + $0x78] sm:$0xff] %v6054
    // Predicated region
    $region46: #{heat_block_forward.1} parent=1 // pred_check
      _
    $region47: #{heat_block_forward.1} parent=1 // pred_check_branch
      %6072 = sbr.rel (0) target = $region49
    $region48: #{heat_block_forward.1} parent=1 // pred_region
      %6074 = vsyncadd [#allocation3], 0
      %s6075 = sshll.u32 [#allocation2], 4
      %s6076 = int_to_ptr.vmem [resolvable:$true] %s6075
      %s6077 = sshll.u32 %s11, 4
      %s6078 = int_to_ptr.hbm [resolvable:$true] %s6077
      %6083 = dma.vmem_to_hbm [thread:$0]  %s6076, 2048, %s6078, [#allocation3], 128, 128, 8
    $region49: #{heat_block_forward.1} parent=1 // pred_fallthru
      _
    // Predicated region
    $region50: #{heat_block_forward.1} parent=1 // pred_check
      _
    $region51: #{heat_block_forward.1} parent=1 // pred_check_branch
      %6085 = sbr.rel (0) target = $region53
    $region52: #{heat_block_forward.1} parent=1 // pred_region
      %6087 = dma.done [#allocation3], 2048
    $region53: #{heat_block_forward.1} parent=1 // pred_fallthru
      _
    %6088 = vsyncpa [#allocation3], 1

</llo_original>
